<compile_context>
chip_gen: v7x
topology: tpu7x:2x2x1
jax: 0.10.0
libtpu: 0.0.40
codegen_flags: <defaults>
</compile_context>

<pallas_src>
import jax
import jax.numpy as jnp
from jax import lax
from jax.experimental import pallas as pl
from jax.experimental.pallas import tpu as pltpu

EPS = 1e-5
ACT_DTYPE = jnp.bfloat16   # MXU-native operand / intermediate-activation dtype


# ---------------------------------------------------------------------------
# Kernels
# ---------------------------------------------------------------------------
def _conv3x3_rows(xpad, w_ref):
    """3x3 stride-1 'same' conv of a zero-padded NHWC activation.

    xpad : (B, H+2, W+2, C) bf16 value, 1-pixel halo already zero.
    w_ref: (3, 3*C, C_out) bf16 ref; rows of block kh ordered (kw, cin).
    Returns (B*H*W, C_out) f32 accumulator.

    Three MXU matmuls of K=3*C (one per kernel row) accumulated in f32 —
    no staging scratch, no 9-tap concat.
    """
    B, Hp, Wp, C = xpad.shape
    H, W = Hp - 2, Wp - 2
    Cout = w_ref.shape[-1]
    acc = jnp.zeros((B * H * W, Cout), jnp.float32)
    for kh in range(3):                                    # static unroll
        slab = xpad[:, kh:kh + H, :, :]                    # (B, H, W+2, C)
        patch = jnp.concatenate(
            [slab[:, :, kw:kw + W, :] for kw in range(3)], axis=-1,
        ).reshape(B * H * W, 3 * C)                        # bf16 (B*H*W, 3C)
        acc = acc + jnp.dot(patch, w_ref[kh],
                            preferred_element_type=jnp.float32)
    return acc


def _store_stats(st_ref, acc):
    # One-pass (sum, sum-of-squares) partials in f32, finalized in the wrapper.
    st_ref[0, 0:1, :] = jnp.sum(acc, axis=0, keepdims=True)
    st_ref[0, 1:2, :] = jnp.sum(acc * acc, axis=0, keepdims=True)


def conv1_stats_kernel(xp_ref, w_ref, yp_ref, st_ref):
    """conv1 on the pre-padded input.

    Emits the conv result in padded layout (halo = 0) so pass 2 needs no
    re-padding, plus per-block BN1 partial statistics.
    """
    B, Hp, Wp, C = yp_ref.shape
    H, W = Hp - 2, Wp - 2
    acc = _conv3x3_rows(xp_ref[...], w_ref)
    # The halo is real output data (pass 2 reads it as conv2's zero padding);
    # it must be written for every block, so zero it then store the interior.
    zrow = jnp.zeros((B, 1, Wp, C), yp_ref.dtype)
    zcol = jnp.zeros((B, Hp, 1, C), yp_ref.dtype)
    yp_ref[:, 0:1, :, :] = zrow
    yp_ref[:, Hp - 1:Hp, :, :] = zrow
    yp_ref[:, :, 0:1, :] = zcol
    yp_ref[:, :, Wp - 1:Wp, :] = zcol
    yp_ref[:, 1:H + 1, 1:W + 1, :] = (
        acc.reshape(B, H, W, C).astype(yp_ref.dtype))
    _store_stats(st_ref, acc)


def bn_relu_conv2_stats_kernel(yp_ref, sc_ref, sh_ref, w_ref, y2_ref, st_ref):
    """bn1 + relu fused into conv2 (reads the padded conv1 output) + BN2 stats."""
    B, Hp, Wp, C = yp_ref.shape
    H, W = Hp - 2, Wp - 2
    # bn1 scale/shift + relu on the whole padded block; the halo then holds
    # relu(0*sc + sh) != 0, so re-zero it with a cheap VPU mask multiply.
    h = jnp.maximum(
        yp_ref[...].astype(jnp.float32) * sc_ref[...] + sh_ref[...], 0.0)
    r = lax.broadcasted_iota(jnp.int32, (Hp, Wp), 0)
    c = lax.broadcasted_iota(jnp.int32, (Hp, Wp), 1)
    interior = ((r >= 1) & (r <= H) & (c >= 1) & (c <= W)).astype(jnp.float32)
    h = (h * interior[None, :, :, None]).astype(ACT_DTYPE)
    acc = _conv3x3_rows(h, w_ref)
    y2_ref[...] = acc.reshape(B, H, W, C).astype(y2_ref.dtype)
    _store_stats(st_ref, acc)


def bn_add_relu_kernel(y2_ref, x_ref, sc_ref, sh_ref, out_ref):
    """bn2 + residual add + relu over a lane-dense (B, H, W*C) view."""
    out_ref[...] = jnp.maximum(
        y2_ref[...].astype(jnp.float32) * sc_ref[...] + sh_ref[...] + x_ref[...],
        0.0)


# ---------------------------------------------------------------------------
# Wrapper helpers
# ---------------------------------------------------------------------------
def _vmem_capacity():
    try:
        return int(pltpu.get_tpu_info().vmem_capacity_bytes)
    except Exception:                     # pragma: no cover - conservative fallback
        return 64 * 1024 * 1024           # v7x per-TensorCore physical VMEM


def _conv_step_bytes(bt, H, W, C):
    """Per-grid-step VMEM estimate for the conv passes (only the streamed
    in/out blocks are double-buffered; temporaries are single-buffered)."""
    Hp, Wp = H + 2, W + 2
    itm = jnp.dtype(ACT_DTYPE).itemsize
    blk_in = bt * Hp * Wp * C * itm                 # padded activation block
    blk_out = bt * Hp * Wp * C * itm                # worst case: padded output
    temps = (bt * H * W * 3 * C * itm               # one kh-row im2col patch
             + bt * H * W * C * 4                   # f32 accumulator
             + bt * Hp * Wp * C * 4)                # f32 bn/relu temp (pass 2)
    wts = 9 * C * C * itm
    return 2 * (blk_in + blk_out) + temps + wts


def _ew_step_bytes(bt, H, W, C):
    e = bt * H * W * C
    return 2 * (e * 2 + e * 4 + e * 4) + 2 * W * C * 4


def _pick_batch_tile(N, H, W, C, budget):
    """Largest divisor of N fitting the VMEM budget, keeping >=2 grid steps
    when N >= 2 (v7x megacore sharding + DMA/compute overlap)."""
    best = 1
    for bt in range(1, N + 1):
        if N % bt:
            continue
        if _conv_step_bytes(bt, H, W, C) > budget:
            break
        if bt == N and N > 1:
            continue
        best = bt
    return best


def _compiler_params(step_bytes, capacity):
    # Headroom for compiler-internal scratch, never the whole physical VMEM.
    limit = int(min(max(2 * step_bytes, 32 * 1024 * 1024),
                    int(0.85 * capacity)))
    return pltpu.CompilerParams(
        dimension_semantics=("parallel",),
        vmem_limit_bytes=limit,
    )


def _bn_scale_shift(stats, gamma, beta, count):
    """Finalize training-mode BatchNorm from per-block [sum, sum_sq] partials.

    Note: E[x^2]-E[x]^2 in f32 is fine for zero-mean-ish conv outputs; switch
    to a shifted/Welford accumulation if activations acquire large means.
    """
    s = jnp.sum(stats[:, 0, :], axis=0)
    ss = jnp.sum(stats[:, 1, :], axis=0)
    mean = s / count
    var = ss / count - mean * mean                 # biased variance (training BN)
    scale = gamma * lax.rsqrt(var + EPS)
    shift = beta - mean * scale
    return scale.reshape(1, -1), shift.reshape(1, -1)


# ---------------------------------------------------------------------------
# Forward pass
# ---------------------------------------------------------------------------
@jax.jit
def basic_block_forward_nhwc(x_nhwc, w1_oihw, w2_oihw, g1, b1, g2, b2):
    """BasicBlock forward, NHWC in / NHWC out (layout-native path)."""
    N, H, W, C = x_nhwc.shape
    Hp, Wp = H + 2, W + 2

    # OIHW -> (kh, 3*Cin, Cout), rows of each kh block ordered (kw, cin),
    # matching the in-kernel per-row im2col channel order; bf16 MXU operands.
    def prep_w(w):
        return jnp.transpose(w, (2, 3, 1, 0)).reshape(3, 3 * C, C).astype(ACT_DTYPE)
    w1_r, w2_r = prep_w(w1_oihw), prep_w(w2_oihw)

    # HBM pre-pad of the block input (removes all in-kernel staging for conv1).
    x_pad = jnp.pad(x_nhwc.astype(ACT_DTYPE), ((0, 0), (1, 1), (1, 1), (0, 0)))

    capacity = _vmem_capacity()
    B_t = _pick_batch_tile(N, H, W, C, budget=capacity // 2)
    G = N // B_t

    pad_spec = pl.BlockSpec((B_t, Hp, Wp, C), lambda n: (n, 0, 0, 0))
    act_spec = pl.BlockSpec((B_t, H, W, C), lambda n: (n, 0, 0, 0))
    w_spec = pl.BlockSpec((3, 3 * C, C), lambda n: (0, 0, 0))
    vec_spec = pl.BlockSpec((1, C), lambda n: (0, 0))
    st_spec = pl.BlockSpec((1, 2, C), lambda n: (n, 0, 0))
    st_shape = jax.ShapeDtypeStruct((G, 2, C), jnp.float32)

    cp_conv = _compiler_params(_conv_step_bytes(B_t, H, W, C), capacity)
    cp_ew = _compiler_params(_ew_step_bytes(B_t, H, W, C), capacity)

    # Pass 1: conv1 (padded-layout bf16 output) + partial BN1 stats.
    y1p, st1 = pl.pallas_call(
        conv1_stats_kernel,
        grid=(G,),
        in_specs=[pad_spec, w_spec],
        out_specs=[pad_spec, st_spec],
        out_shape=[jax.ShapeDtypeStruct((N, Hp, Wp, C), ACT_DTYPE), st_shape],
        compiler_params=cp_conv,
    )(x_pad, w1_r)
    sc1, sh1 = _bn_scale_shift(st1, g1, b1, N * H * W)

    # Pass 2: bn1 + relu fused into conv2 + partial BN2 stats.
    y2, st2 = pl.pallas_call(
        bn_relu_conv2_stats_kernel,
        grid=(G,),
        in_specs=[pad_spec, vec_spec, vec_spec, w_spec],
        out_specs=[act_spec, st_spec],
        out_shape=[jax.ShapeDtypeStruct((N, H, W, C), ACT_DTYPE), st_shape],
        compiler_params=cp_conv,
    )(y1p, sc1, sh1, w2_r)
    sc2, sh2 = _bn_scale_shift(st2, g2, b2, N * H * W)

    # Pass 3: bn2 + residual add + relu on a lane-dense (N, H, W*C) view.
    row_spec = pl.BlockSpec((B_t, H, W * C), lambda n: (n, 0, 0))
    rvec_spec = pl.BlockSpec((1, W * C), lambda n: (0, 0))
    out = pl.pallas_call(
        bn_add_relu_kernel,
        grid=(G,),
        in_specs=[row_spec, row_spec, rvec_spec, rvec_spec],
        out_specs=row_spec,
        out_shape=jax.ShapeDtypeStruct((N, H, W * C), jnp.float32),
        compiler_params=cp_ew,
    )(y2.reshape(N, H, W * C), x_nhwc.reshape(N, H, W * C),
      jnp.tile(sc2, (1, W)), jnp.tile(sh2, (1, W)))
    return out.reshape(N, H, W, C)


def basic_block_forward(x_nchw, w1_oihw, w2_oihw, g1, b1, g2, b2):
    """Thin NCHW adapter (PyTorch calling convention) around the NHWC path."""
    x_nhwc = jnp.transpose(x_nchw, (0, 2, 3, 1))
    out = basic_block_forward_nhwc(x_nhwc, w1_oihw, w2_oihw, g1, b1, g2, b2)
    return jnp.transpose(out, (0, 3, 1, 2))


# ---------------------------------------------------------------------------
# Pure-JAX references (PyTorch semantics, training-mode BN)
# ---------------------------------------------------------------------------
def reference_forward(x_nchw, w1, w2, g1, b1, g2, b2, *, mirror_bf16):
    """mirror_bf16=False: exact f32 PyTorch-default numerics.
    mirror_bf16=True : conv operands / conv outputs rounded to bf16 at the same
    points as the Pallas path (BN stats still from the f32 conv result)."""
    dn = ("NCHW", "OIHW", "NCHW")
    cd = jnp.bfloat16 if mirror_bf16 else jnp.float32

    def conv(a, w):
        return lax.conv_general_dilated(
            a.astype(cd), w.astype(cd), (1, 1), ((1, 1), (1, 1)),
            dimension_numbers=dn, preferred_element_type=jnp.float32)

    def bn(y, gamma, beta):
        mean = jnp.mean(y, axis=(0, 2, 3), keepdims=True)
        var = jnp.mean(jnp.square(y - mean), axis=(0, 2, 3), keepdims=True)
        scale = gamma.reshape(1, -1, 1, 1) * lax.rsqrt(var + EPS)
        shift = beta.reshape(1, -1, 1, 1) - mean * scale
        ya = y.astype(cd).astype(jnp.float32)
        return ya * scale + shift

    h = jnp.maximum(bn(conv(x_nchw, w1), g1, b1), 0.0)
    y2 = conv(h, w2)
    return jnp.maximum(bn(y2, g2, b2) + x_nchw, 0.0)


if __name__ == "__main__":
    key = jax.random.PRNGKey(0)
    N, C, H, W = 2, 4, 16, 16       # inplanes == planes, stride=1, no downsample
    ks = jax.random.split(key, 7)

    x = jax.random.normal(ks[0], (N, C, H, W), jnp.float32)
    w1 = jax.random.normal(ks[1], (C, C, 3, 3), jnp.float32) * 0.1
    w2 = jax.random.normal(ks[2], (C, C, 3, 3), jnp.float32) * 0.1
    g1 = 1.0 + 0.1 * jax.random.normal(ks[3], (C,), jnp.float32)
    b1 = 0.1 * jax.random.normal(ks[4], (C,), jnp.float32)
    g2 = 1.0 + 0.1 * jax.random.normal(ks[5], (C,), jnp.float32)
    b2 = 0.1 * jax.random.normal(ks[6], (C,), jnp.float32)

    out = jax.block_until_ready(basic_block_forward(x, w1, w2, g1, b1, g2, b2))
    assert out.shape == (N, C, H, W)

    ref_m = reference_forward(x, w1, w2, g1, b1, g2, b2, mirror_bf16=True)
    ref_f = reference_forward(x, w1, w2, g1, b1, g2, b2, mirror_bf16=False)
    err_m = float(jnp.max(jnp.abs(out - ref_m)))
    err_f = float(jnp.max(jnp.abs(out - ref_f)))
    # Tight check vs a reference sharing the kernel's bf16 rounding points, and
    # a looser bound on the total bf16-induced deviation from the f32 module.
    assert err_m < 2e-2, f"mismatch vs bf16-mirrored reference: {err_m}"
    assert err_f < 8e-2, f"mismatch vs f32 reference: {err_f}"

    print("KERNEL_OK")
</pallas_src>

<mosaic_0001>
module attributes {stable_mosaic.version = 11 : i64} {
  func.func @conv1_stats_kernel(%arg0: i32, %arg1: memref<1x18x18x4xbf16, #tpu.memory_space<vmem>>, %arg2: memref<3x12x4xbf16, #tpu.memory_space<vmem>>, %arg3: memref<1x18x18x4xbf16, #tpu.memory_space<vmem>>, %arg4: memref<1x2x4xf32, #tpu.memory_space<vmem>>) attributes {dimension_semantics = [#tpu.dimension_semantics<parallel>], iteration_bounds = array<i64: 2>, scalar_prefetch = 0 : i64, scratch_operands = 0 : i64, tpu.core_type = #tpu.core_type<tc>, window_params = [{transform_indices = @transform_0, window_bounds = array<i64: 1, 18, 18, 4>}, {pipeline_mode = #tpu.pipeline_mode<synchronous>, transform_indices = @transform_1, window_bounds = array<i64: 3, 12, 4>}, {transform_indices = @transform_2, window_bounds = array<i64: 1, 18, 18, 4>}, {transform_indices = @transform_3, window_bounds = array<i64: 1, 2, 4>}]} {
    %c0 = arith.constant 0 : index
    %c0_0 = arith.constant 0 : index
    %c0_1 = arith.constant 0 : index
    %c0_2 = arith.constant 0 : index
    %0 = vector.load %arg1[%c0, %c0_0, %c0_1, %c0_2] : memref<1x18x18x4xbf16, #tpu.memory_space<vmem>>, vector<1x18x18x4xbf16>
    %cst = arith.constant 0.000000e+00 : f32
    %1 = vector.broadcast %cst : f32 to vector<256x4xf32>
    %2 = vector.extract_strided_slice %0 {offsets = [0, 0, 0, 0], sizes = [1, 16, 18, 4], strides = [1, 1, 1, 1]} : vector<1x18x18x4xbf16> to vector<1x16x18x4xbf16>
    %3 = vector.extract_strided_slice %2 {offsets = [0, 0, 0, 0], sizes = [1, 16, 16, 4], strides = [1, 1, 1, 1]} : vector<1x16x18x4xbf16> to vector<1x16x16x4xbf16>
    %4 = vector.extract_strided_slice %2 {offsets = [0, 0, 1, 0], sizes = [1, 16, 16, 4], strides = [1, 1, 1, 1]} : vector<1x16x18x4xbf16> to vector<1x16x16x4xbf16>
    %5 = vector.extract_strided_slice %2 {offsets = [0, 0, 2, 0], sizes = [1, 16, 16, 4], strides = [1, 1, 1, 1]} : vector<1x16x18x4xbf16> to vector<1x16x16x4xbf16>
    %6 = tpu.concatenate %3, %4, %5 in 3 : vector<1x16x16x4xbf16>, vector<1x16x16x4xbf16>, vector<1x16x16x4xbf16> -> vector<1x16x16x12xbf16>
    %7 = vector.shape_cast %6 : vector<1x16x16x12xbf16> to vector<256x12xbf16>
    %c0_3 = arith.constant 0 : index
    %c0_4 = arith.constant 0 : index
    %c0_5 = arith.constant 0 : index
    %8 = vector.load %arg2[%c0_3, %c0_4, %c0_5] : memref<3x12x4xbf16, #tpu.memory_space<vmem>>, vector<1x12x4xbf16>
    %9 = vector.shape_cast %8 : vector<1x12x4xbf16> to vector<12x4xbf16>
    %cst_6 = arith.constant dense<0.000000e+00> : vector<256x4xf32>
    %10 = tpu.matmul %7, %9, %cst_6 {dimension_numbers = #tpu.dot_dimension_numbers<[1], [0], [0], [1], [0, 0, 1, 1], [], []>} : vector<256x12xbf16>, vector<12x4xbf16>, vector<256x4xf32> -> vector<256x4xf32>
    %11 = arith.addf %1, %10 : vector<256x4xf32>
    %12 = vector.extract_strided_slice %0 {offsets = [0, 1, 0, 0], sizes = [1, 16, 18, 4], strides = [1, 1, 1, 1]} : vector<1x18x18x4xbf16> to vector<1x16x18x4xbf16>
    %13 = vector.extract_strided_slice %12 {offsets = [0, 0, 0, 0], sizes = [1, 16, 16, 4], strides = [1, 1, 1, 1]} : vector<1x16x18x4xbf16> to vector<1x16x16x4xbf16>
    %14 = vector.extract_strided_slice %12 {offsets = [0, 0, 1, 0], sizes = [1, 16, 16, 4], strides = [1, 1, 1, 1]} : vector<1x16x18x4xbf16> to vector<1x16x16x4xbf16>
    %15 = vector.extract_strided_slice %12 {offsets = [0, 0, 2, 0], sizes = [1, 16, 16, 4], strides = [1, 1, 1, 1]} : vector<1x16x18x4xbf16> to vector<1x16x16x4xbf16>
    %16 = tpu.concatenate %13, %14, %15 in 3 : vector<1x16x16x4xbf16>, vector<1x16x16x4xbf16>, vector<1x16x16x4xbf16> -> vector<1x16x16x12xbf16>
    %17 = vector.shape_cast %16 : vector<1x16x16x12xbf16> to vector<256x12xbf16>
    %c1 = arith.constant 1 : index
    %c0_7 = arith.constant 0 : index
    %c0_8 = arith.constant 0 : index
    %18 = vector.load %arg2[%c1, %c0_7, %c0_8] : memref<3x12x4xbf16, #tpu.memory_space<vmem>>, vector<1x12x4xbf16>
    %19 = vector.shape_cast %18 : vector<1x12x4xbf16> to vector<12x4xbf16>
    %cst_9 = arith.constant dense<0.000000e+00> : vector<256x4xf32>
    %20 = tpu.matmul %17, %19, %cst_9 {dimension_numbers = #tpu.dot_dimension_numbers<[1], [0], [0], [1], [0, 0, 1, 1], [], []>} : vector<256x12xbf16>, vector<12x4xbf16>, vector<256x4xf32> -> vector<256x4xf32>
    %21 = arith.addf %11, %20 : vector<256x4xf32>
    %22 = vector.extract_strided_slice %0 {offsets = [0, 2, 0, 0], sizes = [1, 16, 18, 4], strides = [1, 1, 1, 1]} : vector<1x18x18x4xbf16> to vector<1x16x18x4xbf16>
    %23 = vector.extract_strided_slice %22 {offsets = [0, 0, 0, 0], sizes = [1, 16, 16, 4], strides = [1, 1, 1, 1]} : vector<1x16x18x4xbf16> to vector<1x16x16x4xbf16>
    %24 = vector.extract_strided_slice %22 {offsets = [0, 0, 1, 0], sizes = [1, 16, 16, 4], strides = [1, 1, 1, 1]} : vector<1x16x18x4xbf16> to vector<1x16x16x4xbf16>
    %25 = vector.extract_strided_slice %22 {offsets = [0, 0, 2, 0], sizes = [1, 16, 16, 4], strides = [1, 1, 1, 1]} : vector<1x16x18x4xbf16> to vector<1x16x16x4xbf16>
    %26 = tpu.concatenate %23, %24, %25 in 3 : vector<1x16x16x4xbf16>, vector<1x16x16x4xbf16>, vector<1x16x16x4xbf16> -> vector<1x16x16x12xbf16>
    %27 = vector.shape_cast %26 : vector<1x16x16x12xbf16> to vector<256x12xbf16>
    %c2 = arith.constant 2 : index
    %c0_10 = arith.constant 0 : index
    %c0_11 = arith.constant 0 : index
    %28 = vector.load %arg2[%c2, %c0_10, %c0_11] : memref<3x12x4xbf16, #tpu.memory_space<vmem>>, vector<1x12x4xbf16>
    %29 = vector.shape_cast %28 : vector<1x12x4xbf16> to vector<12x4xbf16>
    %cst_12 = arith.constant dense<0.000000e+00> : vector<256x4xf32>
    %30 = tpu.matmul %27, %29, %cst_12 {dimension_numbers = #tpu.dot_dimension_numbers<[1], [0], [0], [1], [0, 0, 1, 1], [], []>} : vector<256x12xbf16>, vector<12x4xbf16>, vector<256x4xf32> -> vector<256x4xf32>
    %31 = arith.addf %21, %30 : vector<256x4xf32>
    %cst_13 = arith.constant 0.000000e+00 : bf16
    %32 = vector.broadcast %cst_13 : bf16 to vector<1x1x18x4xbf16>
    %cst_14 = arith.constant 0.000000e+00 : bf16
    %33 = vector.broadcast %cst_14 : bf16 to vector<1x18x1x4xbf16>
    %c0_15 = arith.constant 0 : index
    %c0_16 = arith.constant 0 : index
    %c0_17 = arith.constant 0 : index
    %c0_18 = arith.constant 0 : index
    %34 = vector.load %arg3[%c0_15, %c0_16, %c0_17, %c0_18] : memref<1x18x18x4xbf16, #tpu.memory_space<vmem>>, vector<1x1x18x4xbf16>
    tpu.vector_store %arg3[%c0_15, %c0_16, %c0_17, %c0_18], %32 {strides = array<i32>} : memref<1x18x18x4xbf16, #tpu.memory_space<vmem>>, vector<1x1x18x4xbf16>,
    %c0_19 = arith.constant 0 : index
    %c17 = arith.constant 17 : index
    %c0_20 = arith.constant 0 : index
    %c0_21 = arith.constant 0 : index
    %35 = vector.load %arg3[%c0_19, %c17, %c0_20, %c0_21] : memref<1x18x18x4xbf16, #tpu.memory_space<vmem>>, vector<1x1x18x4xbf16>
    tpu.vector_store %arg3[%c0_19, %c17, %c0_20, %c0_21], %32 {strides = array<i32>} : memref<1x18x18x4xbf16, #tpu.memory_space<vmem>>, vector<1x1x18x4xbf16>,
    %c0_22 = arith.constant 0 : index
    %c0_23 = arith.constant 0 : index
    %c0_24 = arith.constant 0 : index
    %c0_25 = arith.constant 0 : index
    %36 = vector.load %arg3[%c0_22, %c0_23, %c0_24, %c0_25] : memref<1x18x18x4xbf16, #tpu.memory_space<vmem>>, vector<1x18x1x4xbf16>
    tpu.vector_store %arg3[%c0_22, %c0_23, %c0_24, %c0_25], %33 {strides = array<i32>} : memref<1x18x18x4xbf16, #tpu.memory_space<vmem>>, vector<1x18x1x4xbf16>,
    %c0_26 = arith.constant 0 : index
    %c0_27 = arith.constant 0 : index
    %c17_28 = arith.constant 17 : index
    %c0_29 = arith.constant 0 : index
    %37 = vector.load %arg3[%c0_26, %c0_27, %c17_28, %c0_29] : memref<1x18x18x4xbf16, #tpu.memory_space<vmem>>, vector<1x18x1x4xbf16>
    tpu.vector_store %arg3[%c0_26, %c0_27, %c17_28, %c0_29], %33 {strides = array<i32>} : memref<1x18x18x4xbf16, #tpu.memory_space<vmem>>, vector<1x18x1x4xbf16>,
    %38 = vector.shape_cast %31 : vector<256x4xf32> to vector<1x16x16x4xf32>
    %39 = arith.truncf %38 : vector<1x16x16x4xf32> to vector<1x16x16x4xbf16>
    %c0_30 = arith.constant 0 : index
    %c1_31 = arith.constant 1 : index
    %c1_32 = arith.constant 1 : index
    %c0_33 = arith.constant 0 : index
    %40 = vector.load %arg3[%c0_30, %c1_31, %c1_32, %c0_33] : memref<1x18x18x4xbf16, #tpu.memory_space<vmem>>, vector<1x16x16x4xbf16>
    tpu.vector_store %arg3[%c0_30, %c1_31, %c1_32, %c0_33], %39 {strides = array<i32>} : memref<1x18x18x4xbf16, #tpu.memory_space<vmem>>, vector<1x16x16x4xbf16>,
    %cst_34 = arith.constant dense<0.000000e+00> : vector<4xf32>
    %41 = vector.multi_reduction <add>, %31, %cst_34 [0] : vector<256x4xf32> to vector<4xf32>
    %42 = vector.shape_cast %41 : vector<4xf32> to vector<1x4xf32>
    %c0_35 = arith.constant 0 : index
    %c0_36 = arith.constant 0 : index
    %c0_37 = arith.constant 0 : index
    %43 = vector.load %arg4[%c0_35, %c0_36, %c0_37] : memref<1x2x4xf32, #tpu.memory_space<vmem>>, vector<1x1x4xf32>
    %44 = vector.shape_cast %43 : vector<1x1x4xf32> to vector<1x4xf32>
    %45 = vector.shape_cast %42 : vector<1x4xf32> to vector<1x1x4xf32>
    tpu.vector_store %arg4[%c0_35, %c0_36, %c0_37], %45 {strides = array<i32>} : memref<1x2x4xf32, #tpu.memory_space<vmem>>, vector<1x1x4xf32>,
    %46 = arith.mulf %31, %31 : vector<256x4xf32>
    %cst_38 = arith.constant dense<0.000000e+00> : vector<4xf32>
    %47 = vector.multi_reduction <add>, %46, %cst_38 [0] : vector<256x4xf32> to vector<4xf32>
    %48 = vector.shape_cast %47 : vector<4xf32> to vector<1x4xf32>
    %c0_39 = arith.constant 0 : index
    %c1_40 = arith.constant 1 : index
    %c0_41 = arith.constant 0 : index
    %49 = vector.load %arg4[%c0_39, %c1_40, %c0_41] : memref<1x2x4xf32, #tpu.memory_space<vmem>>, vector<1x1x4xf32>
    %50 = vector.shape_cast %49 : vector<1x1x4xf32> to vector<1x4xf32>
    %51 = vector.shape_cast %48 : vector<1x4xf32> to vector<1x1x4xf32>
    tpu.vector_store %arg4[%c0_39, %c1_40, %c0_41], %51 {strides = array<i32>} : memref<1x2x4xf32, #tpu.memory_space<vmem>>, vector<1x1x4xf32>,
    return
  }
  func.func @transform_0(%arg0: i32) -> (i32, i32, i32, i32) {
    %c0_i32 = arith.constant 0 : i32
    %c0_i32_0 = arith.constant 0 : i32
    %c0_i32_1 = arith.constant 0 : i32
    %c0_i32_2 = arith.constant 0 : i32
    return %arg0, %c0_i32, %c0_i32_0, %c0_i32_1 : i32, i32, i32, i32
  }
  func.func @transform_1(%arg0: i32) -> (i32, i32, i32) {
    %c0_i32 = arith.constant 0 : i32
    %c0_i32_0 = arith.constant 0 : i32
    %c0_i32_1 = arith.constant 0 : i32
    %c0_i32_2 = arith.constant 0 : i32
    return %c0_i32, %c0_i32_0, %c0_i32_1 : i32, i32, i32
  }
  func.func @transform_2(%arg0: i32) -> (i32, i32, i32, i32) {
    %c0_i32 = arith.constant 0 : i32
    %c0_i32_0 = arith.constant 0 : i32
    %c0_i32_1 = arith.constant 0 : i32
    %c0_i32_2 = arith.constant 0 : i32
    return %arg0, %c0_i32, %c0_i32_0, %c0_i32_1 : i32, i32, i32, i32
  }
  func.func @transform_3(%arg0: i32) -> (i32, i32, i32) {
    %c0_i32 = arith.constant 0 : i32
    %c0_i32_0 = arith.constant 0 : i32
    %c0_i32_1 = arith.constant 0 : i32
    return %arg0, %c0_i32, %c0_i32_0 : i32, i32, i32
  }
}

module attributes {stable_mosaic.version = 11 : i64} {
  func.func @bn_relu_conv2_stats_kernel(%arg0: i32, %arg1: memref<1x18x18x4xbf16, #tpu.memory_space<vmem>>, %arg2: memref<1x4xf32, #tpu.memory_space<vmem>>, %arg3: memref<1x4xf32, #tpu.memory_space<vmem>>, %arg4: memref<3x12x4xbf16, #tpu.memory_space<vmem>>, %arg5: memref<1x16x16x4xbf16, #tpu.memory_space<vmem>>, %arg6: memref<1x2x4xf32, #tpu.memory_space<vmem>>) attributes {dimension_semantics = [#tpu.dimension_semantics<parallel>], iteration_bounds = array<i64: 2>, scalar_prefetch = 0 : i64, scratch_operands = 0 : i64, tpu.core_type = #tpu.core_type<tc>, window_params = [{transform_indices = @transform_0, window_bounds = array<i64: 1, 18, 18, 4>}, {pipeline_mode = #tpu.pipeline_mode<synchronous>, transform_indices = @transform_1, window_bounds = array<i64: 1, 4>}, {pipeline_mode = #tpu.pipeline_mode<synchronous>, transform_indices = @transform_2, window_bounds = array<i64: 1, 4>}, {pipeline_mode = #tpu.pipeline_mode<synchronous>, transform_indices = @transform_3, window_bounds = array<i64: 3, 12, 4>}, {transform_indices = @transform_4, window_bounds = array<i64: 1, 16, 16, 4>}, {transform_indices = @transform_5, window_bounds = array<i64: 1, 2, 4>}]} {
    %c0 = arith.constant 0 : index
    %c0_0 = arith.constant 0 : index
    %c0_1 = arith.constant 0 : index
    %c0_2 = arith.constant 0 : index
    %0 = vector.load %arg1[%c0, %c0_0, %c0_1, %c0_2] : memref<1x18x18x4xbf16, #tpu.memory_space<vmem>>, vector<1x18x18x4xbf16>
    %1 = arith.extf %0 : vector<1x18x18x4xbf16> to vector<1x18x18x4xf32>
    %c0_3 = arith.constant 0 : index
    %c0_4 = arith.constant 0 : index
    %2 = vector.load %arg2[%c0_3, %c0_4] : memref<1x4xf32, #tpu.memory_space<vmem>>, vector<1x4xf32>
    %3 = vector.shape_cast %2 : vector<1x4xf32> to vector<1x1x1x4xf32>
    %4 = vector.broadcast %3 : vector<1x1x1x4xf32> to vector<1x18x18x4xf32>
    %5 = arith.mulf %1, %4 : vector<1x18x18x4xf32>
    %c0_5 = arith.constant 0 : index
    %c0_6 = arith.constant 0 : index
    %6 = vector.load %arg3[%c0_5, %c0_6] : memref<1x4xf32, #tpu.memory_space<vmem>>, vector<1x4xf32>
    %7 = vector.shape_cast %6 : vector<1x4xf32> to vector<1x1x1x4xf32>
    %8 = vector.broadcast %7 : vector<1x1x1x4xf32> to vector<1x18x18x4xf32>
    %9 = arith.addf %5, %8 : vector<1x18x18x4xf32>
    %cst = arith.constant 0.000000e+00 : f32
    %10 = vector.broadcast %cst : f32 to vector<1x18x18x4xf32>
    %11 = arith.maximumf %9, %10 : vector<1x18x18x4xf32>
    %12 = tpu.iota {dimensions = array<i32: 0>} : vector<18x18xi32>
    %13 = tpu.iota {dimensions = array<i32: 1>} : vector<18x18xi32>
    %c1_i32 = arith.constant 1 : i32
    %14 = vector.broadcast %c1_i32 : i32 to vector<18x18xi32>
    %15 = arith.cmpi sge, %12, %14 : vector<18x18xi32>
    %c16_i32 = arith.constant 16 : i32
    %16 = vector.broadcast %c16_i32 : i32 to vector<18x18xi32>
    %17 = arith.cmpi sle, %12, %16 : vector<18x18xi32>
    %18 = arith.andi %15, %17 : vector<18x18xi1>
    %c1_i32_7 = arith.constant 1 : i32
    %19 = vector.broadcast %c1_i32_7 : i32 to vector<18x18xi32>
    %20 = arith.cmpi sge, %13, %19 : vector<18x18xi32>
    %21 = arith.andi %18, %20 : vector<18x18xi1>
    %c16_i32_8 = arith.constant 16 : i32
    %22 = vector.broadcast %c16_i32_8 : i32 to vector<18x18xi32>
    %23 = arith.cmpi sle, %13, %22 : vector<18x18xi32>
    %24 = arith.andi %21, %23 : vector<18x18xi1>
    %25 = arith.extui %24 : vector<18x18xi1> to vector<18x18xi32>
    %26 = arith.sitofp %25 : vector<18x18xi32> to vector<18x18xf32>
    %27 = vector.shape_cast %26 : vector<18x18xf32> to vector<1x18x18x1xf32>
    %28 = vector.broadcast %27 : vector<1x18x18x1xf32> to vector<1x18x18x4xf32>
    %29 = arith.mulf %11, %28 : vector<1x18x18x4xf32>
    %30 = arith.truncf %29 : vector<1x18x18x4xf32> to vector<1x18x18x4xbf16>
    %cst_9 = arith.constant 0.000000e+00 : f32
    %31 = vector.broadcast %cst_9 : f32 to vector<256x4xf32>
    %32 = vector.extract_strided_slice %30 {offsets = [0, 0, 0, 0], sizes = [1, 16, 18, 4], strides = [1, 1, 1, 1]} : vector<1x18x18x4xbf16> to vector<1x16x18x4xbf16>
    %33 = vector.extract_strided_slice %32 {offsets = [0, 0, 0, 0], sizes = [1, 16, 16, 4], strides = [1, 1, 1, 1]} : vector<1x16x18x4xbf16> to vector<1x16x16x4xbf16>
    %34 = vector.extract_strided_slice %32 {offsets = [0, 0, 1, 0], sizes = [1, 16, 16, 4], strides = [1, 1, 1, 1]} : vector<1x16x18x4xbf16> to vector<1x16x16x4xbf16>
    %35 = vector.extract_strided_slice %32 {offsets = [0, 0, 2, 0], sizes = [1, 16, 16, 4], strides = [1, 1, 1, 1]} : vector<1x16x18x4xbf16> to vector<1x16x16x4xbf16>
    %36 = tpu.concatenate %33, %34, %35 in 3 : vector<1x16x16x4xbf16>, vector<1x16x16x4xbf16>, vector<1x16x16x4xbf16> -> vector<1x16x16x12xbf16>
    %37 = vector.shape_cast %36 : vector<1x16x16x12xbf16> to vector<256x12xbf16>
    %c0_10 = arith.constant 0 : index
    %c0_11 = arith.constant 0 : index
    %c0_12 = arith.constant 0 : index
    %38 = vector.load %arg4[%c0_10, %c0_11, %c0_12] : memref<3x12x4xbf16, #tpu.memory_space<vmem>>, vector<1x12x4xbf16>
    %39 = vector.shape_cast %38 : vector<1x12x4xbf16> to vector<12x4xbf16>
    %cst_13 = arith.constant dense<0.000000e+00> : vector<256x4xf32>
    %40 = tpu.matmul %37, %39, %cst_13 {dimension_numbers = #tpu.dot_dimension_numbers<[1], [0], [0], [1], [0, 0, 1, 1], [], []>} : vector<256x12xbf16>, vector<12x4xbf16>, vector<256x4xf32> -> vector<256x4xf32>
    %41 = arith.addf %31, %40 : vector<256x4xf32>
    %42 = vector.extract_strided_slice %30 {offsets = [0, 1, 0, 0], sizes = [1, 16, 18, 4], strides = [1, 1, 1, 1]} : vector<1x18x18x4xbf16> to vector<1x16x18x4xbf16>
    %43 = vector.extract_strided_slice %42 {offsets = [0, 0, 0, 0], sizes = [1, 16, 16, 4], strides = [1, 1, 1, 1]} : vector<1x16x18x4xbf16> to vector<1x16x16x4xbf16>
    %44 = vector.extract_strided_slice %42 {offsets = [0, 0, 1, 0], sizes = [1, 16, 16, 4], strides = [1, 1, 1, 1]} : vector<1x16x18x4xbf16> to vector<1x16x16x4xbf16>
    %45 = vector.extract_strided_slice %42 {offsets = [0, 0, 2, 0], sizes = [1, 16, 16, 4], strides = [1, 1, 1, 1]} : vector<1x16x18x4xbf16> to vector<1x16x16x4xbf16>
    %46 = tpu.concatenate %43, %44, %45 in 3 : vector<1x16x16x4xbf16>, vector<1x16x16x4xbf16>, vector<1x16x16x4xbf16> -> vector<1x16x16x12xbf16>
    %47 = vector.shape_cast %46 : vector<1x16x16x12xbf16> to vector<256x12xbf16>
    %c1 = arith.constant 1 : index
    %c0_14 = arith.constant 0 : index
    %c0_15 = arith.constant 0 : index
    %48 = vector.load %arg4[%c1, %c0_14, %c0_15] : memref<3x12x4xbf16, #tpu.memory_space<vmem>>, vector<1x12x4xbf16>
    %49 = vector.shape_cast %48 : vector<1x12x4xbf16> to vector<12x4xbf16>
    %cst_16 = arith.constant dense<0.000000e+00> : vector<256x4xf32>
    %50 = tpu.matmul %47, %49, %cst_16 {dimension_numbers = #tpu.dot_dimension_numbers<[1], [0], [0], [1], [0, 0, 1, 1], [], []>} : vector<256x12xbf16>, vector<12x4xbf16>, vector<256x4xf32> -> vector<256x4xf32>
    %51 = arith.addf %41, %50 : vector<256x4xf32>
    %52 = vector.extract_strided_slice %30 {offsets = [0, 2, 0, 0], sizes = [1, 16, 18, 4], strides = [1, 1, 1, 1]} : vector<1x18x18x4xbf16> to vector<1x16x18x4xbf16>
    %53 = vector.extract_strided_slice %52 {offsets = [0, 0, 0, 0], sizes = [1, 16, 16, 4], strides = [1, 1, 1, 1]} : vector<1x16x18x4xbf16> to vector<1x16x16x4xbf16>
    %54 = vector.extract_strided_slice %52 {offsets = [0, 0, 1, 0], sizes = [1, 16, 16, 4], strides = [1, 1, 1, 1]} : vector<1x16x18x4xbf16> to vector<1x16x16x4xbf16>
    %55 = vector.extract_strided_slice %52 {offsets = [0, 0, 2, 0], sizes = [1, 16, 16, 4], strides = [1, 1, 1, 1]} : vector<1x16x18x4xbf16> to vector<1x16x16x4xbf16>
    %56 = tpu.concatenate %53, %54, %55 in 3 : vector<1x16x16x4xbf16>, vector<1x16x16x4xbf16>, vector<1x16x16x4xbf16> -> vector<1x16x16x12xbf16>
    %57 = vector.shape_cast %56 : vector<1x16x16x12xbf16> to vector<256x12xbf16>
    %c2 = arith.constant 2 : index
    %c0_17 = arith.constant 0 : index
    %c0_18 = arith.constant 0 : index
    %58 = vector.load %arg4[%c2, %c0_17, %c0_18] : memref<3x12x4xbf16, #tpu.memory_space<vmem>>, vector<1x12x4xbf16>
    %59 = vector.shape_cast %58 : vector<1x12x4xbf16> to vector<12x4xbf16>
    %cst_19 = arith.constant dense<0.000000e+00> : vector<256x4xf32>
    %60 = tpu.matmul %57, %59, %cst_19 {dimension_numbers = #tpu.dot_dimension_numbers<[1], [0], [0], [1], [0, 0, 1, 1], [], []>} : vector<256x12xbf16>, vector<12x4xbf16>, vector<256x4xf32> -> vector<256x4xf32>
    %61 = arith.addf %51, %60 : vector<256x4xf32>
    %62 = vector.shape_cast %61 : vector<256x4xf32> to vector<1x16x16x4xf32>
    %63 = arith.truncf %62 : vector<1x16x16x4xf32> to vector<1x16x16x4xbf16>
    %c0_20 = arith.constant 0 : index
    %c0_21 = arith.constant 0 : index
    %c0_22 = arith.constant 0 : index
    %c0_23 = arith.constant 0 : index
    %64 = vector.load %arg5[%c0_20, %c0_21, %c0_22, %c0_23] : memref<1x16x16x4xbf16, #tpu.memory_space<vmem>>, vector<1x16x16x4xbf16>
    tpu.vector_store %arg5[%c0_20, %c0_21, %c0_22, %c0_23], %63 {strides = array<i32>} : memref<1x16x16x4xbf16, #tpu.memory_space<vmem>>, vector<1x16x16x4xbf16>,
    %cst_24 = arith.constant dense<0.000000e+00> : vector<4xf32>
    %65 = vector.multi_reduction <add>, %61, %cst_24 [0] : vector<256x4xf32> to vector<4xf32>
    %66 = vector.shape_cast %65 : vector<4xf32> to vector<1x4xf32>
    %c0_25 = arith.constant 0 : index
    %c0_26 = arith.constant 0 : index
    %c0_27 = arith.constant 0 : index
    %67 = vector.load %arg6[%c0_25, %c0_26, %c0_27] : memref<1x2x4xf32, #tpu.memory_space<vmem>>, vector<1x1x4xf32>
    %68 = vector.shape_cast %67 : vector<1x1x4xf32> to vector<1x4xf32>
    %69 = vector.shape_cast %66 : vector<1x4xf32> to vector<1x1x4xf32>
    tpu.vector_store %arg6[%c0_25, %c0_26, %c0_27], %69 {strides = array<i32>} : memref<1x2x4xf32, #tpu.memory_space<vmem>>, vector<1x1x4xf32>,
    %70 = arith.mulf %61, %61 : vector<256x4xf32>
    %cst_28 = arith.constant dense<0.000000e+00> : vector<4xf32>
    %71 = vector.multi_reduction <add>, %70, %cst_28 [0] : vector<256x4xf32> to vector<4xf32>
    %72 = vector.shape_cast %71 : vector<4xf32> to vector<1x4xf32>
    %c0_29 = arith.constant 0 : index
    %c1_30 = arith.constant 1 : index
    %c0_31 = arith.constant 0 : index
    %73 = vector.load %arg6[%c0_29, %c1_30, %c0_31] : memref<1x2x4xf32, #tpu.memory_space<vmem>>, vector<1x1x4xf32>
    %74 = vector.shape_cast %73 : vector<1x1x4xf32> to vector<1x4xf32>
    %75 = vector.shape_cast %72 : vector<1x4xf32> to vector<1x1x4xf32>
    tpu.vector_store %arg6[%c0_29, %c1_30, %c0_31], %75 {strides = array<i32>} : memref<1x2x4xf32, #tpu.memory_space<vmem>>, vector<1x1x4xf32>,
    return
  }
  func.func @transform_0(%arg0: i32) -> (i32, i32, i32, i32) {
    %c0_i32 = arith.constant 0 : i32
    %c0_i32_0 = arith.constant 0 : i32
    %c0_i32_1 = arith.constant 0 : i32
    %c0_i32_2 = arith.constant 0 : i32
    return %arg0, %c0_i32, %c0_i32_0, %c0_i32_1 : i32, i32, i32, i32
  }
  func.func @transform_1(%arg0: i32) -> (i32, i32) {
    %c0_i32 = arith.constant 0 : i32
    %c0_i32_0 = arith.constant 0 : i32
    %c0_i32_1 = arith.constant 0 : i32
    return %c0_i32, %c0_i32_0 : i32, i32
  }
  func.func @transform_2(%arg0: i32) -> (i32, i32) {
    %c0_i32 = arith.constant 0 : i32
    %c0_i32_0 = arith.constant 0 : i32
    %c0_i32_1 = arith.constant 0 : i32
    return %c0_i32, %c0_i32_0 : i32, i32
  }
  func.func @transform_3(%arg0: i32) -> (i32, i32, i32) {
    %c0_i32 = arith.constant 0 : i32
    %c0_i32_0 = arith.constant 0 : i32
    %c0_i32_1 = arith.constant 0 : i32
    %c0_i32_2 = arith.constant 0 : i32
    return %c0_i32, %c0_i32_0, %c0_i32_1 : i32, i32, i32
  }
  func.func @transform_4(%arg0: i32) -> (i32, i32, i32, i32) {
    %c0_i32 = arith.constant 0 : i32
    %c0_i32_0 = arith.constant 0 : i32
    %c0_i32_1 = arith.constant 0 : i32
    %c0_i32_2 = arith.constant 0 : i32
    return %arg0, %c0_i32, %c0_i32_0, %c0_i32_1 : i32, i32, i32, i32
  }
  func.func @transform_5(%arg0: i32) -> (i32, i32, i32) {
    %c0_i32 = arith.constant 0 : i32
    %c0_i32_0 = arith.constant 0 : i32
    %c0_i32_1 = arith.constant 0 : i32
    return %arg0, %c0_i32, %c0_i32_0 : i32, i32, i32
  }
}

module attributes {stable_mosaic.version = 11 : i64} {
  func.func @bn_add_relu_kernel(%arg0: i32, %arg1: memref<1x16x64xbf16, #tpu.memory_space<vmem>>, %arg2: memref<1x16x64xf32, #tpu.memory_space<vmem>>, %arg3: memref<1x64xf32, #tpu.memory_space<vmem>>, %arg4: memref<1x64xf32, #tpu.memory_space<vmem>>, %arg5: memref<1x16x64xf32, #tpu.memory_space<vmem>>) attributes {dimension_semantics = [#tpu.dimension_semantics<parallel>], iteration_bounds = array<i64: 2>, scalar_prefetch = 0 : i64, scratch_operands = 0 : i64, tpu.core_type = #tpu.core_type<tc>, window_params = [{transform_indices = @transform_0, window_bounds = array<i64: 1, 16, 64>}, {transform_indices = @transform_1, window_bounds = array<i64: 1, 16, 64>}, {pipeline_mode = #tpu.pipeline_mode<synchronous>, transform_indices = @transform_2, window_bounds = array<i64: 1, 64>}, {pipeline_mode = #tpu.pipeline_mode<synchronous>, transform_indices = @transform_3, window_bounds = array<i64: 1, 64>}, {transform_indices = @transform_4, window_bounds = array<i64: 1, 16, 64>}]} {
    %c0 = arith.constant 0 : index
    %c0_0 = arith.constant 0 : index
    %c0_1 = arith.constant 0 : index
    %0 = vector.load %arg1[%c0, %c0_0, %c0_1] : memref<1x16x64xbf16, #tpu.memory_space<vmem>>, vector<1x16x64xbf16>
    %1 = arith.extf %0 : vector<1x16x64xbf16> to vector<1x16x64xf32>
    %c0_2 = arith.constant 0 : index
    %c0_3 = arith.constant 0 : index
    %2 = vector.load %arg3[%c0_2, %c0_3] : memref<1x64xf32, #tpu.memory_space<vmem>>, vector<1x64xf32>
    %3 = vector.shape_cast %2 : vector<1x64xf32> to vector<1x1x64xf32>
    %4 = vector.broadcast %3 : vector<1x1x64xf32> to vector<1x16x64xf32>
    %5 = arith.mulf %1, %4 : vector<1x16x64xf32>
    %c0_4 = arith.constant 0 : index
    %c0_5 = arith.constant 0 : index
    %6 = vector.load %arg4[%c0_4, %c0_5] : memref<1x64xf32, #tpu.memory_space<vmem>>, vector<1x64xf32>
    %7 = vector.shape_cast %6 : vector<1x64xf32> to vector<1x1x64xf32>
    %8 = vector.broadcast %7 : vector<1x1x64xf32> to vector<1x16x64xf32>
    %9 = arith.addf %5, %8 : vector<1x16x64xf32>
    %c0_6 = arith.constant 0 : index
    %c0_7 = arith.constant 0 : index
    %c0_8 = arith.constant 0 : index
    %10 = vector.load %arg2[%c0_6, %c0_7, %c0_8] : memref<1x16x64xf32, #tpu.memory_space<vmem>>, vector<1x16x64xf32>
    %11 = arith.addf %9, %10 : vector<1x16x64xf32>
    %cst = arith.constant 0.000000e+00 : f32
    %12 = vector.broadcast %cst : f32 to vector<1x16x64xf32>
    %13 = arith.maximumf %11, %12 : vector<1x16x64xf32>
    %c0_9 = arith.constant 0 : index
    %c0_10 = arith.constant 0 : index
    %c0_11 = arith.constant 0 : index
    %14 = vector.load %arg5[%c0_9, %c0_10, %c0_11] : memref<1x16x64xf32, #tpu.memory_space<vmem>>, vector<1x16x64xf32>
    tpu.vector_store %arg5[%c0_9, %c0_10, %c0_11], %13 {strides = array<i32>} : memref<1x16x64xf32, #tpu.memory_space<vmem>>, vector<1x16x64xf32>,
    return
  }
  func.func @transform_0(%arg0: i32) -> (i32, i32, i32) {
    %c0_i32 = arith.constant 0 : i32
    %c0_i32_0 = arith.constant 0 : i32
    %c0_i32_1 = arith.constant 0 : i32
    return %arg0, %c0_i32, %c0_i32_0 : i32, i32, i32
  }
  func.func @transform_1(%arg0: i32) -> (i32, i32, i32) {
    %c0_i32 = arith.constant 0 : i32
    %c0_i32_0 = arith.constant 0 : i32
    %c0_i32_1 = arith.constant 0 : i32
    return %arg0, %c0_i32, %c0_i32_0 : i32, i32, i32
  }
  func.func @transform_2(%arg0: i32) -> (i32, i32) {
    %c0_i32 = arith.constant 0 : i32
    %c0_i32_0 = arith.constant 0 : i32
    %c0_i32_1 = arith.constant 0 : i32
    return %c0_i32, %c0_i32_0 : i32, i32
  }
  func.func @transform_3(%arg0: i32) -> (i32, i32) {
    %c0_i32 = arith.constant 0 : i32
    %c0_i32_0 = arith.constant 0 : i32
    %c0_i32_1 = arith.constant 0 : i32
    return %c0_i32, %c0_i32_0 : i32, i32
  }
  func.func @transform_4(%arg0: i32) -> (i32, i32, i32) {
    %c0_i32 = arith.constant 0 : i32
    %c0_i32_0 = arith.constant 0 : i32
    %c0_i32_1 = arith.constant 0 : i32
    return %arg0, %c0_i32, %c0_i32_0 : i32, i32, i32
  }
}

</mosaic_0001>

<llo_original>
// kernel: basic_block_forward_nhwc.5
$region0: #{basic_block_forward_nhwc.5}
  #allocation0 [shape = 'u32[]', space=smem, size = 0x4, offset = 0x4, fixed_abs, tag = 'smem constant byte address 0x4 - core index']
  #allocation1 [shape = 'u32[144,128]{1,0:T(1,128)}', space=vmem, size = 0x12000, scoped, tag = 'internal scratch']
  %s0 = inlined_call_operand.vmem [shape: bf16[2,16,64], index: 0, kind: input, shape index: {}]
  %s1 = inlined_call_operand.vmem [shape: f32[2,16,64], index: 1, kind: input, shape index: {}]
  %s2 = inlined_call_operand.vmem [shape: f32[1,64], index: 2, kind: input, shape index: {}]
  %s3 = inlined_call_operand.vmem [shape: f32[1,64], index: 3, kind: input, shape index: {}]
  %s4 = inlined_call_operand.vmem [shape: f32[2,16,64], index: 4, kind: output, shape index: {}]
  %s5 = sld [smem:[#allocation0]]
  $region49: #{basic_block_forward_nhwc.5} parent=0
    _
  %s7 = ssub.s32 1, %s5
  %s8 = scalar_select 0, %s7, %s5
  loop: start=0, step=1, limit=4
  $region2: #{basic_block_forward_nhwc.5} parent=0 // loop_pre_header
    _
  $region3: #{basic_block_forward_nhwc.5} parent=0 // loop_header
    %s10 = sphi 0, %s14
    %p11 = scmp.ge.s32.totalorder %s10, 4
    %s20 = sphi 0, %s22
    %s23 = sphi 0, %s20
    %s24 = sphi 0, %s23
    %s40 = sphi 0, %s24
    %s46 = sphi 0, %s48
    %s49 = sphi 0, %s46
    %s50 = sphi 0, %s49
    %s66 = sphi 0, %s50
    %s70 = sphi 0, %s70
    %s72 = sphi 0, %s70
    %s73 = sphi 0, %s72
    %s87 = sphi 0, %s73
    %s91 = sphi 0, %s91
    %s93 = sphi 0, %s91
    %s94 = sphi 0, %s93
    %s108 = sphi 0, %s94
    %s114 = sphi 0, %s116
    %s117 = sphi 0, %s114
    %s118 = sphi 0, %s117
    %s134 = sphi 0, %s118
  $region4: #{basic_block_forward_nhwc.5} parent=0 // loop_header_branch
    %13 = sbr.rel (%p11) target = $region8
  $region5: #{basic_block_forward_nhwc.5} parent=0 // loop_body
    %s15 = ssub.s32 %s10, 1
    %s16 = ssub.s32 %s10, 2
    %s17 = sadd.s32 %s10, 1
    %s18 = ssub.s32 %s10, %s17
    %p19 = scmp.eq.s32.totalorder %s18, 0
    %s21 = sadd.s32 %s20, 1
    %s22 = scalar_select %p19, %s20, %s21
    %p25 = pneg %p19
    %p26 = scmp.eq.s32.totalorder %s10, 1
    %p27 = por %p25, %p26
    %p28 = scmp.ne.s32.totalorder %s20, %s23
    %p29 = scmp.eq.s32.totalorder %s10, 0
    %p30 = por %p28, %p29
    %p31 = scmp.ne.s32.totalorder %s20, %s23
    %p32 = scmp.eq.s32.totalorder %s15, 1
    %p33 = por %p31, %p32
    %p34 = scmp.ne.s32.totalorder %s23, %s24
    %p35 = scmp.eq.s32.totalorder %s15, 0
    %p36 = por %p34, %p35
    %p37 = scmp.ne.s32.totalorder %s23, %s24
    %p38 = scmp.eq.s32.totalorder %s16, 1
    %p39 = por %p37, %p38
    %p41 = scmp.ne.s32.totalorder %s24, %s40
    %p42 = scmp.eq.s32.totalorder %s16, 0
    %p43 = por %p41, %p42
    %s44 = ssub.s32 %s10, %s17
    %p45 = scmp.eq.s32.totalorder %s44, 0
    %s47 = sadd.s32 %s46, 1
    %s48 = scalar_select %p45, %s46, %s47
    %p51 = pneg %p45
    %p52 = scmp.eq.s32.totalorder %s10, 1
    %p53 = por %p51, %p52
    %p54 = scmp.ne.s32.totalorder %s46, %s49
    %p55 = scmp.eq.s32.totalorder %s10, 0
    %p56 = por %p54, %p55
    %p57 = scmp.ne.s32.totalorder %s46, %s49
    %p58 = scmp.eq.s32.totalorder %s15, 1
    %p59 = por %p57, %p58
    %p60 = scmp.ne.s32.totalorder %s49, %s50
    %p61 = scmp.eq.s32.totalorder %s15, 0
    %p62 = por %p60, %p61
    %p63 = scmp.ne.s32.totalorder %s49, %s50
    %p64 = scmp.eq.s32.totalorder %s16, 1
    %p65 = por %p63, %p64
    %p67 = scmp.ne.s32.totalorder %s50, %s66
    %p68 = scmp.eq.s32.totalorder %s16, 0
    %p69 = por %p67, %p68
    %s71 = sadd.s32 %s70, 1
    %p74 = scmp.eq.s32.totalorder %s10, 1
    %p75 = scmp.ne.s32.totalorder %s70, %s72
    %p76 = scmp.eq.s32.totalorder %s10, 0
    %p77 = por %p75, %p76
    %p78 = scmp.ne.s32.totalorder %s70, %s72
    %p79 = scmp.eq.s32.totalorder %s15, 1
    %p80 = por %p78, %p79
    %p81 = scmp.ne.s32.totalorder %s72, %s73
    %p82 = scmp.eq.s32.totalorder %s15, 0
    %p83 = por %p81, %p82
    %p84 = scmp.ne.s32.totalorder %s72, %s73
    %p85 = scmp.eq.s32.totalorder %s16, 1
    %p86 = por %p84, %p85
    %p88 = scmp.ne.s32.totalorder %s73, %s87
    %p89 = scmp.eq.s32.totalorder %s16, 0
    %p90 = por %p88, %p89
    %s92 = sadd.s32 %s91, 1
    %p95 = scmp.eq.s32.totalorder %s10, 1
    %p96 = scmp.ne.s32.totalorder %s91, %s93
    %p97 = scmp.eq.s32.totalorder %s10, 0
    %p98 = por %p96, %p97
    %p99 = scmp.ne.s32.totalorder %s91, %s93
    %p100 = scmp.eq.s32.totalorder %s15, 1
    %p101 = por %p99, %p100
    %p102 = scmp.ne.s32.totalorder %s93, %s94
    %p103 = scmp.eq.s32.totalorder %s15, 0
    %p104 = por %p102, %p103
    %p105 = scmp.ne.s32.totalorder %s93, %s94
    %p106 = scmp.eq.s32.totalorder %s16, 1
    %p107 = por %p105, %p106
    %p109 = scmp.ne.s32.totalorder %s94, %s108
    %p110 = scmp.eq.s32.totalorder %s16, 0
    %p111 = por %p109, %p110
    %s112 = ssub.s32 %s10, %s17
    %p113 = scmp.eq.s32.totalorder %s112, 0
    %s115 = sadd.s32 %s114, 1
    %s116 = scalar_select %p113, %s114, %s115
    %p119 = pneg %p113
    %p120 = scmp.eq.s32.totalorder %s10, 1
    %p121 = por %p119, %p120
    %p122 = scmp.ne.s32.totalorder %s114, %s117
    %p123 = scmp.eq.s32.totalorder %s10, 0
    %p124 = por %p122, %p123
    %p125 = scmp.ne.s32.totalorder %s114, %s117
    %p126 = scmp.eq.s32.totalorder %s15, 1
    %p127 = por %p125, %p126
    %p128 = scmp.ne.s32.totalorder %s117, %s118
    %p129 = scmp.eq.s32.totalorder %s15, 0
    %p130 = por %p128, %p129
    %p131 = scmp.ne.s32.totalorder %s117, %s118
    %p132 = scmp.eq.s32.totalorder %s16, 1
    %p133 = por %p131, %p132
    %p135 = scmp.ne.s32.totalorder %s118, %s134
    %p136 = scmp.eq.s32.totalorder %s16, 0
    %p137 = por %p135, %p136
    %p138 = scmp.le.s32.totalorder 1, %s10
    %p139 = scmp.lt.s32.totalorder %s10, 3
    %p140 = pnand %p138, %p139
    %p141 = pneg %p140
    // Predicated region
    $region9: #{basic_block_forward_nhwc.5} parent=5 // pred_check
      _
    $region10: #{basic_block_forward_nhwc.5} parent=5 // pred_check_branch
      %143 = sbr.rel (%p140) target = $region12
    $region11: #{basic_block_forward_nhwc.5} parent=5 // pred_region
      %s144 = ssub.s32 %s10, 1
      // Predicated region
      $region13: #{basic_block_forward_nhwc.5} parent=11 // pred_check
        %p145 = pneg %p83
      $region14: #{basic_block_forward_nhwc.5} parent=11 // pred_check_branch
        %147 = sbr.rel (%p145) target = $region16
      $region15: #{basic_block_forward_nhwc.5} parent=11 // pred_region
        _
      $region16: #{basic_block_forward_nhwc.5} parent=11 // pred_fallthru
        _
      // Predicated region
      $region17: #{basic_block_forward_nhwc.5} parent=11 // pred_check
        %p148 = pneg %p104
      $region18: #{basic_block_forward_nhwc.5} parent=11 // pred_check_branch
        %150 = sbr.rel (%p148) target = $region20
      $region19: #{basic_block_forward_nhwc.5} parent=11 // pred_region
        _
      $region20: #{basic_block_forward_nhwc.5} parent=11 // pred_fallthru
        _
    $region12: #{basic_block_forward_nhwc.5} parent=5 // pred_fallthru
      _
    %p151 = scmp.lt.s32.totalorder %s10, 2
    // Predicated region
    $region21: #{basic_block_forward_nhwc.5} parent=5 // pred_check
      %p152 = pneg %p151
    $region22: #{basic_block_forward_nhwc.5} parent=5 // pred_check_branch
      %154 = sbr.rel (%p152) target = $region24
    $region23: #{basic_block_forward_nhwc.5} parent=5 // pred_region
      // Predicated region
      $region25: #{basic_block_forward_nhwc.5} parent=23 // pred_check
        %p155 = pneg %p30
      $region26: #{basic_block_forward_nhwc.5} parent=23 // pred_check_branch
        %157 = sbr.rel (%p155) target = $region28
      $region27: #{basic_block_forward_nhwc.5} parent=23 // pred_region
        %p158 = scmp.lt.s32.totalorder %s10, 1
        %s159 = scalar_select %p158, %s10, 1
        %s160 = smul.addr %s159, 2
        %s161 = smul.addr %s160, 4
        %s162 = scalar_lea.vmem %s0, %s161
      $region28: #{basic_block_forward_nhwc.5} parent=23 // pred_fallthru
        _
      // Predicated region
      $region29: #{basic_block_forward_nhwc.5} parent=23 // pred_check
        %p163 = pneg %p56
      $region30: #{basic_block_forward_nhwc.5} parent=23 // pred_check_branch
        %165 = sbr.rel (%p163) target = $region32
      $region31: #{basic_block_forward_nhwc.5} parent=23 // pred_region
        %p166 = scmp.lt.s32.totalorder %s10, 1
        %s167 = scalar_select %p166, %s10, 1
        %s168 = smul.addr %s167, 2
        %s169 = smul.addr %s168, 8
        %s170 = scalar_lea.vmem %s1, %s169
      $region32: #{basic_block_forward_nhwc.5} parent=23 // pred_fallthru
        _
    $region24: #{basic_block_forward_nhwc.5} parent=5 // pred_fallthru
      _
    %p171 = scmp.le.s32.totalorder 1, %s10
    %p172 = scmp.lt.s32.totalorder %s10, 3
    %p173 = pnand %p171, %p172
    %p174 = pneg %p173
    // Predicated region
    $region33: #{basic_block_forward_nhwc.5} parent=5 // pred_check
      _
    $region34: #{basic_block_forward_nhwc.5} parent=5 // pred_check_branch
      %176 = sbr.rel (%p173) target = $region36
    $region35: #{basic_block_forward_nhwc.5} parent=5 // pred_region
      %s177 = ssub.s32 %s10, 1
      %p178 = scmp.lt.s32.totalorder %s15, 1
      %s179 = scalar_select %p178, %s15, 1
      %s180 = smul.addr %s179, 2
      %s181 = smul.addr %s180, 4
      %s182 = scalar_lea.vmem %s0, %s181
      %p183 = pneg %p36
      %p184 = pneg %p33
      %p185 = scmp.lt.s32.totalorder %s15, 1
      %s186 = scalar_select %p185, %s15, 1
      %s187 = smul.addr %s186, 2
      %s188 = smul.addr %s187, 8
      %s189 = scalar_lea.vmem %s1, %s188
      %p190 = pneg %p62
      %p191 = pneg %p59
      %p192 = pneg %p83
      %p193 = pneg %p80
      %p194 = pneg %p104
      %p195 = pneg %p101
      %p196 = pneg %p130
      %p197 = pneg %p127
      %p198 = scmp.lt.s32.totalorder %s15, 1
      %s199 = scalar_select %p198, %s15, 1
      %s200 = smul.addr %s199, 2
      %s201 = smul.addr %s200, 8
      %s202 = scalar_lea.vmem %s4, %s201
      %p203 = scmp.lt.s32.totalorder %s15, 1
      %s204 = scalar_select %p203, %s15, 1
      %s205 = smul.addr %s204, 2
      %s206 = smul.addr %s205, 4
      %s207 = scalar_lea.vmem %s0, %s206
      %p208 = scmp.lt.s32.totalorder %s15, 1
      %s209 = scalar_select %p208, %s15, 1
      %s210 = smul.addr %s209, 2
      %s211 = smul.addr %s210, 8
      %s212 = scalar_lea.vmem %s1, %s211
      %p213 = scmp.lt.s32.totalorder %s15, 1
      %s214 = scalar_select %p213, %s15, 1
      %s215 = smul.addr %s214, 2
      %s216 = smul.addr %s215, 8
      %s217 = scalar_lea.vmem %s4, %s216
      %v218 = vld [vmem:[%s207] sm:$0xf]
      %v219 = vld [vmem:[%s207 + $0x4] sm:$0xf]
      %v220 = vunpack.c.l.bf16 %v218
      %v221 = vunpack.c.l.bf16 %v219
      %v222 = vld [vmem:[%s2] sm:$0x1]
      %v224 = vlaneseq
      %v225 = vshrl.u32 %v224, 7
      %v226 = vsub.s32 0, %v225
      %v227 = vrot.slane %v222, %v226
      %v229 = vmul.f32 %v220, %v227
      %v230 = vmul.f32 %v221, %v227
      %v231 = vld [vmem:[%s3] sm:$0x1]
      %v233 = vlaneseq
      %v234 = vshrl.u32 %v233, 7
      %v235 = vsub.s32 0, %v234
      %v236 = vrot.slane %v231, %v235
      %v238 = vadd.f32 %v229, %v236
      %v239 = vadd.f32 %v230, %v236
      %v240 = vld [vmem:[%s212] sm:$0xff]
      %v241 = vld [vmem:[%s212 + $0x8] sm:$0xff]
      %v242 = vadd.f32 %v238, %v240
      %v243 = vadd.f32 %v239, %v241
      %v244 = vmax.f32 %v242, 0.0
      %v245 = vmax.f32 %v243, 0.0
      %vm246 = vcmask 523264
      %247 = vst.msk [vmem:[%s217] sm:$0xff] %vm246, %v244
      %248 = vst.msk [vmem:[%s217 + $0x8] sm:$0xff] %vm246, %v245
      %p249 = scmp.lt.s32.totalorder %s15, 1
      %s250 = scalar_select %p249, %s15, 1
      %s251 = smul.addr %s250, 2
      %s252 = smul.addr %s251, 8
      %s253 = scalar_lea.vmem %s4, %s252
      // Predicated region
      $region37: #{basic_block_forward_nhwc.5} parent=35 // pred_check
        %p254 = pneg %p127
      $region38: #{basic_block_forward_nhwc.5} parent=35 // pred_check_branch
        %256 = sbr.rel (%p254) target = $region40
      $region39: #{basic_block_forward_nhwc.5} parent=35 // pred_region
        _
      $region40: #{basic_block_forward_nhwc.5} parent=35 // pred_fallthru
        _
    $region36: #{basic_block_forward_nhwc.5} parent=5 // pred_fallthru
      _
    %p257 = scmp.le.s32.totalorder 2, %s10
    // Predicated region
    $region41: #{basic_block_forward_nhwc.5} parent=5 // pred_check
      %p258 = pneg %p257
    $region42: #{basic_block_forward_nhwc.5} parent=5 // pred_check_branch
      %260 = sbr.rel (%p258) target = $region44
    $region43: #{basic_block_forward_nhwc.5} parent=5 // pred_region
      %s261 = ssub.s32 %s10, 2
      // Predicated region
      $region45: #{basic_block_forward_nhwc.5} parent=43 // pred_check
        %p262 = pneg %p133
      $region46: #{basic_block_forward_nhwc.5} parent=43 // pred_check_branch
        %264 = sbr.rel (%p262) target = $region48
      $region47: #{basic_block_forward_nhwc.5} parent=43 // pred_region
        %p265 = scmp.lt.s32.totalorder %s16, 1
        %s266 = scalar_select %p265, %s16, 1
        %s267 = smul.addr %s266, 2
        %s268 = smul.addr %s267, 8
        %s269 = scalar_lea.vmem %s4, %s268
      $region48: #{basic_block_forward_nhwc.5} parent=43 // pred_fallthru
        _
    $region44: #{basic_block_forward_nhwc.5} parent=5 // pred_fallthru
      _
  $region6: #{basic_block_forward_nhwc.5} parent=0 // loop_footer
    %s14 = sadd.s32 1, %s10
  $region7: #{basic_block_forward_nhwc.5} parent=0 // loop_footer_branch
    %9 = sbr.rel target = $region3
  $region8: #{basic_block_forward_nhwc.5} parent=0 // loop_exit
    _

// kernel: basic_block_forward_nhwc.4
$region0: #{basic_block_forward_nhwc.4}
  #allocation0 [shape = 'u32[]', space=smem, size = 0x4, offset = 0x4, fixed_abs, tag = 'smem constant byte address 0x4 - core index']
  #allocation1 [shape = 'u32[144,128]{1,0:T(1,128)}', space=vmem, size = 0x12000, scoped, tag = 'internal scratch']
  %s0 = inlined_call_operand.vmem [shape: bf16[2,18,18,4], index: 0, kind: input, shape index: {}]
  %s1 = inlined_call_operand.vmem [shape: f32[1,4], index: 1, kind: input, shape index: {}]
  %s2 = inlined_call_operand.vmem [shape: f32[1,4], index: 2, kind: input, shape index: {}]
  %s3 = inlined_call_operand.vmem [shape: bf16[3,12,4], index: 3, kind: input, shape index: {}]
  %s4 = inlined_call_operand.vmem [shape: bf16[2,16,16,4], index: 4, kind: output, shape index: {0}]
  %s5 = inlined_call_operand.vmem [shape: f32[2,2,4], index: 5, kind: output, shape index: {1}]
  %6 = xla_tuple %s4, %s5
  %s7 = sld [smem:[#allocation0]]
  $region57: #{basic_block_forward_nhwc.4} parent=0
    _
  %s9 = ssub.s32 1, %s7
  %s10 = scalar_select 0, %s9, %s7
  loop: start=0, step=1, limit=4
  $region2: #{basic_block_forward_nhwc.4} parent=0 // loop_pre_header
    _
  $region3: #{basic_block_forward_nhwc.4} parent=0 // loop_header
    %s12 = sphi 0, %s16
    %p13 = scmp.ge.s32.totalorder %s12, 4
    %s22 = sphi 0, %s24
    %s25 = sphi 0, %s22
    %s26 = sphi 0, %s25
    %s42 = sphi 0, %s26
    %s46 = sphi 0, %s46
    %s48 = sphi 0, %s46
    %s49 = sphi 0, %s48
    %s63 = sphi 0, %s49
    %s67 = sphi 0, %s67
    %s69 = sphi 0, %s67
    %s70 = sphi 0, %s69
    %s84 = sphi 0, %s70
    %s88 = sphi 0, %s88
    %s90 = sphi 0, %s88
    %s91 = sphi 0, %s90
    %s105 = sphi 0, %s91
    %s111 = sphi 0, %s113
    %s114 = sphi 0, %s111
    %s115 = sphi 0, %s114
    %s131 = sphi 0, %s115
    %s137 = sphi 0, %s139
    %s140 = sphi 0, %s137
    %s141 = sphi 0, %s140
    %s157 = sphi 0, %s141
  $region4: #{basic_block_forward_nhwc.4} parent=0 // loop_header_branch
    %15 = sbr.rel (%p13) target = $region8
  $region5: #{basic_block_forward_nhwc.4} parent=0 // loop_body
    %s17 = ssub.s32 %s12, 1
    %s18 = ssub.s32 %s12, 2
    %s19 = sadd.s32 %s12, 1
    %s20 = ssub.s32 %s12, %s19
    %p21 = scmp.eq.s32.totalorder %s20, 0
    %s23 = sadd.s32 %s22, 1
    %s24 = scalar_select %p21, %s22, %s23
    %p27 = pneg %p21
    %p28 = scmp.eq.s32.totalorder %s12, 1
    %p29 = por %p27, %p28
    %p30 = scmp.ne.s32.totalorder %s22, %s25
    %p31 = scmp.eq.s32.totalorder %s12, 0
    %p32 = por %p30, %p31
    %p33 = scmp.ne.s32.totalorder %s22, %s25
    %p34 = scmp.eq.s32.totalorder %s17, 1
    %p35 = por %p33, %p34
    %p36 = scmp.ne.s32.totalorder %s25, %s26
    %p37 = scmp.eq.s32.totalorder %s17, 0
    %p38 = por %p36, %p37
    %p39 = scmp.ne.s32.totalorder %s25, %s26
    %p40 = scmp.eq.s32.totalorder %s18, 1
    %p41 = por %p39, %p40
    %p43 = scmp.ne.s32.totalorder %s26, %s42
    %p44 = scmp.eq.s32.totalorder %s18, 0
    %p45 = por %p43, %p44
    %s47 = sadd.s32 %s46, 1
    %p50 = scmp.eq.s32.totalorder %s12, 1
    %p51 = scmp.ne.s32.totalorder %s46, %s48
    %p52 = scmp.eq.s32.totalorder %s12, 0
    %p53 = por %p51, %p52
    %p54 = scmp.ne.s32.totalorder %s46, %s48
    %p55 = scmp.eq.s32.totalorder %s17, 1
    %p56 = por %p54, %p55
    %p57 = scmp.ne.s32.totalorder %s48, %s49
    %p58 = scmp.eq.s32.totalorder %s17, 0
    %p59 = por %p57, %p58
    %p60 = scmp.ne.s32.totalorder %s48, %s49
    %p61 = scmp.eq.s32.totalorder %s18, 1
    %p62 = por %p60, %p61
    %p64 = scmp.ne.s32.totalorder %s49, %s63
    %p65 = scmp.eq.s32.totalorder %s18, 0
    %p66 = por %p64, %p65
    %s68 = sadd.s32 %s67, 1
    %p71 = scmp.eq.s32.totalorder %s12, 1
    %p72 = scmp.ne.s32.totalorder %s67, %s69
    %p73 = scmp.eq.s32.totalorder %s12, 0
    %p74 = por %p72, %p73
    %p75 = scmp.ne.s32.totalorder %s67, %s69
    %p76 = scmp.eq.s32.totalorder %s17, 1
    %p77 = por %p75, %p76
    %p78 = scmp.ne.s32.totalorder %s69, %s70
    %p79 = scmp.eq.s32.totalorder %s17, 0
    %p80 = por %p78, %p79
    %p81 = scmp.ne.s32.totalorder %s69, %s70
    %p82 = scmp.eq.s32.totalorder %s18, 1
    %p83 = por %p81, %p82
    %p85 = scmp.ne.s32.totalorder %s70, %s84
    %p86 = scmp.eq.s32.totalorder %s18, 0
    %p87 = por %p85, %p86
    %s89 = sadd.s32 %s88, 1
    %p92 = scmp.eq.s32.totalorder %s12, 1
    %p93 = scmp.ne.s32.totalorder %s88, %s90
    %p94 = scmp.eq.s32.totalorder %s12, 0
    %p95 = por %p93, %p94
    %p96 = scmp.ne.s32.totalorder %s88, %s90
    %p97 = scmp.eq.s32.totalorder %s17, 1
    %p98 = por %p96, %p97
    %p99 = scmp.ne.s32.totalorder %s90, %s91
    %p100 = scmp.eq.s32.totalorder %s17, 0
    %p101 = por %p99, %p100
    %p102 = scmp.ne.s32.totalorder %s90, %s91
    %p103 = scmp.eq.s32.totalorder %s18, 1
    %p104 = por %p102, %p103
    %p106 = scmp.ne.s32.totalorder %s91, %s105
    %p107 = scmp.eq.s32.totalorder %s18, 0
    %p108 = por %p106, %p107
    %s109 = ssub.s32 %s12, %s19
    %p110 = scmp.eq.s32.totalorder %s109, 0
    %s112 = sadd.s32 %s111, 1
    %s113 = scalar_select %p110, %s111, %s112
    %p116 = pneg %p110
    %p117 = scmp.eq.s32.totalorder %s12, 1
    %p118 = por %p116, %p117
    %p119 = scmp.ne.s32.totalorder %s111, %s114
    %p120 = scmp.eq.s32.totalorder %s12, 0
    %p121 = por %p119, %p120
    %p122 = scmp.ne.s32.totalorder %s111, %s114
    %p123 = scmp.eq.s32.totalorder %s17, 1
    %p124 = por %p122, %p123
    %p125 = scmp.ne.s32.totalorder %s114, %s115
    %p126 = scmp.eq.s32.totalorder %s17, 0
    %p127 = por %p125, %p126
    %p128 = scmp.ne.s32.totalorder %s114, %s115
    %p129 = scmp.eq.s32.totalorder %s18, 1
    %p130 = por %p128, %p129
    %p132 = scmp.ne.s32.totalorder %s115, %s131
    %p133 = scmp.eq.s32.totalorder %s18, 0
    %p134 = por %p132, %p133
    %s135 = ssub.s32 %s12, %s19
    %p136 = scmp.eq.s32.totalorder %s135, 0
    %s138 = sadd.s32 %s137, 1
    %s139 = scalar_select %p136, %s137, %s138
    %p142 = pneg %p136
    %p143 = scmp.eq.s32.totalorder %s12, 1
    %p144 = por %p142, %p143
    %p145 = scmp.ne.s32.totalorder %s137, %s140
    %p146 = scmp.eq.s32.totalorder %s12, 0
    %p147 = por %p145, %p146
    %p148 = scmp.ne.s32.totalorder %s137, %s140
    %p149 = scmp.eq.s32.totalorder %s17, 1
    %p150 = por %p148, %p149
    %p151 = scmp.ne.s32.totalorder %s140, %s141
    %p152 = scmp.eq.s32.totalorder %s17, 0
    %p153 = por %p151, %p152
    %p154 = scmp.ne.s32.totalorder %s140, %s141
    %p155 = scmp.eq.s32.totalorder %s18, 1
    %p156 = por %p154, %p155
    %p158 = scmp.ne.s32.totalorder %s141, %s157
    %p159 = scmp.eq.s32.totalorder %s18, 0
    %p160 = por %p158, %p159
    %p161 = scmp.le.s32.totalorder 1, %s12
    %p162 = scmp.lt.s32.totalorder %s12, 3
    %p163 = pnand %p161, %p162
    %p164 = pneg %p163
    // Predicated region
    $region9: #{basic_block_forward_nhwc.4} parent=5 // pred_check
      _
    $region10: #{basic_block_forward_nhwc.4} parent=5 // pred_check_branch
      %166 = sbr.rel (%p163) target = $region12
    $region11: #{basic_block_forward_nhwc.4} parent=5 // pred_region
      %s167 = ssub.s32 %s12, 1
      // Predicated region
      $region13: #{basic_block_forward_nhwc.4} parent=11 // pred_check
        %p168 = pneg %p59
      $region14: #{basic_block_forward_nhwc.4} parent=11 // pred_check_branch
        %170 = sbr.rel (%p168) target = $region16
      $region15: #{basic_block_forward_nhwc.4} parent=11 // pred_region
        _
      $region16: #{basic_block_forward_nhwc.4} parent=11 // pred_fallthru
        _
      // Predicated region
      $region17: #{basic_block_forward_nhwc.4} parent=11 // pred_check
        %p171 = pneg %p80
      $region18: #{basic_block_forward_nhwc.4} parent=11 // pred_check_branch
        %173 = sbr.rel (%p171) target = $region20
      $region19: #{basic_block_forward_nhwc.4} parent=11 // pred_region
        _
      $region20: #{basic_block_forward_nhwc.4} parent=11 // pred_fallthru
        _
      // Predicated region
      $region21: #{basic_block_forward_nhwc.4} parent=11 // pred_check
        %p174 = pneg %p101
      $region22: #{basic_block_forward_nhwc.4} parent=11 // pred_check_branch
        %176 = sbr.rel (%p174) target = $region24
      $region23: #{basic_block_forward_nhwc.4} parent=11 // pred_region
        _
      $region24: #{basic_block_forward_nhwc.4} parent=11 // pred_fallthru
        _
    $region12: #{basic_block_forward_nhwc.4} parent=5 // pred_fallthru
      _
    %p177 = scmp.lt.s32.totalorder %s12, 2
    // Predicated region
    $region25: #{basic_block_forward_nhwc.4} parent=5 // pred_check
      %p178 = pneg %p177
    $region26: #{basic_block_forward_nhwc.4} parent=5 // pred_check_branch
      %180 = sbr.rel (%p178) target = $region28
    $region27: #{basic_block_forward_nhwc.4} parent=5 // pred_region
      // Predicated region
      $region29: #{basic_block_forward_nhwc.4} parent=27 // pred_check
        %p181 = pneg %p32
      $region30: #{basic_block_forward_nhwc.4} parent=27 // pred_check_branch
        %183 = sbr.rel (%p181) target = $region32
      $region31: #{basic_block_forward_nhwc.4} parent=27 // pred_region
        %p184 = scmp.lt.s32.totalorder %s12, 1
        %s185 = scalar_select %p184, %s12, 1
        %s186 = smul.addr %s185, 54
        %s187 = smul.addr %s186, 4
        %s188 = scalar_lea.vmem %s0, %s187
      $region32: #{basic_block_forward_nhwc.4} parent=27 // pred_fallthru
        _
    $region28: #{basic_block_forward_nhwc.4} parent=5 // pred_fallthru
      _
    %p189 = scmp.le.s32.totalorder 1, %s12
    %p190 = scmp.lt.s32.totalorder %s12, 3
    %p191 = pnand %p189, %p190
    %p192 = pneg %p191
    // Predicated region
    $region33: #{basic_block_forward_nhwc.4} parent=5 // pred_check
      _
    $region34: #{basic_block_forward_nhwc.4} parent=5 // pred_check_branch
      %194 = sbr.rel (%p191) target = $region36
    $region35: #{basic_block_forward_nhwc.4} parent=5 // pred_region
      %s195 = ssub.s32 %s12, 1
      %p196 = scmp.lt.s32.totalorder %s17, 1
      %s197 = scalar_select %p196, %s17, 1
      %s198 = smul.addr %s197, 54
      %s199 = smul.addr %s198, 4
      %s200 = scalar_lea.vmem %s0, %s199
      %p201 = pneg %p38
      %p202 = pneg %p35
      %p203 = pneg %p59
      %p204 = pneg %p56
      %p205 = pneg %p80
      %p206 = pneg %p77
      %p207 = pneg %p101
      %p208 = pneg %p98
      %p209 = pneg %p127
      %p210 = pneg %p124
      %p211 = scmp.lt.s32.totalorder %s17, 1
      %s212 = scalar_select %p211, %s17, 1
      %s213 = smul.addr %s212, 32
      %s214 = smul.addr %s213, 4
      %s215 = scalar_lea.vmem %s4, %s214
      %p216 = pneg %p153
      %p217 = pneg %p150
      %p218 = scmp.lt.s32.totalorder %s17, 1
      %s219 = scalar_select %p218, %s17, 1
      %s220 = smul.addr %s219, 2
      %s221 = scalar_lea.vmem %s5, %s220
      %p222 = scmp.lt.s32.totalorder %s17, 1
      %s223 = scalar_select %p222, %s17, 1
      %s224 = smul.addr %s223, 54
      %s225 = smul.addr %s224, 4
      %s226 = scalar_lea.vmem %s0, %s225
      %p227 = scmp.lt.s32.totalorder %s17, 1
      %s228 = scalar_select %p227, %s17, 1
      %s229 = smul.addr %s228, 32
      %s230 = smul.addr %s229, 4
      %s231 = scalar_lea.vmem %s4, %s230
      %p232 = scmp.lt.s32.totalorder %s17, 1
      %s233 = scalar_select %p232, %s17, 1
      %s234 = smul.addr %s233, 2
      %s235 = scalar_lea.vmem %s5, %s234
      %v237 = vld [vmem:[%s226] sm:$0xf]
      %v238 = vld [vmem:[%s226 + $0x4] sm:$0xf]
      %v239 = vld [vmem:[%s226 + $0x8] sm:$0x1]
      %v240 = vld [vmem:[%s226 + $0xc] sm:$0xf]
      %v241 = vld [vmem:[%s226 + $0x10] sm:$0xf]
      %v242 = vld [vmem:[%s226 + $0x14] sm:$0x1]
      %v243 = vld [vmem:[%s226 + $0x18] sm:$0xf]
      %v244 = vld [vmem:[%s226 + $0x1c] sm:$0xf]
      %v245 = vld [vmem:[%s226 + $0x20] sm:$0x1]
      %v246 = vld [vmem:[%s226 + $0x24] sm:$0xf]
      %v247 = vld [vmem:[%s226 + $0x28] sm:$0xf]
      %v248 = vld [vmem:[%s226 + $0x2c] sm:$0x1]
      %v249 = vld [vmem:[%s226 + $0x30] sm:$0xf]
      %v250 = vld [vmem:[%s226 + $0x34] sm:$0xf]
      %v251 = vld [vmem:[%s226 + $0x38] sm:$0x1]
      %v252 = vld [vmem:[%s226 + $0x3c] sm:$0xf]
      %v253 = vld [vmem:[%s226 + $0x40] sm:$0xf]
      %v254 = vld [vmem:[%s226 + $0x44] sm:$0x1]
      %v255 = vld [vmem:[%s226 + $0x48] sm:$0xf]
      %v256 = vld [vmem:[%s226 + $0x4c] sm:$0xf]
      %v257 = vld [vmem:[%s226 + $0x50] sm:$0x1]
      %v258 = vld [vmem:[%s226 + $0x54] sm:$0xf]
      %v259 = vld [vmem:[%s226 + $0x58] sm:$0xf]
      %v260 = vld [vmem:[%s226 + $0x5c] sm:$0x1]
      %v261 = vld [vmem:[%s226 + $0x60] sm:$0xf]
      %v262 = vld [vmem:[%s226 + $0x64] sm:$0xf]
      %v263 = vld [vmem:[%s226 + $0x68] sm:$0x1]
      %v264 = vld [vmem:[%s226 + $0x6c] sm:$0xf]
      %v265 = vld [vmem:[%s226 + $0x70] sm:$0xf]
      %v266 = vld [vmem:[%s226 + $0x74] sm:$0x1]
      %v267 = vld [vmem:[%s226 + $0x78] sm:$0xf]
      %v268 = vld [vmem:[%s226 + $0x7c] sm:$0xf]
      %v269 = vld [vmem:[%s226 + $0x80] sm:$0x1]
      %v270 = vld [vmem:[%s226 + $0x84] sm:$0xf]
      %v271 = vld [vmem:[%s226 + $0x88] sm:$0xf]
      %v272 = vld [vmem:[%s226 + $0x8c] sm:$0x1]
      %v273 = vld [vmem:[%s226 + $0x90] sm:$0xf]
      %v274 = vld [vmem:[%s226 + $0x94] sm:$0xf]
      %v275 = vld [vmem:[%s226 + $0x98] sm:$0x1]
      %v276 = vld [vmem:[%s226 + $0x9c] sm:$0xf]
      %v277 = vld [vmem:[%s226 + $0xa0] sm:$0xf]
      %v278 = vld [vmem:[%s226 + $0xa4] sm:$0x1]
      %v279 = vld [vmem:[%s226 + $0xa8] sm:$0xf]
      %v280 = vld [vmem:[%s226 + $0xac] sm:$0xf]
      %v281 = vld [vmem:[%s226 + $0xb0] sm:$0x1]
      %v282 = vld [vmem:[%s226 + $0xb4] sm:$0xf]
      %v283 = vld [vmem:[%s226 + $0xb8] sm:$0xf]
      %v284 = vld [vmem:[%s226 + $0xbc] sm:$0x1]
      %v285 = vld [vmem:[%s226 + $0xc0] sm:$0xf]
      %v286 = vld [vmem:[%s226 + $0xc4] sm:$0xf]
      %v287 = vld [vmem:[%s226 + $0xc8] sm:$0x1]
      %v288 = vld [vmem:[%s226 + $0xcc] sm:$0xf]
      %v289 = vld [vmem:[%s226 + $0xd0] sm:$0xf]
      %v290 = vld [vmem:[%s226 + $0xd4] sm:$0x1]
      %v291 = vunpack.c.l.bf16 %v237
      %v292 = vunpack.c.l.bf16 %v238
      %v293 = vunpack.c.l.bf16 %v239
      %v294 = vunpack.c.l.bf16 %v240
      %v295 = vunpack.c.l.bf16 %v241
      %v296 = vunpack.c.l.bf16 %v242
      %v297 = vunpack.c.l.bf16 %v243
      %v298 = vunpack.c.l.bf16 %v244
      %v299 = vunpack.c.l.bf16 %v245
      %v300 = vunpack.c.l.bf16 %v246
      %v301 = vunpack.c.l.bf16 %v247
      %v302 = vunpack.c.l.bf16 %v248
      %v303 = vunpack.c.l.bf16 %v249
      %v304 = vunpack.c.l.bf16 %v250
      %v305 = vunpack.c.l.bf16 %v251
      %v306 = vunpack.c.l.bf16 %v252
      %v307 = vunpack.c.l.bf16 %v253
      %v308 = vunpack.c.l.bf16 %v254
      %v309 = vunpack.c.l.bf16 %v255
      %v310 = vunpack.c.l.bf16 %v256
      %v311 = vunpack.c.l.bf16 %v257
      %v312 = vunpack.c.l.bf16 %v258
      %v313 = vunpack.c.l.bf16 %v259
      %v314 = vunpack.c.l.bf16 %v260
      %v315 = vunpack.c.l.bf16 %v261
      %v316 = vunpack.c.l.bf16 %v262
      %v317 = vunpack.c.l.bf16 %v263
      %v318 = vunpack.c.l.bf16 %v264
      %v319 = vunpack.c.l.bf16 %v265
      %v320 = vunpack.c.l.bf16 %v266
      %v321 = vunpack.c.l.bf16 %v267
      %v322 = vunpack.c.l.bf16 %v268
      %v323 = vunpack.c.l.bf16 %v269
      %v324 = vunpack.c.l.bf16 %v270
      %v325 = vunpack.c.l.bf16 %v271
      %v326 = vunpack.c.l.bf16 %v272
      %v327 = vunpack.c.l.bf16 %v273
      %v328 = vunpack.c.l.bf16 %v274
      %v329 = vunpack.c.l.bf16 %v275
      %v330 = vunpack.c.l.bf16 %v276
      %v331 = vunpack.c.l.bf16 %v277
      %v332 = vunpack.c.l.bf16 %v278
      %v333 = vunpack.c.l.bf16 %v279
      %v334 = vunpack.c.l.bf16 %v280
      %v335 = vunpack.c.l.bf16 %v281
      %v336 = vunpack.c.l.bf16 %v282
      %v337 = vunpack.c.l.bf16 %v283
      %v338 = vunpack.c.l.bf16 %v284
      %v339 = vunpack.c.l.bf16 %v285
      %v340 = vunpack.c.l.bf16 %v286
      %v341 = vunpack.c.l.bf16 %v287
      %v342 = vunpack.c.l.bf16 %v288
      %v343 = vunpack.c.l.bf16 %v289
      %v344 = vunpack.c.l.bf16 %v290
      %v345 = vld [vmem:[%s1] sm:$0x1]
      %v347 = vlaneseq
      %v348 = vshrl.u32 %v347, 7
      %v349 = vsub.s32 0, %v348
      %v350 = vrot.slane %v345, %v349
      %v352 = vmul.f32 %v291, %v350
      %v353 = vmul.f32 %v292, %v350
      %v354 = vmul.f32 %v293, %v350
      %v355 = vmul.f32 %v294, %v350
      %v356 = vmul.f32 %v295, %v350
      %v357 = vmul.f32 %v296, %v350
      %v358 = vmul.f32 %v297, %v350
      %v359 = vmul.f32 %v298, %v350
      %v360 = vmul.f32 %v299, %v350
      %v361 = vmul.f32 %v300, %v350
      %v362 = vmul.f32 %v301, %v350
      %v363 = vmul.f32 %v302, %v350
      %v364 = vmul.f32 %v303, %v350
      %v365 = vmul.f32 %v304, %v350
      %v366 = vmul.f32 %v305, %v350
      %v367 = vmul.f32 %v306, %v350
      %v368 = vmul.f32 %v307, %v350
      %v369 = vmul.f32 %v308, %v350
      %v370 = vmul.f32 %v309, %v350
      %v371 = vmul.f32 %v310, %v350
      %v372 = vmul.f32 %v311, %v350
      %v373 = vmul.f32 %v312, %v350
      %v374 = vmul.f32 %v313, %v350
      %v375 = vmul.f32 %v314, %v350
      %v376 = vmul.f32 %v315, %v350
      %v377 = vmul.f32 %v316, %v350
      %v378 = vmul.f32 %v317, %v350
      %v379 = vmul.f32 %v318, %v350
      %v380 = vmul.f32 %v319, %v350
      %v381 = vmul.f32 %v320, %v350
      %v382 = vmul.f32 %v321, %v350
      %v383 = vmul.f32 %v322, %v350
      %v384 = vmul.f32 %v323, %v350
      %v385 = vmul.f32 %v324, %v350
      %v386 = vmul.f32 %v325, %v350
      %v387 = vmul.f32 %v326, %v350
      %v388 = vmul.f32 %v327, %v350
      %v389 = vmul.f32 %v328, %v350
      %v390 = vmul.f32 %v329, %v350
      %v391 = vmul.f32 %v330, %v350
      %v392 = vmul.f32 %v331, %v350
      %v393 = vmul.f32 %v332, %v350
      %v394 = vmul.f32 %v333, %v350
      %v395 = vmul.f32 %v334, %v350
      %v396 = vmul.f32 %v335, %v350
      %v397 = vmul.f32 %v336, %v350
      %v398 = vmul.f32 %v337, %v350
      %v399 = vmul.f32 %v338, %v350
      %v400 = vmul.f32 %v339, %v350
      %v401 = vmul.f32 %v340, %v350
      %v402 = vmul.f32 %v341, %v350
      %v403 = vmul.f32 %v342, %v350
      %v404 = vmul.f32 %v343, %v350
      %v405 = vmul.f32 %v344, %v350
      %v406 = vld [vmem:[%s2] sm:$0x1]
      %v408 = vlaneseq
      %v409 = vshrl.u32 %v408, 7
      %v410 = vsub.s32 0, %v409
      %v411 = vrot.slane %v406, %v410
      %v413 = vadd.f32 %v352, %v411
      %v414 = vadd.f32 %v353, %v411
      %v415 = vadd.f32 %v354, %v411
      %v416 = vadd.f32 %v355, %v411
      %v417 = vadd.f32 %v356, %v411
      %v418 = vadd.f32 %v357, %v411
      %v419 = vadd.f32 %v358, %v411
      %v420 = vadd.f32 %v359, %v411
      %v421 = vadd.f32 %v360, %v411
      %v422 = vadd.f32 %v361, %v411
      %v423 = vadd.f32 %v362, %v411
      %v424 = vadd.f32 %v363, %v411
      %v425 = vadd.f32 %v364, %v411
      %v426 = vadd.f32 %v365, %v411
      %v427 = vadd.f32 %v366, %v411
      %v428 = vadd.f32 %v367, %v411
      %v429 = vadd.f32 %v368, %v411
      %v430 = vadd.f32 %v369, %v411
      %v431 = vadd.f32 %v370, %v411
      %v432 = vadd.f32 %v371, %v411
      %v433 = vadd.f32 %v372, %v411
      %v434 = vadd.f32 %v373, %v411
      %v435 = vadd.f32 %v374, %v411
      %v436 = vadd.f32 %v375, %v411
      %v437 = vadd.f32 %v376, %v411
      %v438 = vadd.f32 %v377, %v411
      %v439 = vadd.f32 %v378, %v411
      %v440 = vadd.f32 %v379, %v411
      %v441 = vadd.f32 %v380, %v411
      %v442 = vadd.f32 %v381, %v411
      %v443 = vadd.f32 %v382, %v411
      %v444 = vadd.f32 %v383, %v411
      %v445 = vadd.f32 %v384, %v411
      %v446 = vadd.f32 %v385, %v411
      %v447 = vadd.f32 %v386, %v411
      %v448 = vadd.f32 %v387, %v411
      %v449 = vadd.f32 %v388, %v411
      %v450 = vadd.f32 %v389, %v411
      %v451 = vadd.f32 %v390, %v411
      %v452 = vadd.f32 %v391, %v411
      %v453 = vadd.f32 %v392, %v411
      %v454 = vadd.f32 %v393, %v411
      %v455 = vadd.f32 %v394, %v411
      %v456 = vadd.f32 %v395, %v411
      %v457 = vadd.f32 %v396, %v411
      %v458 = vadd.f32 %v397, %v411
      %v459 = vadd.f32 %v398, %v411
      %v460 = vadd.f32 %v399, %v411
      %v461 = vadd.f32 %v400, %v411
      %v462 = vadd.f32 %v401, %v411
      %v463 = vadd.f32 %v402, %v411
      %v464 = vadd.f32 %v403, %v411
      %v465 = vadd.f32 %v404, %v411
      %v466 = vadd.f32 %v405, %v411
      %v467 = vmax.f32 %v413, 0.0
      %v468 = vmax.f32 %v414, 0.0
      %v469 = vmax.f32 %v415, 0.0
      %v470 = vmax.f32 %v416, 0.0
      %v471 = vmax.f32 %v417, 0.0
      %v472 = vmax.f32 %v418, 0.0
      %v473 = vmax.f32 %v419, 0.0
      %v474 = vmax.f32 %v420, 0.0
      %v475 = vmax.f32 %v421, 0.0
      %v476 = vmax.f32 %v422, 0.0
      %v477 = vmax.f32 %v423, 0.0
      %v478 = vmax.f32 %v424, 0.0
      %v479 = vmax.f32 %v425, 0.0
      %v480 = vmax.f32 %v426, 0.0
      %v481 = vmax.f32 %v427, 0.0
      %v482 = vmax.f32 %v428, 0.0
      %v483 = vmax.f32 %v429, 0.0
      %v484 = vmax.f32 %v430, 0.0
      %v485 = vmax.f32 %v431, 0.0
      %v486 = vmax.f32 %v432, 0.0
      %v487 = vmax.f32 %v433, 0.0
      %v488 = vmax.f32 %v434, 0.0
      %v489 = vmax.f32 %v435, 0.0
      %v490 = vmax.f32 %v436, 0.0
      %v491 = vmax.f32 %v437, 0.0
      %v492 = vmax.f32 %v438, 0.0
      %v493 = vmax.f32 %v439, 0.0
      %v494 = vmax.f32 %v440, 0.0
      %v495 = vmax.f32 %v441, 0.0
      %v496 = vmax.f32 %v442, 0.0
      %v497 = vmax.f32 %v443, 0.0
      %v498 = vmax.f32 %v444, 0.0
      %v499 = vmax.f32 %v445, 0.0
      %v500 = vmax.f32 %v446, 0.0
      %v501 = vmax.f32 %v447, 0.0
      %v502 = vmax.f32 %v448, 0.0
      %v503 = vmax.f32 %v449, 0.0
      %v504 = vmax.f32 %v450, 0.0
      %v505 = vmax.f32 %v451, 0.0
      %v506 = vmax.f32 %v452, 0.0
      %v507 = vmax.f32 %v453, 0.0
      %v508 = vmax.f32 %v454, 0.0
      %v509 = vmax.f32 %v455, 0.0
      %v510 = vmax.f32 %v456, 0.0
      %v511 = vmax.f32 %v457, 0.0
      %v512 = vmax.f32 %v458, 0.0
      %v513 = vmax.f32 %v459, 0.0
      %v514 = vmax.f32 %v460, 0.0
      %v515 = vmax.f32 %v461, 0.0
      %v516 = vmax.f32 %v462, 0.0
      %v517 = vmax.f32 %v463, 0.0
      %v518 = vmax.f32 %v464, 0.0
      %v519 = vmax.f32 %v465, 0.0
      %v520 = vmax.f32 %v466, 0.0
      %v521 = vlaneseq
      %v522 = vshrl.u32 %v521, 7
      %v523 = vadd.s32 %v522, 8
      %v524 = vadd.s32 %v522, 16
      %v525 = vlaneseq
      %v526 = vand.u32 %v525, 127
      %vm527 = vcmp.ge.s32.totalorder %v522, 1
      %vm528 = vcmp.ge.s32.totalorder %v523, 1
      %vm529 = vcmp.ge.s32.totalorder %v524, 1
      %vm530 = vcmp.le.s32.totalorder %v522, 16
      %vm531 = vcmp.le.s32.totalorder %v523, 16
      %vm532 = vcmp.le.s32.totalorder %v524, 16
      %vm533 = vmand %vm527, %vm530
      %vm534 = vmand %vm528, %vm531
      %vm535 = vmand %vm529, %vm532
      %vm536 = vcmp.ge.s32.totalorder %v526, 1
      %vm537 = vmand %vm533, %vm536
      %vm538 = vmand %vm534, %vm536
      %vm539 = vmand %vm535, %vm536
      %vm540 = vcmp.le.s32.totalorder %v526, 16
      %vm541 = vmand %vm537, %vm540
      %vm542 = vmand %vm538, %vm540
      %vm543 = vmand %vm539, %vm540
      %v544 = vsel %vm541, 1, 0
      %v545 = vsel %vm542, 1, 0
      %v546 = vsel %vm543, 1, 0
      %v547 = vcvt.s32.f32 %v544
      %v548 = vcvt.s32.f32 %v545
      %v549 = vcvt.s32.f32 %v546
      %v550 = vlaneseq
      %v551 = vshrl.u32 %v550, 7
      %v552 = vsub.s32 0, %v551
      %v553 = vrot.slane %v547, %v552
      %555 = vbcast.lane.b32.xlu0 %v553, 256
      %v556 = vpop.permute.xlu0 %555
      %s558 = sor.u32 256, 8
      %559 = vbcast.lane.b32.xlu0 %v553, %s558
      %v560 = vpop.permute.xlu0 %559
      %s562 = sor.u32 256, 16
      %563 = vbcast.lane.b32.xlu0 %v553, %s562
      %v564 = vpop.permute.xlu0 %563
      %v565 = vlaneseq
      %v566 = vshrl.u32 %v565, 7
      %v567 = vsub.s32 1, %v566
      %v568 = vrot.slane %v547, %v567
      %570 = vbcast.lane.b32.xlu0 %v568, 256
      %v571 = vpop.permute.xlu0 %570
      %s573 = sor.u32 256, 8
      %574 = vbcast.lane.b32.xlu0 %v568, %s573
      %v575 = vpop.permute.xlu0 %574
      %s577 = sor.u32 256, 16
      %578 = vbcast.lane.b32.xlu0 %v568, %s577
      %v579 = vpop.permute.xlu0 %578
      %v580 = vlaneseq
      %v581 = vshrl.u32 %v580, 7
      %v582 = vsub.s32 2, %v581
      %v583 = vrot.slane %v547, %v582
      %585 = vbcast.lane.b32.xlu0 %v583, 256
      %v586 = vpop.permute.xlu0 %585
      %s588 = sor.u32 256, 8
      %589 = vbcast.lane.b32.xlu0 %v583, %s588
      %v590 = vpop.permute.xlu0 %589
      %s592 = sor.u32 256, 16
      %593 = vbcast.lane.b32.xlu0 %v583, %s592
      %v594 = vpop.permute.xlu0 %593
      %v595 = vlaneseq
      %v596 = vshrl.u32 %v595, 7
      %v597 = vsub.s32 3, %v596
      %v598 = vrot.slane %v547, %v597
      %600 = vbcast.lane.b32.xlu0 %v598, 256
      %v601 = vpop.permute.xlu0 %600
      %s603 = sor.u32 256, 8
      %604 = vbcast.lane.b32.xlu0 %v598, %s603
      %v605 = vpop.permute.xlu0 %604
      %s607 = sor.u32 256, 16
      %608 = vbcast.lane.b32.xlu0 %v598, %s607
      %v609 = vpop.permute.xlu0 %608
      %v610 = vlaneseq
      %v611 = vshrl.u32 %v610, 7
      %v612 = vsub.s32 4, %v611
      %v613 = vrot.slane %v547, %v612
      %615 = vbcast.lane.b32.xlu0 %v613, 256
      %v616 = vpop.permute.xlu0 %615
      %s618 = sor.u32 256, 8
      %619 = vbcast.lane.b32.xlu0 %v613, %s618
      %v620 = vpop.permute.xlu0 %619
      %s622 = sor.u32 256, 16
      %623 = vbcast.lane.b32.xlu0 %v613, %s622
      %v624 = vpop.permute.xlu0 %623
      %v625 = vlaneseq
      %v626 = vshrl.u32 %v625, 7
      %v627 = vsub.s32 5, %v626
      %v628 = vrot.slane %v547, %v627
      %630 = vbcast.lane.b32.xlu0 %v628, 256
      %v631 = vpop.permute.xlu0 %630
      %s633 = sor.u32 256, 8
      %634 = vbcast.lane.b32.xlu0 %v628, %s633
      %v635 = vpop.permute.xlu0 %634
      %s637 = sor.u32 256, 16
      %638 = vbcast.lane.b32.xlu0 %v628, %s637
      %v639 = vpop.permute.xlu0 %638
      %v640 = vlaneseq
      %v641 = vshrl.u32 %v640, 7
      %v642 = vsub.s32 6, %v641
      %v643 = vrot.slane %v547, %v642
      %645 = vbcast.lane.b32.xlu0 %v643, 256
      %v646 = vpop.permute.xlu0 %645
      %s648 = sor.u32 256, 8
      %649 = vbcast.lane.b32.xlu0 %v643, %s648
      %v650 = vpop.permute.xlu0 %649
      %s652 = sor.u32 256, 16
      %653 = vbcast.lane.b32.xlu0 %v643, %s652
      %v654 = vpop.permute.xlu0 %653
      %v655 = vlaneseq
      %v656 = vshrl.u32 %v655, 7
      %v657 = vsub.s32 7, %v656
      %v658 = vrot.slane %v547, %v657
      %660 = vbcast.lane.b32.xlu0 %v658, 256
      %v661 = vpop.permute.xlu0 %660
      %s663 = sor.u32 256, 8
      %664 = vbcast.lane.b32.xlu0 %v658, %s663
      %v665 = vpop.permute.xlu0 %664
      %s667 = sor.u32 256, 16
      %668 = vbcast.lane.b32.xlu0 %v658, %s667
      %v669 = vpop.permute.xlu0 %668
      %v670 = vlaneseq
      %v671 = vshrl.u32 %v670, 7
      %v672 = vsub.s32 0, %v671
      %v673 = vrot.slane %v548, %v672
      %675 = vbcast.lane.b32.xlu0 %v673, 256
      %v676 = vpop.permute.xlu0 %675
      %s678 = sor.u32 256, 8
      %679 = vbcast.lane.b32.xlu0 %v673, %s678
      %v680 = vpop.permute.xlu0 %679
      %s682 = sor.u32 256, 16
      %683 = vbcast.lane.b32.xlu0 %v673, %s682
      %v684 = vpop.permute.xlu0 %683
      %v685 = vlaneseq
      %v686 = vshrl.u32 %v685, 7
      %v687 = vsub.s32 1, %v686
      %v688 = vrot.slane %v548, %v687
      %690 = vbcast.lane.b32.xlu0 %v688, 256
      %v691 = vpop.permute.xlu0 %690
      %s693 = sor.u32 256, 8
      %694 = vbcast.lane.b32.xlu0 %v688, %s693
      %v695 = vpop.permute.xlu0 %694
      %s697 = sor.u32 256, 16
      %698 = vbcast.lane.b32.xlu0 %v688, %s697
      %v699 = vpop.permute.xlu0 %698
      %v700 = vlaneseq
      %v701 = vshrl.u32 %v700, 7
      %v702 = vsub.s32 2, %v701
      %v703 = vrot.slane %v548, %v702
      %705 = vbcast.lane.b32.xlu0 %v703, 256
      %v706 = vpop.permute.xlu0 %705
      %s708 = sor.u32 256, 8
      %709 = vbcast.lane.b32.xlu0 %v703, %s708
      %v710 = vpop.permute.xlu0 %709
      %s712 = sor.u32 256, 16
      %713 = vbcast.lane.b32.xlu0 %v703, %s712
      %v714 = vpop.permute.xlu0 %713
      %v715 = vlaneseq
      %v716 = vshrl.u32 %v715, 7
      %v717 = vsub.s32 3, %v716
      %v718 = vrot.slane %v548, %v717
      %720 = vbcast.lane.b32.xlu0 %v718, 256
      %v721 = vpop.permute.xlu0 %720
      %s723 = sor.u32 256, 8
      %724 = vbcast.lane.b32.xlu0 %v718, %s723
      %v725 = vpop.permute.xlu0 %724
      %s727 = sor.u32 256, 16
      %728 = vbcast.lane.b32.xlu0 %v718, %s727
      %v729 = vpop.permute.xlu0 %728
      %v730 = vlaneseq
      %v731 = vshrl.u32 %v730, 7
      %v732 = vsub.s32 4, %v731
      %v733 = vrot.slane %v548, %v732
      %735 = vbcast.lane.b32.xlu0 %v733, 256
      %v736 = vpop.permute.xlu0 %735
      %s738 = sor.u32 256, 8
      %739 = vbcast.lane.b32.xlu0 %v733, %s738
      %v740 = vpop.permute.xlu0 %739
      %s742 = sor.u32 256, 16
      %743 = vbcast.lane.b32.xlu0 %v733, %s742
      %v744 = vpop.permute.xlu0 %743
      %v745 = vlaneseq
      %v746 = vshrl.u32 %v745, 7
      %v747 = vsub.s32 5, %v746
      %v748 = vrot.slane %v548, %v747
      %750 = vbcast.lane.b32.xlu0 %v748, 256
      %v751 = vpop.permute.xlu0 %750
      %s753 = sor.u32 256, 8
      %754 = vbcast.lane.b32.xlu0 %v748, %s753
      %v755 = vpop.permute.xlu0 %754
      %s757 = sor.u32 256, 16
      %758 = vbcast.lane.b32.xlu0 %v748, %s757
      %v759 = vpop.permute.xlu0 %758
      %v760 = vlaneseq
      %v761 = vshrl.u32 %v760, 7
      %v762 = vsub.s32 6, %v761
      %v763 = vrot.slane %v548, %v762
      %765 = vbcast.lane.b32.xlu0 %v763, 256
      %v766 = vpop.permute.xlu0 %765
      %s768 = sor.u32 256, 8
      %769 = vbcast.lane.b32.xlu0 %v763, %s768
      %v770 = vpop.permute.xlu0 %769
      %s772 = sor.u32 256, 16
      %773 = vbcast.lane.b32.xlu0 %v763, %s772
      %v774 = vpop.permute.xlu0 %773
      %v775 = vlaneseq
      %v776 = vshrl.u32 %v775, 7
      %v777 = vsub.s32 7, %v776
      %v778 = vrot.slane %v548, %v777
      %780 = vbcast.lane.b32.xlu0 %v778, 256
      %v781 = vpop.permute.xlu0 %780
      %s783 = sor.u32 256, 8
      %784 = vbcast.lane.b32.xlu0 %v778, %s783
      %v785 = vpop.permute.xlu0 %784
      %s787 = sor.u32 256, 16
      %788 = vbcast.lane.b32.xlu0 %v778, %s787
      %v789 = vpop.permute.xlu0 %788
      %v790 = vlaneseq
      %v791 = vshrl.u32 %v790, 7
      %v792 = vsub.s32 0, %v791
      %v793 = vrot.slane %v549, %v792
      %795 = vbcast.lane.b32.xlu0 %v793, 256
      %v796 = vpop.permute.xlu0 %795
      %s798 = sor.u32 256, 8
      %799 = vbcast.lane.b32.xlu0 %v793, %s798
      %v800 = vpop.permute.xlu0 %799
      %s802 = sor.u32 256, 16
      %803 = vbcast.lane.b32.xlu0 %v793, %s802
      %v804 = vpop.permute.xlu0 %803
      %v805 = vlaneseq
      %v806 = vshrl.u32 %v805, 7
      %v807 = vsub.s32 1, %v806
      %v808 = vrot.slane %v549, %v807
      %810 = vbcast.lane.b32.xlu0 %v808, 256
      %v811 = vpop.permute.xlu0 %810
      %s813 = sor.u32 256, 8
      %814 = vbcast.lane.b32.xlu0 %v808, %s813
      %v815 = vpop.permute.xlu0 %814
      %s817 = sor.u32 256, 16
      %818 = vbcast.lane.b32.xlu0 %v808, %s817
      %v819 = vpop.permute.xlu0 %818
      %v820 = vmul.f32 %v467, %v556
      %v821 = vmul.f32 %v468, %v560
      %v822 = vmul.f32 %v469, %v564
      %v823 = vmul.f32 %v470, %v571
      %v824 = vmul.f32 %v471, %v575
      %v825 = vmul.f32 %v472, %v579
      %v826 = vmul.f32 %v473, %v586
      %v827 = vmul.f32 %v474, %v590
      %v828 = vmul.f32 %v475, %v594
      %v829 = vmul.f32 %v476, %v601
      %v830 = vmul.f32 %v477, %v605
      %v831 = vmul.f32 %v478, %v609
      %v832 = vmul.f32 %v479, %v616
      %v833 = vmul.f32 %v480, %v620
      %v834 = vmul.f32 %v481, %v624
      %v835 = vmul.f32 %v482, %v631
      %v836 = vmul.f32 %v483, %v635
      %v837 = vmul.f32 %v484, %v639
      %v838 = vmul.f32 %v485, %v646
      %v839 = vmul.f32 %v486, %v650
      %v840 = vmul.f32 %v487, %v654
      %v841 = vmul.f32 %v488, %v661
      %v842 = vmul.f32 %v489, %v665
      %v843 = vmul.f32 %v490, %v669
      %v844 = vmul.f32 %v491, %v676
      %v845 = vmul.f32 %v492, %v680
      %v846 = vmul.f32 %v493, %v684
      %v847 = vmul.f32 %v494, %v691
      %v848 = vmul.f32 %v495, %v695
      %v849 = vmul.f32 %v496, %v699
      %v850 = vmul.f32 %v497, %v706
      %v851 = vmul.f32 %v498, %v710
      %v852 = vmul.f32 %v499, %v714
      %v853 = vmul.f32 %v500, %v721
      %v854 = vmul.f32 %v501, %v725
      %v855 = vmul.f32 %v502, %v729
      %v856 = vmul.f32 %v503, %v736
      %v857 = vmul.f32 %v504, %v740
      %v858 = vmul.f32 %v505, %v744
      %v859 = vmul.f32 %v506, %v751
      %v860 = vmul.f32 %v507, %v755
      %v861 = vmul.f32 %v508, %v759
      %v862 = vmul.f32 %v509, %v766
      %v863 = vmul.f32 %v510, %v770
      %v864 = vmul.f32 %v511, %v774
      %v865 = vmul.f32 %v512, %v781
      %v866 = vmul.f32 %v513, %v785
      %v867 = vmul.f32 %v514, %v789
      %v868 = vmul.f32 %v515, %v796
      %v869 = vmul.f32 %v516, %v800
      %v870 = vmul.f32 %v517, %v804
      %v871 = vmul.f32 %v518, %v811
      %v872 = vmul.f32 %v519, %v815
      %v873 = vmul.f32 %v520, %v819
      %v874 = vpack.c.bf16 %v821, %v820
      %v875 = vpack.c.bf16 %v822, %v822
      %v876 = vpack.c.bf16 %v824, %v823
      %v877 = vpack.c.bf16 %v825, %v825
      %v878 = vpack.c.bf16 %v827, %v826
      %v879 = vpack.c.bf16 %v828, %v828
      %v880 = vpack.c.bf16 %v830, %v829
      %v881 = vpack.c.bf16 %v831, %v831
      %v882 = vpack.c.bf16 %v833, %v832
      %v883 = vpack.c.bf16 %v834, %v834
      %v884 = vpack.c.bf16 %v836, %v835
      %v885 = vpack.c.bf16 %v837, %v837
      %v886 = vpack.c.bf16 %v839, %v838
      %v887 = vpack.c.bf16 %v840, %v840
      %v888 = vpack.c.bf16 %v842, %v841
      %v889 = vpack.c.bf16 %v843, %v843
      %v890 = vpack.c.bf16 %v845, %v844
      %v891 = vpack.c.bf16 %v846, %v846
      %v892 = vpack.c.bf16 %v848, %v847
      %v893 = vpack.c.bf16 %v849, %v849
      %v894 = vpack.c.bf16 %v851, %v850
      %v895 = vpack.c.bf16 %v852, %v852
      %v896 = vpack.c.bf16 %v854, %v853
      %v897 = vpack.c.bf16 %v855, %v855
      %v898 = vpack.c.bf16 %v857, %v856
      %v899 = vpack.c.bf16 %v858, %v858
      %v900 = vpack.c.bf16 %v860, %v859
      %v901 = vpack.c.bf16 %v861, %v861
      %v902 = vpack.c.bf16 %v863, %v862
      %v903 = vpack.c.bf16 %v864, %v864
      %v904 = vpack.c.bf16 %v866, %v865
      %v905 = vpack.c.bf16 %v867, %v867
      %v906 = vpack.c.bf16 %v869, %v868
      %v907 = vpack.c.bf16 %v870, %v870
      %v908 = vpack.c.bf16 %v872, %v871
      %v909 = vpack.c.bf16 %v873, %v873
      %vm910 = vsmask.f32 7424
      %v912 = vshrl.u32 %v874, 16
      %v914 = vshll.u32 %v874, 16
      %v916 = vrot.slane %v914, 1
      %v917 = vor.u32 %v912, %v916
      %v919 = vshll.u32 %v875, 16
      %v921 = vrot.slane %v919, 1
      %v922 = vsel %vm910, %v917, %v921
      %v924 = vshrl.u32 %v876, 16
      %v926 = vshll.u32 %v876, 16
      %v928 = vrot.slane %v926, 1
      %v929 = vor.u32 %v924, %v928
      %v931 = vshll.u32 %v877, 16
      %v933 = vrot.slane %v931, 1
      %v934 = vsel %vm910, %v929, %v933
      %v936 = vshrl.u32 %v878, 16
      %v938 = vshll.u32 %v878, 16
      %v940 = vrot.slane %v938, 1
      %v941 = vor.u32 %v936, %v940
      %v943 = vshll.u32 %v879, 16
      %v945 = vrot.slane %v943, 1
      %v946 = vsel %vm910, %v941, %v945
      %v948 = vshrl.u32 %v880, 16
      %v950 = vshll.u32 %v880, 16
      %v952 = vrot.slane %v950, 1
      %v953 = vor.u32 %v948, %v952
      %v955 = vshll.u32 %v881, 16
      %v957 = vrot.slane %v955, 1
      %v958 = vsel %vm910, %v953, %v957
      %v960 = vshrl.u32 %v882, 16
      %v962 = vshll.u32 %v882, 16
      %v964 = vrot.slane %v962, 1
      %v965 = vor.u32 %v960, %v964
      %v967 = vshll.u32 %v883, 16
      %v969 = vrot.slane %v967, 1
      %v970 = vsel %vm910, %v965, %v969
      %v972 = vshrl.u32 %v884, 16
      %v974 = vshll.u32 %v884, 16
      %v976 = vrot.slane %v974, 1
      %v977 = vor.u32 %v972, %v976
      %v979 = vshll.u32 %v885, 16
      %v981 = vrot.slane %v979, 1
      %v982 = vsel %vm910, %v977, %v981
      %v984 = vshrl.u32 %v886, 16
      %v986 = vshll.u32 %v886, 16
      %v988 = vrot.slane %v986, 1
      %v989 = vor.u32 %v984, %v988
      %v991 = vshll.u32 %v887, 16
      %v993 = vrot.slane %v991, 1
      %v994 = vsel %vm910, %v989, %v993
      %v996 = vshrl.u32 %v888, 16
      %v998 = vshll.u32 %v888, 16
      %v1000 = vrot.slane %v998, 1
      %v1001 = vor.u32 %v996, %v1000
      %v1003 = vshll.u32 %v889, 16
      %v1005 = vrot.slane %v1003, 1
      %v1006 = vsel %vm910, %v1001, %v1005
      %v1008 = vshrl.u32 %v890, 16
      %v1010 = vshll.u32 %v890, 16
      %v1012 = vrot.slane %v1010, 1
      %v1013 = vor.u32 %v1008, %v1012
      %v1015 = vshll.u32 %v891, 16
      %v1017 = vrot.slane %v1015, 1
      %v1018 = vsel %vm910, %v1013, %v1017
      %v1020 = vshrl.u32 %v892, 16
      %v1022 = vshll.u32 %v892, 16
      %v1024 = vrot.slane %v1022, 1
      %v1025 = vor.u32 %v1020, %v1024
      %v1027 = vshll.u32 %v893, 16
      %v1029 = vrot.slane %v1027, 1
      %v1030 = vsel %vm910, %v1025, %v1029
      %v1032 = vshrl.u32 %v894, 16
      %v1034 = vshll.u32 %v894, 16
      %v1036 = vrot.slane %v1034, 1
      %v1037 = vor.u32 %v1032, %v1036
      %v1039 = vshll.u32 %v895, 16
      %v1041 = vrot.slane %v1039, 1
      %v1042 = vsel %vm910, %v1037, %v1041
      %v1044 = vshrl.u32 %v896, 16
      %v1046 = vshll.u32 %v896, 16
      %v1048 = vrot.slane %v1046, 1
      %v1049 = vor.u32 %v1044, %v1048
      %v1051 = vshll.u32 %v897, 16
      %v1053 = vrot.slane %v1051, 1
      %v1054 = vsel %vm910, %v1049, %v1053
      %v1056 = vshrl.u32 %v898, 16
      %v1058 = vshll.u32 %v898, 16
      %v1060 = vrot.slane %v1058, 1
      %v1061 = vor.u32 %v1056, %v1060
      %v1063 = vshll.u32 %v899, 16
      %v1065 = vrot.slane %v1063, 1
      %v1066 = vsel %vm910, %v1061, %v1065
      %v1068 = vshrl.u32 %v900, 16
      %v1070 = vshll.u32 %v900, 16
      %v1072 = vrot.slane %v1070, 1
      %v1073 = vor.u32 %v1068, %v1072
      %v1075 = vshll.u32 %v901, 16
      %v1077 = vrot.slane %v1075, 1
      %v1078 = vsel %vm910, %v1073, %v1077
      %v1080 = vshrl.u32 %v902, 16
      %v1082 = vshll.u32 %v902, 16
      %v1084 = vrot.slane %v1082, 1
      %v1085 = vor.u32 %v1080, %v1084
      %v1087 = vshll.u32 %v903, 16
      %v1089 = vrot.slane %v1087, 1
      %v1090 = vsel %vm910, %v1085, %v1089
      %v1092 = vshrl.u32 %v904, 16
      %v1094 = vshll.u32 %v904, 16
      %v1096 = vrot.slane %v1094, 1
      %v1097 = vor.u32 %v1092, %v1096
      %v1099 = vshll.u32 %v905, 16
      %v1101 = vrot.slane %v1099, 1
      %v1102 = vsel %vm910, %v1097, %v1101
      %1103 = vrot.lane.b32.xlu0 %v922, 4
      %v1104 = vpop.permute.xlu0 %1103
      %1105 = vrot.lane.b32.xlu0 %v934, 4
      %v1106 = vpop.permute.xlu0 %1105
      %1107 = vrot.lane.b32.xlu0 %v946, 4
      %v1108 = vpop.permute.xlu0 %1107
      %1109 = vrot.lane.b32.xlu0 %v958, 4
      %v1110 = vpop.permute.xlu0 %1109
      %1111 = vrot.lane.b32.xlu0 %v970, 4
      %v1112 = vpop.permute.xlu0 %1111
      %1113 = vrot.lane.b32.xlu0 %v982, 4
      %v1114 = vpop.permute.xlu0 %1113
      %1115 = vrot.lane.b32.xlu0 %v994, 4
      %v1116 = vpop.permute.xlu0 %1115
      %1117 = vrot.lane.b32.xlu0 %v1006, 4
      %v1118 = vpop.permute.xlu0 %1117
      %1119 = vrot.lane.b32.xlu0 %v1018, 4
      %v1120 = vpop.permute.xlu0 %1119
      %1121 = vrot.lane.b32.xlu0 %v1030, 4
      %v1122 = vpop.permute.xlu0 %1121
      %1123 = vrot.lane.b32.xlu0 %v1042, 4
      %v1124 = vpop.permute.xlu0 %1123
      %1125 = vrot.lane.b32.xlu0 %v1054, 4
      %v1126 = vpop.permute.xlu0 %1125
      %1127 = vrot.lane.b32.xlu0 %v1066, 4
      %v1128 = vpop.permute.xlu0 %1127
      %1129 = vrot.lane.b32.xlu0 %v1078, 4
      %v1130 = vpop.permute.xlu0 %1129
      %1131 = vrot.lane.b32.xlu0 %v1090, 4
      %v1132 = vpop.permute.xlu0 %1131
      %1133 = vrot.lane.b32.xlu0 %v1102, 4
      %v1134 = vpop.permute.xlu0 %1133
      %vm1167 = vcmask 1046528
      %v1168 = vrot.slane %v874, 1
      %v1169 = vrot.slane %v875, 1
      %v1170 = vsel %vm1167, %v1168, %v1169
      %v1171 = vrot.slane %v876, 1
      %v1172 = vrot.slane %v877, 1
      %v1173 = vsel %vm1167, %v1171, %v1172
      %v1174 = vrot.slane %v878, 1
      %v1175 = vrot.slane %v879, 1
      %v1176 = vsel %vm1167, %v1174, %v1175
      %v1177 = vrot.slane %v880, 1
      %v1178 = vrot.slane %v881, 1
      %v1179 = vsel %vm1167, %v1177, %v1178
      %v1180 = vrot.slane %v882, 1
      %v1181 = vrot.slane %v883, 1
      %v1182 = vsel %vm1167, %v1180, %v1181
      %v1183 = vrot.slane %v884, 1
      %v1184 = vrot.slane %v885, 1
      %v1185 = vsel %vm1167, %v1183, %v1184
      %v1186 = vrot.slane %v886, 1
      %v1187 = vrot.slane %v887, 1
      %v1188 = vsel %vm1167, %v1186, %v1187
      %v1189 = vrot.slane %v888, 1
      %v1190 = vrot.slane %v889, 1
      %v1191 = vsel %vm1167, %v1189, %v1190
      %v1192 = vrot.slane %v890, 1
      %v1193 = vrot.slane %v891, 1
      %v1194 = vsel %vm1167, %v1192, %v1193
      %v1195 = vrot.slane %v892, 1
      %v1196 = vrot.slane %v893, 1
      %v1197 = vsel %vm1167, %v1195, %v1196
      %v1198 = vrot.slane %v894, 1
      %v1199 = vrot.slane %v895, 1
      %v1200 = vsel %vm1167, %v1198, %v1199
      %v1201 = vrot.slane %v896, 1
      %v1202 = vrot.slane %v897, 1
      %v1203 = vsel %vm1167, %v1201, %v1202
      %v1204 = vrot.slane %v898, 1
      %v1205 = vrot.slane %v899, 1
      %v1206 = vsel %vm1167, %v1204, %v1205
      %v1207 = vrot.slane %v900, 1
      %v1208 = vrot.slane %v901, 1
      %v1209 = vsel %vm1167, %v1207, %v1208
      %v1210 = vrot.slane %v902, 1
      %v1211 = vrot.slane %v903, 1
      %v1212 = vsel %vm1167, %v1210, %v1211
      %v1213 = vrot.slane %v904, 1
      %v1214 = vrot.slane %v905, 1
      %v1215 = vsel %vm1167, %v1213, %v1214
      %1216 = vrot.lane.b32.xlu0 %v1170, 8
      %v1217 = vpop.permute.xlu0 %1216
      %1218 = vrot.lane.b32.xlu0 %v1173, 8
      %v1219 = vpop.permute.xlu0 %1218
      %1220 = vrot.lane.b32.xlu0 %v1176, 8
      %v1221 = vpop.permute.xlu0 %1220
      %1222 = vrot.lane.b32.xlu0 %v1179, 8
      %v1223 = vpop.permute.xlu0 %1222
      %1224 = vrot.lane.b32.xlu0 %v1182, 8
      %v1225 = vpop.permute.xlu0 %1224
      %1226 = vrot.lane.b32.xlu0 %v1185, 8
      %v1227 = vpop.permute.xlu0 %1226
      %1228 = vrot.lane.b32.xlu0 %v1188, 8
      %v1229 = vpop.permute.xlu0 %1228
      %1230 = vrot.lane.b32.xlu0 %v1191, 8
      %v1231 = vpop.permute.xlu0 %1230
      %1232 = vrot.lane.b32.xlu0 %v1194, 8
      %v1233 = vpop.permute.xlu0 %1232
      %1234 = vrot.lane.b32.xlu0 %v1197, 8
      %v1235 = vpop.permute.xlu0 %1234
      %1236 = vrot.lane.b32.xlu0 %v1200, 8
      %v1237 = vpop.permute.xlu0 %1236
      %1238 = vrot.lane.b32.xlu0 %v1203, 8
      %v1239 = vpop.permute.xlu0 %1238
      %1240 = vrot.lane.b32.xlu0 %v1206, 8
      %v1241 = vpop.permute.xlu0 %1240
      %1242 = vrot.lane.b32.xlu0 %v1209, 8
      %v1243 = vpop.permute.xlu0 %1242
      %1244 = vrot.lane.b32.xlu0 %v1212, 8
      %v1245 = vpop.permute.xlu0 %1244
      %1246 = vrot.lane.b32.xlu0 %v1215, 8
      %v1247 = vpop.permute.xlu0 %1246
      %vm1248 = vcmask 31744
      %v1250 = vsel %vm1248, %v874, %v1104
      %v1252 = vsel %vm1248, %v876, %v1106
      %v1254 = vsel %vm1248, %v878, %v1108
      %v1256 = vsel %vm1248, %v880, %v1110
      %v1258 = vsel %vm1248, %v882, %v1112
      %v1260 = vsel %vm1248, %v884, %v1114
      %v1262 = vsel %vm1248, %v886, %v1116
      %v1264 = vsel %vm1248, %v888, %v1118
      %v1266 = vsel %vm1248, %v890, %v1120
      %v1268 = vsel %vm1248, %v892, %v1122
      %v1270 = vsel %vm1248, %v894, %v1124
      %v1272 = vsel %vm1248, %v896, %v1126
      %v1274 = vsel %vm1248, %v898, %v1128
      %v1276 = vsel %vm1248, %v900, %v1130
      %v1278 = vsel %vm1248, %v902, %v1132
      %v1280 = vsel %vm1248, %v904, %v1134
      %vm1281 = vcmask 64512
      %v1283 = vsel %vm1281, %v1250, %v1217
      %v1285 = vsel %vm1281, %v1252, %v1219
      %v1287 = vsel %vm1281, %v1254, %v1221
      %v1289 = vsel %vm1281, %v1256, %v1223
      %v1291 = vsel %vm1281, %v1258, %v1225
      %v1293 = vsel %vm1281, %v1260, %v1227
      %v1295 = vsel %vm1281, %v1262, %v1229
      %v1297 = vsel %vm1281, %v1264, %v1231
      %v1299 = vsel %vm1281, %v1266, %v1233
      %v1301 = vsel %vm1281, %v1268, %v1235
      %v1303 = vsel %vm1281, %v1270, %v1237
      %v1305 = vsel %vm1281, %v1272, %v1239
      %v1307 = vsel %vm1281, %v1274, %v1241
      %v1309 = vsel %vm1281, %v1276, %v1243
      %v1311 = vsel %vm1281, %v1278, %v1245
      %v1313 = vsel %vm1281, %v1280, %v1247
      %v1314 = vld [vmem:[%s3] sm:$0xf]
      %v1315 = vld [vmem:[%s3 + $0x4] sm:$0x3]
      %v1317 = vshrl.u32 %v906, 16
      %v1319 = vshll.u32 %v906, 16
      %v1321 = vrot.slane %v1319, 1
      %v1322 = vor.u32 %v1317, %v1321
      %v1324 = vshll.u32 %v907, 16
      %v1326 = vrot.slane %v1324, 1
      %v1327 = vsel %vm910, %v1322, %v1326
      %1328 = vrot.lane.b32.xlu0 %v1327, 4
      %v1329 = vpop.permute.xlu0 %1328
      %v1332 = vrot.slane %v906, 1
      %v1333 = vrot.slane %v907, 1
      %v1334 = vsel %vm1167, %v1332, %v1333
      %1335 = vrot.lane.b32.xlu0 %v1334, 8
      %v1336 = vpop.permute.xlu0 %1335
      %v1338 = vsel %vm1248, %v906, %v1329
      %v1340 = vsel %vm1281, %v1338, %v1336
      %s1341 = scalar_lea.vmem %s3, 8
      %v1342 = vld [vmem:[%s1341] sm:$0xf]
      %v1343 = vld [vmem:[%s1341 + $0x4] sm:$0x3]
      %v1346 = vunpack.c.l.b16 %v1342
      %v1347 = vunpack.c.l.b16 %v1343
      %v1348 = vpack.c.b16 %v1347, %v1346
      %vm1349 = vcmask 97280
      %v1350 = vsel %vm1349, %v1285, 0
      %v1352 = vsel %vm1349, %v1287, 0
      %v1354 = vsel %vm1349, %v1289, 0
      %v1356 = vsel %vm1349, %v1291, 0
      %v1358 = vsel %vm1349, %v1293, 0
      %v1360 = vsel %vm1349, %v1295, 0
      %v1362 = vsel %vm1349, %v1297, 0
      %v1364 = vsel %vm1349, %v1299, 0
      %v1366 = vsel %vm1349, %v1301, 0
      %v1368 = vsel %vm1349, %v1303, 0
      %v1370 = vsel %vm1349, %v1305, 0
      %v1372 = vsel %vm1349, %v1307, 0
      %v1374 = vsel %vm1349, %v1309, 0
      %v1376 = vsel %vm1349, %v1311, 0
      %v1378 = vsel %vm1349, %v1313, 0
      %v1380 = vsel %vm1349, %v1340, 0
      %vm1382 = vcmask 1045504
      %v1384 = vsel %vm1382, %v1348, 0
      %1386 = vmatprep.subr.bf16.mxu0 0
      %1387 = vmatpush1.bf16.msra.mxu0 %v1384
      %1388 = vmatprep.subr.bf16.mxu0 0
      %1389 = vmatpush1.bf16.msra.mxu0 0
      %1390 = vmatprep.subr.bf16.mxu0 0
      %1391 = vmatpush1.bf16.msra.mxu0 0
      %1392 = vmatprep.subr.bf16.mxu0 0
      %1393 = vmatpush1.bf16.msra.mxu0 0
      %1394 = vmatprep.subr.bf16.mxu0 0
      %1395 = vmatpush1.bf16.msra.mxu0 0
      %1396 = vmatprep.subr.bf16.mxu0 0
      %1397 = vmatpush1.bf16.msra.mxu0 0
      %1398 = vmatprep.subr.bf16.mxu0 0
      %1399 = vmatpush1.bf16.msra.mxu0 0
      %1400 = vmatprep.subr.bf16.mxu0 0
      %1401 = vmatpush1.bf16.msra.mxu0 0
      %1402 = vmatprep.subr.bf16.mxu0 0
      %1403 = vmatpush1.bf16.msra.mxu0 0
      %1404 = vmatprep.subr.bf16.mxu0 0
      %1405 = vmatpush1.bf16.msra.mxu0 0
      %1406 = vmatprep.subr.bf16.mxu0 0
      %1407 = vmatpush1.bf16.msra.mxu0 0
      %1408 = vmatprep.subr.bf16.mxu0 0
      %1409 = vmatpush1.bf16.msra.mxu0 0
      %1410 = vmatprep.subr.bf16.mxu0 0
      %1411 = vmatpush1.bf16.msra.mxu0 0
      %1412 = vmatprep.subr.bf16.mxu0 0
      %1413 = vmatpush1.bf16.msra.mxu0 0
      %1414 = vmatprep.subr.bf16.mxu0 0
      %1415 = vmatpush1.bf16.msra.mxu0 0
      %1416 = vmatprep.subr.bf16.mxu0 0
      %1417 = vmatpush1.bf16.msra.mxu0 0
      %1418 = vmatprep.mubr.bf16.mxu0 0
      %1419 = vmatmul.mubr.bf16.gmra.mrb[0].mxu0 %v1350
      %v1420 = vpop.f32.mrb[0].mxu0
      %v1421 = vadd.f32 0.0, %v1420
      %v1422 = vpop.f32.mrb[0].mxu0
      %v1423 = vpop.f32.mrb[0].mxu0
      %v1424 = vadd.f32 0.0, %v1423
      %v1425 = vpop.f32.mrb[0].mxu0
      %1426 = vmatprep.mubr.bf16.mxu0 0
      %1427 = vmatmul.mubr.bf16.gmra.mrb[0].mxu0 %v1352
      %v1428 = vpop.f32.mrb[0].mxu0
      %v1429 = vadd.f32 0.0, %v1428
      %v1430 = vpop.f32.mrb[0].mxu0
      %v1431 = vpop.f32.mrb[0].mxu0
      %v1432 = vadd.f32 0.0, %v1431
      %v1433 = vpop.f32.mrb[0].mxu0
      %1434 = vmatprep.mubr.bf16.mxu0 0
      %1435 = vmatmul.mubr.bf16.gmra.mrb[0].mxu0 %v1354
      %v1436 = vpop.f32.mrb[0].mxu0
      %v1437 = vadd.f32 0.0, %v1436
      %v1438 = vpop.f32.mrb[0].mxu0
      %v1439 = vpop.f32.mrb[0].mxu0
      %v1440 = vadd.f32 0.0, %v1439
      %v1441 = vpop.f32.mrb[0].mxu0
      %1442 = vmatprep.mubr.bf16.mxu0 0
      %1443 = vmatmul.mubr.bf16.gmra.mrb[0].mxu0 %v1356
      %v1444 = vpop.f32.mrb[0].mxu0
      %v1445 = vadd.f32 0.0, %v1444
      %v1446 = vpop.f32.mrb[0].mxu0
      %v1447 = vpop.f32.mrb[0].mxu0
      %v1448 = vadd.f32 0.0, %v1447
      %v1449 = vpop.f32.mrb[0].mxu0
      %1450 = vmatprep.mubr.bf16.mxu0 0
      %1451 = vmatmul.mubr.bf16.gmra.mrb[0].mxu0 %v1358
      %v1452 = vpop.f32.mrb[0].mxu0
      %v1453 = vadd.f32 0.0, %v1452
      %v1454 = vpop.f32.mrb[0].mxu0
      %v1455 = vpop.f32.mrb[0].mxu0
      %v1456 = vadd.f32 0.0, %v1455
      %v1457 = vpop.f32.mrb[0].mxu0
      %1458 = vmatprep.mubr.bf16.mxu0 0
      %1459 = vmatmul.mubr.bf16.gmra.mrb[0].mxu0 %v1360
      %v1460 = vpop.f32.mrb[0].mxu0
      %v1461 = vadd.f32 0.0, %v1460
      %v1462 = vpop.f32.mrb[0].mxu0
      %v1463 = vpop.f32.mrb[0].mxu0
      %v1464 = vadd.f32 0.0, %v1463
      %v1465 = vpop.f32.mrb[0].mxu0
      %1466 = vmatprep.mubr.bf16.mxu0 0
      %1467 = vmatmul.mubr.bf16.gmra.mrb[0].mxu0 %v1362
      %v1468 = vpop.f32.mrb[0].mxu0
      %v1469 = vadd.f32 0.0, %v1468
      %v1470 = vpop.f32.mrb[0].mxu0
      %v1471 = vpop.f32.mrb[0].mxu0
      %v1472 = vadd.f32 0.0, %v1471
      %v1473 = vpop.f32.mrb[0].mxu0
      %1474 = vmatprep.mubr.bf16.mxu0 0
      %1475 = vmatmul.mubr.bf16.gmra.mrb[0].mxu0 %v1364
      %v1476 = vpop.f32.mrb[0].mxu0
      %v1477 = vadd.f32 0.0, %v1476
      %v1478 = vpop.f32.mrb[0].mxu0
      %v1479 = vpop.f32.mrb[0].mxu0
      %v1480 = vadd.f32 0.0, %v1479
      %v1481 = vpop.f32.mrb[0].mxu0
      %1482 = vmatprep.mubr.bf16.mxu0 0
      %1483 = vmatmul.mubr.bf16.gmra.mrb[0].mxu0 %v1366
      %v1484 = vpop.f32.mrb[0].mxu0
      %v1485 = vadd.f32 0.0, %v1484
      %v1486 = vpop.f32.mrb[0].mxu0
      %v1487 = vpop.f32.mrb[0].mxu0
      %v1488 = vadd.f32 0.0, %v1487
      %v1489 = vpop.f32.mrb[0].mxu0
      %1490 = vmatprep.mubr.bf16.mxu0 0
      %1491 = vmatmul.mubr.bf16.gmra.mrb[0].mxu0 %v1368
      %v1492 = vpop.f32.mrb[0].mxu0
      %v1493 = vadd.f32 0.0, %v1492
      %v1494 = vpop.f32.mrb[0].mxu0
      %v1495 = vpop.f32.mrb[0].mxu0
      %v1496 = vadd.f32 0.0, %v1495
      %v1497 = vpop.f32.mrb[0].mxu0
      %1498 = vmatprep.mubr.bf16.mxu0 0
      %1499 = vmatmul.mubr.bf16.gmra.mrb[0].mxu0 %v1370
      %v1500 = vpop.f32.mrb[0].mxu0
      %v1501 = vadd.f32 0.0, %v1500
      %v1502 = vpop.f32.mrb[0].mxu0
      %v1503 = vpop.f32.mrb[0].mxu0
      %v1504 = vadd.f32 0.0, %v1503
      %v1505 = vpop.f32.mrb[0].mxu0
      %1506 = vmatprep.mubr.bf16.mxu0 0
      %1507 = vmatmul.mubr.bf16.gmra.mrb[0].mxu0 %v1372
      %v1508 = vpop.f32.mrb[0].mxu0
      %v1509 = vadd.f32 0.0, %v1508
      %v1510 = vpop.f32.mrb[0].mxu0
      %v1511 = vpop.f32.mrb[0].mxu0
      %v1512 = vadd.f32 0.0, %v1511
      %v1513 = vpop.f32.mrb[0].mxu0
      %1514 = vmatprep.mubr.bf16.mxu0 0
      %1515 = vmatmul.mubr.bf16.gmra.mrb[0].mxu0 %v1374
      %v1516 = vpop.f32.mrb[0].mxu0
      %v1517 = vadd.f32 0.0, %v1516
      %v1518 = vpop.f32.mrb[0].mxu0
      %v1519 = vpop.f32.mrb[0].mxu0
      %v1520 = vadd.f32 0.0, %v1519
      %v1521 = vpop.f32.mrb[0].mxu0
      %1522 = vmatprep.mubr.bf16.mxu0 0
      %1523 = vmatmul.mubr.bf16.gmra.mrb[0].mxu0 %v1376
      %v1524 = vpop.f32.mrb[0].mxu0
      %v1525 = vadd.f32 0.0, %v1524
      %v1526 = vpop.f32.mrb[0].mxu0
      %v1527 = vpop.f32.mrb[0].mxu0
      %v1528 = vadd.f32 0.0, %v1527
      %v1529 = vpop.f32.mrb[0].mxu0
      %1530 = vmatprep.mubr.bf16.mxu0 0
      %1531 = vmatmul.mubr.bf16.gmra.mrb[0].mxu0 %v1378
      %v1532 = vpop.f32.mrb[0].mxu0
      %v1533 = vadd.f32 0.0, %v1532
      %v1534 = vpop.f32.mrb[0].mxu0
      %v1535 = vpop.f32.mrb[0].mxu0
      %v1536 = vadd.f32 0.0, %v1535
      %v1537 = vpop.f32.mrb[0].mxu0
      %1538 = vmatprep.mubr.bf16.mxu0 0
      %1539 = vmatmul.mubr.bf16.gmra.mrb[0].mxu0 %v1380
      %v1540 = vpop.f32.mrb[0].mxu0
      %v1541 = vadd.f32 0.0, %v1540
      %v1542 = vpop.f32.mrb[0].mxu0
      %v1543 = vpop.f32.mrb[0].mxu0
      %v1544 = vadd.f32 0.0, %v1543
      %v1545 = vpop.f32.mrb[0].mxu0
      %1546 = vdwg.mxu0
      %v1549 = vunpack.c.l.b16 %v1314
      %v1550 = vunpack.c.l.b16 %v1315
      %v1551 = vpack.c.b16 %v1550, %v1549
      %v1552 = vsel %vm1349, %v1283, 0
      %v1555 = vsel %vm1382, %v1551, 0
      %1557 = vmatprep.subr.bf16.mxu0 0
      %1558 = vmatpush1.bf16.msra.mxu0 %v1555
      %1559 = vmatprep.subr.bf16.mxu0 0
      %1560 = vmatpush1.bf16.msra.mxu0 0
      %1561 = vmatprep.subr.bf16.mxu0 0
      %1562 = vmatpush1.bf16.msra.mxu0 0
      %1563 = vmatprep.subr.bf16.mxu0 0
      %1564 = vmatpush1.bf16.msra.mxu0 0
      %1565 = vmatprep.subr.bf16.mxu0 0
      %1566 = vmatpush1.bf16.msra.mxu0 0
      %1567 = vmatprep.subr.bf16.mxu0 0
      %1568 = vmatpush1.bf16.msra.mxu0 0
      %1569 = vmatprep.subr.bf16.mxu0 0
      %1570 = vmatpush1.bf16.msra.mxu0 0
      %1571 = vmatprep.subr.bf16.mxu0 0
      %1572 = vmatpush1.bf16.msra.mxu0 0
      %1573 = vmatprep.subr.bf16.mxu0 0
      %1574 = vmatpush1.bf16.msra.mxu0 0
      %1575 = vmatprep.subr.bf16.mxu0 0
      %1576 = vmatpush1.bf16.msra.mxu0 0
      %1577 = vmatprep.subr.bf16.mxu0 0
      %1578 = vmatpush1.bf16.msra.mxu0 0
      %1579 = vmatprep.subr.bf16.mxu0 0
      %1580 = vmatpush1.bf16.msra.mxu0 0
      %1581 = vmatprep.subr.bf16.mxu0 0
      %1582 = vmatpush1.bf16.msra.mxu0 0
      %1583 = vmatprep.subr.bf16.mxu0 0
      %1584 = vmatpush1.bf16.msra.mxu0 0
      %1585 = vmatprep.subr.bf16.mxu0 0
      %1586 = vmatpush1.bf16.msra.mxu0 0
      %1587 = vmatprep.subr.bf16.mxu0 0
      %1588 = vmatpush1.bf16.msra.mxu0 0
      %1589 = vmatprep.mubr.bf16.mxu0 0
      %1590 = vmatmul.mubr.bf16.gmra.mrb[0].mxu0 %v1552
      %v1591 = vpop.f32.mrb[0].mxu0
      %v1592 = vadd.f32 %v1421, %v1591
      %v1593 = vpop.f32.mrb[0].mxu0
      %v1594 = vpop.f32.mrb[0].mxu0
      %v1595 = vadd.f32 %v1424, %v1594
      %v1596 = vpop.f32.mrb[0].mxu0
      %1597 = vmatprep.mubr.bf16.mxu0 0
      %1598 = vmatmul.mubr.bf16.gmra.mrb[0].mxu0 %v1350
      %v1599 = vpop.f32.mrb[0].mxu0
      %v1600 = vadd.f32 %v1429, %v1599
      %v1601 = vpop.f32.mrb[0].mxu0
      %v1602 = vpop.f32.mrb[0].mxu0
      %v1603 = vadd.f32 %v1432, %v1602
      %v1604 = vpop.f32.mrb[0].mxu0
      %1605 = vmatprep.mubr.bf16.mxu0 0
      %1606 = vmatmul.mubr.bf16.gmra.mrb[0].mxu0 %v1352
      %v1607 = vpop.f32.mrb[0].mxu0
      %v1608 = vadd.f32 %v1437, %v1607
      %v1609 = vpop.f32.mrb[0].mxu0
      %v1610 = vpop.f32.mrb[0].mxu0
      %v1611 = vadd.f32 %v1440, %v1610
      %v1612 = vpop.f32.mrb[0].mxu0
      %1613 = vmatprep.mubr.bf16.mxu0 0
      %1614 = vmatmul.mubr.bf16.gmra.mrb[0].mxu0 %v1354
      %v1615 = vpop.f32.mrb[0].mxu0
      %v1616 = vadd.f32 %v1445, %v1615
      %v1617 = vpop.f32.mrb[0].mxu0
      %v1618 = vpop.f32.mrb[0].mxu0
      %v1619 = vadd.f32 %v1448, %v1618
      %v1620 = vpop.f32.mrb[0].mxu0
      %1621 = vmatprep.mubr.bf16.mxu0 0
      %1622 = vmatmul.mubr.bf16.gmra.mrb[0].mxu0 %v1356
      %v1623 = vpop.f32.mrb[0].mxu0
      %v1624 = vadd.f32 %v1453, %v1623
      %v1625 = vpop.f32.mrb[0].mxu0
      %v1626 = vpop.f32.mrb[0].mxu0
      %v1627 = vadd.f32 %v1456, %v1626
      %v1628 = vpop.f32.mrb[0].mxu0
      %1629 = vmatprep.mubr.bf16.mxu0 0
      %1630 = vmatmul.mubr.bf16.gmra.mrb[0].mxu0 %v1358
      %v1631 = vpop.f32.mrb[0].mxu0
      %v1632 = vadd.f32 %v1461, %v1631
      %v1633 = vpop.f32.mrb[0].mxu0
      %v1634 = vpop.f32.mrb[0].mxu0
      %v1635 = vadd.f32 %v1464, %v1634
      %v1636 = vpop.f32.mrb[0].mxu0
      %1637 = vmatprep.mubr.bf16.mxu0 0
      %1638 = vmatmul.mubr.bf16.gmra.mrb[0].mxu0 %v1360
      %v1639 = vpop.f32.mrb[0].mxu0
      %v1640 = vadd.f32 %v1469, %v1639
      %v1641 = vpop.f32.mrb[0].mxu0
      %v1642 = vpop.f32.mrb[0].mxu0
      %v1643 = vadd.f32 %v1472, %v1642
      %v1644 = vpop.f32.mrb[0].mxu0
      %1645 = vmatprep.mubr.bf16.mxu0 0
      %1646 = vmatmul.mubr.bf16.gmra.mrb[0].mxu0 %v1362
      %v1647 = vpop.f32.mrb[0].mxu0
      %v1648 = vadd.f32 %v1477, %v1647
      %v1649 = vpop.f32.mrb[0].mxu0
      %v1650 = vpop.f32.mrb[0].mxu0
      %v1651 = vadd.f32 %v1480, %v1650
      %v1652 = vpop.f32.mrb[0].mxu0
      %1653 = vmatprep.mubr.bf16.mxu0 0
      %1654 = vmatmul.mubr.bf16.gmra.mrb[0].mxu0 %v1364
      %v1655 = vpop.f32.mrb[0].mxu0
      %v1656 = vadd.f32 %v1485, %v1655
      %v1657 = vpop.f32.mrb[0].mxu0
      %v1658 = vpop.f32.mrb[0].mxu0
      %v1659 = vadd.f32 %v1488, %v1658
      %v1660 = vpop.f32.mrb[0].mxu0
      %1661 = vmatprep.mubr.bf16.mxu0 0
      %1662 = vmatmul.mubr.bf16.gmra.mrb[0].mxu0 %v1366
      %v1663 = vpop.f32.mrb[0].mxu0
      %v1664 = vadd.f32 %v1493, %v1663
      %v1665 = vpop.f32.mrb[0].mxu0
      %v1666 = vpop.f32.mrb[0].mxu0
      %v1667 = vadd.f32 %v1496, %v1666
      %v1668 = vpop.f32.mrb[0].mxu0
      %1669 = vmatprep.mubr.bf16.mxu0 0
      %1670 = vmatmul.mubr.bf16.gmra.mrb[0].mxu0 %v1368
      %v1671 = vpop.f32.mrb[0].mxu0
      %v1672 = vadd.f32 %v1501, %v1671
      %v1673 = vpop.f32.mrb[0].mxu0
      %v1674 = vpop.f32.mrb[0].mxu0
      %v1675 = vadd.f32 %v1504, %v1674
      %v1676 = vpop.f32.mrb[0].mxu0
      %1677 = vmatprep.mubr.bf16.mxu0 0
      %1678 = vmatmul.mubr.bf16.gmra.mrb[0].mxu0 %v1370
      %v1679 = vpop.f32.mrb[0].mxu0
      %v1680 = vadd.f32 %v1509, %v1679
      %v1681 = vpop.f32.mrb[0].mxu0
      %v1682 = vpop.f32.mrb[0].mxu0
      %v1683 = vadd.f32 %v1512, %v1682
      %v1684 = vpop.f32.mrb[0].mxu0
      %1685 = vmatprep.mubr.bf16.mxu0 0
      %1686 = vmatmul.mubr.bf16.gmra.mrb[0].mxu0 %v1372
      %v1687 = vpop.f32.mrb[0].mxu0
      %v1688 = vadd.f32 %v1517, %v1687
      %v1689 = vpop.f32.mrb[0].mxu0
      %v1690 = vpop.f32.mrb[0].mxu0
      %v1691 = vadd.f32 %v1520, %v1690
      %v1692 = vpop.f32.mrb[0].mxu0
      %1693 = vmatprep.mubr.bf16.mxu0 0
      %1694 = vmatmul.mubr.bf16.gmra.mrb[0].mxu0 %v1374
      %v1695 = vpop.f32.mrb[0].mxu0
      %v1696 = vadd.f32 %v1525, %v1695
      %v1697 = vpop.f32.mrb[0].mxu0
      %v1698 = vpop.f32.mrb[0].mxu0
      %v1699 = vadd.f32 %v1528, %v1698
      %v1700 = vpop.f32.mrb[0].mxu0
      %1701 = vmatprep.mubr.bf16.mxu0 0
      %1702 = vmatmul.mubr.bf16.gmra.mrb[0].mxu0 %v1376
      %v1703 = vpop.f32.mrb[0].mxu0
      %v1704 = vadd.f32 %v1533, %v1703
      %v1705 = vpop.f32.mrb[0].mxu0
      %v1706 = vpop.f32.mrb[0].mxu0
      %v1707 = vadd.f32 %v1536, %v1706
      %v1708 = vpop.f32.mrb[0].mxu0
      %1709 = vmatprep.mubr.bf16.mxu0 0
      %1710 = vmatmul.mubr.bf16.gmra.mrb[0].mxu0 %v1378
      %v1711 = vpop.f32.mrb[0].mxu0
      %v1712 = vadd.f32 %v1541, %v1711
      %v1713 = vpop.f32.mrb[0].mxu0
      %v1714 = vpop.f32.mrb[0].mxu0
      %v1715 = vadd.f32 %v1544, %v1714
      %v1716 = vpop.f32.mrb[0].mxu0
      %1717 = vdwg.mxu0
      %v1719 = vshrl.u32 %v908, 16
      %v1721 = vshll.u32 %v908, 16
      %v1723 = vrot.slane %v1721, 1
      %v1724 = vor.u32 %v1719, %v1723
      %v1726 = vshll.u32 %v909, 16
      %v1728 = vrot.slane %v1726, 1
      %v1729 = vsel %vm910, %v1724, %v1728
      %1730 = vrot.lane.b32.xlu0 %v1729, 4
      %v1731 = vpop.permute.xlu0 %1730
      %v1734 = vrot.slane %v908, 1
      %v1735 = vrot.slane %v909, 1
      %v1736 = vsel %vm1167, %v1734, %v1735
      %1737 = vrot.lane.b32.xlu0 %v1736, 8
      %v1738 = vpop.permute.xlu0 %1737
      %v1740 = vsel %vm1248, %v908, %v1731
      %v1742 = vsel %vm1281, %v1740, %v1738
      %s1743 = scalar_lea.vmem %s3, 16
      %v1744 = vld [vmem:[%s1743] sm:$0xf]
      %v1745 = vld [vmem:[%s1743 + $0x4] sm:$0x3]
      %v1748 = vunpack.c.l.b16 %v1744
      %v1749 = vunpack.c.l.b16 %v1745
      %v1750 = vpack.c.b16 %v1749, %v1748
      %v1751 = vsel %vm1349, %v1742, 0
      %v1754 = vsel %vm1382, %v1750, 0
      %1756 = vmatprep.subr.bf16.mxu0 0
      %1757 = vmatpush1.bf16.msra.mxu0 %v1754
      %1758 = vmatprep.subr.bf16.mxu0 0
      %1759 = vmatpush1.bf16.msra.mxu0 0
      %1760 = vmatprep.subr.bf16.mxu0 0
      %1761 = vmatpush1.bf16.msra.mxu0 0
      %1762 = vmatprep.subr.bf16.mxu0 0
      %1763 = vmatpush1.bf16.msra.mxu0 0
      %1764 = vmatprep.subr.bf16.mxu0 0
      %1765 = vmatpush1.bf16.msra.mxu0 0
      %1766 = vmatprep.subr.bf16.mxu0 0
      %1767 = vmatpush1.bf16.msra.mxu0 0
      %1768 = vmatprep.subr.bf16.mxu0 0
      %1769 = vmatpush1.bf16.msra.mxu0 0
      %1770 = vmatprep.subr.bf16.mxu0 0
      %1771 = vmatpush1.bf16.msra.mxu0 0
      %1772 = vmatprep.subr.bf16.mxu0 0
      %1773 = vmatpush1.bf16.msra.mxu0 0
      %1774 = vmatprep.subr.bf16.mxu0 0
      %1775 = vmatpush1.bf16.msra.mxu0 0
      %1776 = vmatprep.subr.bf16.mxu0 0
      %1777 = vmatpush1.bf16.msra.mxu0 0
      %1778 = vmatprep.subr.bf16.mxu0 0
      %1779 = vmatpush1.bf16.msra.mxu0 0
      %1780 = vmatprep.subr.bf16.mxu0 0
      %1781 = vmatpush1.bf16.msra.mxu0 0
      %1782 = vmatprep.subr.bf16.mxu0 0
      %1783 = vmatpush1.bf16.msra.mxu0 0
      %1784 = vmatprep.subr.bf16.mxu0 0
      %1785 = vmatpush1.bf16.msra.mxu0 0
      %1786 = vmatprep.subr.bf16.mxu0 0
      %1787 = vmatpush1.bf16.msra.mxu0 0
      %1788 = vmatprep.mubr.bf16.mxu0 0
      %1789 = vmatmul.mubr.bf16.gmra.mrb[0].mxu0 %v1352
      %v1790 = vpop.f32.mrb[0].mxu0
      %v1791 = vadd.f32 0.0, %v1790
      %v1792 = vpop.f32.mrb[0].mxu0
      %v1793 = vpop.f32.mrb[0].mxu0
      %v1794 = vadd.f32 0.0, %v1793
      %v1795 = vpop.f32.mrb[0].mxu0
      %1796 = vmatprep.mubr.bf16.mxu0 0
      %1797 = vmatmul.mubr.bf16.gmra.mrb[0].mxu0 %v1354
      %v1798 = vpop.f32.mrb[0].mxu0
      %v1799 = vadd.f32 0.0, %v1798
      %v1800 = vpop.f32.mrb[0].mxu0
      %v1801 = vpop.f32.mrb[0].mxu0
      %v1802 = vadd.f32 0.0, %v1801
      %v1803 = vpop.f32.mrb[0].mxu0
      %1804 = vmatprep.mubr.bf16.mxu0 0
      %1805 = vmatmul.mubr.bf16.gmra.mrb[0].mxu0 %v1356
      %v1806 = vpop.f32.mrb[0].mxu0
      %v1807 = vadd.f32 0.0, %v1806
      %v1808 = vpop.f32.mrb[0].mxu0
      %v1809 = vpop.f32.mrb[0].mxu0
      %v1810 = vadd.f32 0.0, %v1809
      %v1811 = vpop.f32.mrb[0].mxu0
      %1812 = vmatprep.mubr.bf16.mxu0 0
      %1813 = vmatmul.mubr.bf16.gmra.mrb[0].mxu0 %v1358
      %v1814 = vpop.f32.mrb[0].mxu0
      %v1815 = vadd.f32 0.0, %v1814
      %v1816 = vpop.f32.mrb[0].mxu0
      %v1817 = vpop.f32.mrb[0].mxu0
      %v1818 = vadd.f32 0.0, %v1817
      %v1819 = vpop.f32.mrb[0].mxu0
      %1820 = vmatprep.mubr.bf16.mxu0 0
      %1821 = vmatmul.mubr.bf16.gmra.mrb[0].mxu0 %v1360
      %v1822 = vpop.f32.mrb[0].mxu0
      %v1823 = vadd.f32 0.0, %v1822
      %v1824 = vpop.f32.mrb[0].mxu0
      %v1825 = vpop.f32.mrb[0].mxu0
      %v1826 = vadd.f32 0.0, %v1825
      %v1827 = vpop.f32.mrb[0].mxu0
      %1828 = vmatprep.mubr.bf16.mxu0 0
      %1829 = vmatmul.mubr.bf16.gmra.mrb[0].mxu0 %v1362
      %v1830 = vpop.f32.mrb[0].mxu0
      %v1831 = vadd.f32 0.0, %v1830
      %v1832 = vpop.f32.mrb[0].mxu0
      %v1833 = vpop.f32.mrb[0].mxu0
      %v1834 = vadd.f32 0.0, %v1833
      %v1835 = vpop.f32.mrb[0].mxu0
      %1836 = vmatprep.mubr.bf16.mxu0 0
      %1837 = vmatmul.mubr.bf16.gmra.mrb[0].mxu0 %v1364
      %v1838 = vpop.f32.mrb[0].mxu0
      %v1839 = vadd.f32 0.0, %v1838
      %v1840 = vpop.f32.mrb[0].mxu0
      %v1841 = vpop.f32.mrb[0].mxu0
      %v1842 = vadd.f32 0.0, %v1841
      %v1843 = vpop.f32.mrb[0].mxu0
      %1844 = vmatprep.mubr.bf16.mxu0 0
      %1845 = vmatmul.mubr.bf16.gmra.mrb[0].mxu0 %v1366
      %v1846 = vpop.f32.mrb[0].mxu0
      %v1847 = vadd.f32 0.0, %v1846
      %v1848 = vpop.f32.mrb[0].mxu0
      %v1849 = vpop.f32.mrb[0].mxu0
      %v1850 = vadd.f32 0.0, %v1849
      %v1851 = vpop.f32.mrb[0].mxu0
      %1852 = vmatprep.mubr.bf16.mxu0 0
      %1853 = vmatmul.mubr.bf16.gmra.mrb[0].mxu0 %v1368
      %v1854 = vpop.f32.mrb[0].mxu0
      %v1855 = vadd.f32 0.0, %v1854
      %v1856 = vpop.f32.mrb[0].mxu0
      %v1857 = vpop.f32.mrb[0].mxu0
      %v1858 = vadd.f32 0.0, %v1857
      %v1859 = vpop.f32.mrb[0].mxu0
      %1860 = vmatprep.mubr.bf16.mxu0 0
      %1861 = vmatmul.mubr.bf16.gmra.mrb[0].mxu0 %v1370
      %v1862 = vpop.f32.mrb[0].mxu0
      %v1863 = vadd.f32 0.0, %v1862
      %v1864 = vpop.f32.mrb[0].mxu0
      %v1865 = vpop.f32.mrb[0].mxu0
      %v1866 = vadd.f32 0.0, %v1865
      %v1867 = vpop.f32.mrb[0].mxu0
      %1868 = vmatprep.mubr.bf16.mxu0 0
      %1869 = vmatmul.mubr.bf16.gmra.mrb[0].mxu0 %v1372
      %v1870 = vpop.f32.mrb[0].mxu0
      %v1871 = vadd.f32 0.0, %v1870
      %v1872 = vpop.f32.mrb[0].mxu0
      %v1873 = vpop.f32.mrb[0].mxu0
      %v1874 = vadd.f32 0.0, %v1873
      %v1875 = vpop.f32.mrb[0].mxu0
      %1876 = vmatprep.mubr.bf16.mxu0 0
      %1877 = vmatmul.mubr.bf16.gmra.mrb[0].mxu0 %v1374
      %v1878 = vpop.f32.mrb[0].mxu0
      %v1879 = vadd.f32 0.0, %v1878
      %v1880 = vpop.f32.mrb[0].mxu0
      %v1881 = vpop.f32.mrb[0].mxu0
      %v1882 = vadd.f32 0.0, %v1881
      %v1883 = vpop.f32.mrb[0].mxu0
      %1884 = vmatprep.mubr.bf16.mxu0 0
      %1885 = vmatmul.mubr.bf16.gmra.mrb[0].mxu0 %v1376
      %v1886 = vpop.f32.mrb[0].mxu0
      %v1887 = vadd.f32 0.0, %v1886
      %v1888 = vpop.f32.mrb[0].mxu0
      %v1889 = vpop.f32.mrb[0].mxu0
      %v1890 = vadd.f32 0.0, %v1889
      %v1891 = vpop.f32.mrb[0].mxu0
      %1892 = vmatprep.mubr.bf16.mxu0 0
      %1893 = vmatmul.mubr.bf16.gmra.mrb[0].mxu0 %v1378
      %v1894 = vpop.f32.mrb[0].mxu0
      %v1895 = vadd.f32 0.0, %v1894
      %v1896 = vpop.f32.mrb[0].mxu0
      %v1897 = vpop.f32.mrb[0].mxu0
      %v1898 = vadd.f32 0.0, %v1897
      %v1899 = vpop.f32.mrb[0].mxu0
      %1900 = vmatprep.mubr.bf16.mxu0 0
      %1901 = vmatmul.mubr.bf16.gmra.mrb[0].mxu0 %v1380
      %v1902 = vpop.f32.mrb[0].mxu0
      %v1903 = vadd.f32 0.0, %v1902
      %v1904 = vpop.f32.mrb[0].mxu0
      %v1905 = vpop.f32.mrb[0].mxu0
      %v1906 = vadd.f32 0.0, %v1905
      %v1907 = vpop.f32.mrb[0].mxu0
      %1908 = vmatprep.mubr.bf16.mxu0 0
      %1909 = vmatmul.mubr.bf16.gmra.mrb[0].mxu0 %v1751
      %v1910 = vpop.f32.mrb[0].mxu0
      %v1911 = vadd.f32 0.0, %v1910
      %v1912 = vpop.f32.mrb[0].mxu0
      %v1913 = vpop.f32.mrb[0].mxu0
      %v1914 = vadd.f32 0.0, %v1913
      %v1915 = vpop.f32.mrb[0].mxu0
      %1916 = vdwg.mxu0
      %v1917 = vadd.f32 %v1592, %v1791
      %v1918 = vadd.f32 %v1595, %v1794
      %v1919 = vadd.f32 %v1600, %v1799
      %v1920 = vadd.f32 %v1603, %v1802
      %v1921 = vadd.f32 %v1608, %v1807
      %v1922 = vadd.f32 %v1611, %v1810
      %v1923 = vadd.f32 %v1616, %v1815
      %v1924 = vadd.f32 %v1619, %v1818
      %v1925 = vadd.f32 %v1624, %v1823
      %v1926 = vadd.f32 %v1627, %v1826
      %v1927 = vadd.f32 %v1632, %v1831
      %v1928 = vadd.f32 %v1635, %v1834
      %v1929 = vadd.f32 %v1640, %v1839
      %v1930 = vadd.f32 %v1643, %v1842
      %v1931 = vadd.f32 %v1648, %v1847
      %v1932 = vadd.f32 %v1651, %v1850
      %v1933 = vadd.f32 %v1656, %v1855
      %v1934 = vadd.f32 %v1659, %v1858
      %v1935 = vadd.f32 %v1664, %v1863
      %v1936 = vadd.f32 %v1667, %v1866
      %v1937 = vadd.f32 %v1672, %v1871
      %v1938 = vadd.f32 %v1675, %v1874
      %v1939 = vadd.f32 %v1680, %v1879
      %v1940 = vadd.f32 %v1683, %v1882
      %v1941 = vadd.f32 %v1688, %v1887
      %v1942 = vadd.f32 %v1691, %v1890
      %v1943 = vadd.f32 %v1696, %v1895
      %v1944 = vadd.f32 %v1699, %v1898
      %v1945 = vadd.f32 %v1704, %v1903
      %v1946 = vadd.f32 %v1707, %v1906
      %v1947 = vadd.f32 %v1712, %v1911
      %v1948 = vadd.f32 %v1715, %v1914
      %v1949 = vpack.c.bf16 %v1918, %v1917
      %v1950 = vpack.c.bf16 %v1920, %v1919
      %v1951 = vpack.c.bf16 %v1922, %v1921
      %v1952 = vpack.c.bf16 %v1924, %v1923
      %v1953 = vpack.c.bf16 %v1926, %v1925
      %v1954 = vpack.c.bf16 %v1928, %v1927
      %v1955 = vpack.c.bf16 %v1930, %v1929
      %v1956 = vpack.c.bf16 %v1932, %v1931
      %v1957 = vpack.c.bf16 %v1934, %v1933
      %v1958 = vpack.c.bf16 %v1936, %v1935
      %v1959 = vpack.c.bf16 %v1938, %v1937
      %v1960 = vpack.c.bf16 %v1940, %v1939
      %v1961 = vpack.c.bf16 %v1942, %v1941
      %v1962 = vpack.c.bf16 %v1944, %v1943
      %v1963 = vpack.c.bf16 %v1946, %v1945
      %v1964 = vpack.c.bf16 %v1948, %v1947
      %v1981 = vunpack.c.l.b16 %v1949
      %v1982 = vunpack.c.h.b16 %v1949
      %v1983 = vunpack.c.l.b16 %v1950
      %v1984 = vunpack.c.h.b16 %v1950
      %v1985 = vunpack.c.l.b16 %v1951
      %v1986 = vunpack.c.h.b16 %v1951
      %v1987 = vunpack.c.l.b16 %v1952
      %v1988 = vunpack.c.h.b16 %v1952
      %v1989 = vunpack.c.l.b16 %v1953
      %v1990 = vunpack.c.h.b16 %v1953
      %v1991 = vunpack.c.l.b16 %v1954
      %v1992 = vunpack.c.h.b16 %v1954
      %v1993 = vunpack.c.l.b16 %v1955
      %v1994 = vunpack.c.h.b16 %v1955
      %v1995 = vunpack.c.l.b16 %v1956
      %v1996 = vunpack.c.h.b16 %v1956
      %v1997 = vunpack.c.l.b16 %v1957
      %v1998 = vunpack.c.h.b16 %v1957
      %v1999 = vunpack.c.l.b16 %v1958
      %v2000 = vunpack.c.h.b16 %v1958
      %v2001 = vunpack.c.l.b16 %v1959
      %v2002 = vunpack.c.h.b16 %v1959
      %v2003 = vunpack.c.l.b16 %v1960
      %v2004 = vunpack.c.h.b16 %v1960
      %v2005 = vunpack.c.l.b16 %v1961
      %v2006 = vunpack.c.h.b16 %v1961
      %v2007 = vunpack.c.l.b16 %v1962
      %v2008 = vunpack.c.h.b16 %v1962
      %v2009 = vunpack.c.l.b16 %v1963
      %v2010 = vunpack.c.h.b16 %v1963
      %v2011 = vunpack.c.l.b16 %v1964
      %v2012 = vunpack.c.h.b16 %v1964
      %v2013 = vpack.c.b16 %v1981, %v1981
      %v2014 = vpack.c.b16 %v1982, %v1982
      %v2015 = vpack.c.b16 %v1983, %v1983
      %v2016 = vpack.c.b16 %v1984, %v1984
      %v2017 = vpack.c.b16 %v1985, %v1985
      %v2018 = vpack.c.b16 %v1986, %v1986
      %v2019 = vpack.c.b16 %v1987, %v1987
      %v2020 = vpack.c.b16 %v1988, %v1988
      %v2021 = vpack.c.b16 %v1989, %v1989
      %v2022 = vpack.c.b16 %v1990, %v1990
      %v2023 = vpack.c.b16 %v1991, %v1991
      %v2024 = vpack.c.b16 %v1992, %v1992
      %v2025 = vpack.c.b16 %v1993, %v1993
      %v2026 = vpack.c.b16 %v1994, %v1994
      %v2027 = vpack.c.b16 %v1995, %v1995
      %v2028 = vpack.c.b16 %v1996, %v1996
      %v2029 = vpack.c.b16 %v1997, %v1997
      %v2030 = vpack.c.b16 %v1998, %v1998
      %v2031 = vpack.c.b16 %v1999, %v1999
      %v2032 = vpack.c.b16 %v2000, %v2000
      %v2033 = vpack.c.b16 %v2001, %v2001
      %v2034 = vpack.c.b16 %v2002, %v2002
      %v2035 = vpack.c.b16 %v2003, %v2003
      %v2036 = vpack.c.b16 %v2004, %v2004
      %v2037 = vpack.c.b16 %v2005, %v2005
      %v2038 = vpack.c.b16 %v2006, %v2006
      %v2039 = vpack.c.b16 %v2007, %v2007
      %v2040 = vpack.c.b16 %v2008, %v2008
      %v2041 = vpack.c.b16 %v2009, %v2009
      %v2042 = vpack.c.b16 %v2010, %v2010
      %v2043 = vpack.c.b16 %v2011, %v2011
      %v2044 = vpack.c.b16 %v2012, %v2012
      %vm2077 = vcmask 27648
      %2078 = vst.msk [vmem:[%s231] sm:$0xf] %vm2077, %v2013
      %2079 = vst.msk [vmem:[%s231 + $0x4] sm:$0xf] %vm2077, %v2014
      %2080 = vst.msk [vmem:[%s231 + $0x8] sm:$0xf] %vm2077, %v2015
      %2081 = vst.msk [vmem:[%s231 + $0xc] sm:$0xf] %vm2077, %v2016
      %2082 = vst.msk [vmem:[%s231 + $0x10] sm:$0xf] %vm2077, %v2017
      %2083 = vst.msk [vmem:[%s231 + $0x14] sm:$0xf] %vm2077, %v2018
      %2084 = vst.msk [vmem:[%s231 + $0x18] sm:$0xf] %vm2077, %v2019
      %2085 = vst.msk [vmem:[%s231 + $0x1c] sm:$0xf] %vm2077, %v2020
      %2086 = vst.msk [vmem:[%s231 + $0x20] sm:$0xf] %vm2077, %v2021
      %2087 = vst.msk [vmem:[%s231 + $0x24] sm:$0xf] %vm2077, %v2022
      %2088 = vst.msk [vmem:[%s231 + $0x28] sm:$0xf] %vm2077, %v2023
      %2089 = vst.msk [vmem:[%s231 + $0x2c] sm:$0xf] %vm2077, %v2024
      %2090 = vst.msk [vmem:[%s231 + $0x30] sm:$0xf] %vm2077, %v2025
      %2091 = vst.msk [vmem:[%s231 + $0x34] sm:$0xf] %vm2077, %v2026
      %2092 = vst.msk [vmem:[%s231 + $0x38] sm:$0xf] %vm2077, %v2027
      %2093 = vst.msk [vmem:[%s231 + $0x3c] sm:$0xf] %vm2077, %v2028
      %2094 = vst.msk [vmem:[%s231 + $0x40] sm:$0xf] %vm2077, %v2029
      %2095 = vst.msk [vmem:[%s231 + $0x44] sm:$0xf] %vm2077, %v2030
      %2096 = vst.msk [vmem:[%s231 + $0x48] sm:$0xf] %vm2077, %v2031
      %2097 = vst.msk [vmem:[%s231 + $0x4c] sm:$0xf] %vm2077, %v2032
      %2098 = vst.msk [vmem:[%s231 + $0x50] sm:$0xf] %vm2077, %v2033
      %2099 = vst.msk [vmem:[%s231 + $0x54] sm:$0xf] %vm2077, %v2034
      %2100 = vst.msk [vmem:[%s231 + $0x58] sm:$0xf] %vm2077, %v2035
      %2101 = vst.msk [vmem:[%s231 + $0x5c] sm:$0xf] %vm2077, %v2036
      %2102 = vst.msk [vmem:[%s231 + $0x60] sm:$0xf] %vm2077, %v2037
      %2103 = vst.msk [vmem:[%s231 + $0x64] sm:$0xf] %vm2077, %v2038
      %2104 = vst.msk [vmem:[%s231 + $0x68] sm:$0xf] %vm2077, %v2039
      %2105 = vst.msk [vmem:[%s231 + $0x6c] sm:$0xf] %vm2077, %v2040
      %2106 = vst.msk [vmem:[%s231 + $0x70] sm:$0xf] %vm2077, %v2041
      %2107 = vst.msk [vmem:[%s231 + $0x74] sm:$0xf] %vm2077, %v2042
      %2108 = vst.msk [vmem:[%s231 + $0x78] sm:$0xf] %vm2077, %v2043
      %2109 = vst.msk [vmem:[%s231 + $0x7c] sm:$0xf] %vm2077, %v2044
      %v2110 = vsel %vm1248, %v1917, 0.0
      %v2111 = vsel %vm1248, %v1918, 0.0
      %v2112 = vadd.f32 %v2110, %v2111
      %v2113 = vsel %vm1248, %v1919, 0.0
      %v2114 = vadd.f32 %v2112, %v2113
      %v2115 = vsel %vm1248, %v1920, 0.0
      %v2116 = vadd.f32 %v2114, %v2115
      %v2117 = vsel %vm1248, %v1921, 0.0
      %v2118 = vadd.f32 %v2116, %v2117
      %v2119 = vsel %vm1248, %v1922, 0.0
      %v2120 = vadd.f32 %v2118, %v2119
      %v2121 = vsel %vm1248, %v1923, 0.0
      %v2122 = vadd.f32 %v2120, %v2121
      %v2123 = vsel %vm1248, %v1924, 0.0
      %v2124 = vadd.f32 %v2122, %v2123
      %v2125 = vsel %vm1248, %v1925, 0.0
      %v2126 = vadd.f32 %v2124, %v2125
      %v2127 = vsel %vm1248, %v1926, 0.0
      %v2128 = vadd.f32 %v2126, %v2127
      %v2129 = vsel %vm1248, %v1927, 0.0
      %v2130 = vadd.f32 %v2128, %v2129
      %v2131 = vsel %vm1248, %v1928, 0.0
      %v2132 = vadd.f32 %v2130, %v2131
      %v2133 = vsel %vm1248, %v1929, 0.0
      %v2134 = vadd.f32 %v2132, %v2133
      %v2135 = vsel %vm1248, %v1930, 0.0
      %v2136 = vadd.f32 %v2134, %v2135
      %v2137 = vsel %vm1248, %v1931, 0.0
      %v2138 = vadd.f32 %v2136, %v2137
      %v2139 = vsel %vm1248, %v1932, 0.0
      %v2140 = vadd.f32 %v2138, %v2139
      %v2141 = vsel %vm1248, %v1933, 0.0
      %v2142 = vadd.f32 %v2140, %v2141
      %v2143 = vsel %vm1248, %v1934, 0.0
      %v2144 = vadd.f32 %v2142, %v2143
      %v2145 = vsel %vm1248, %v1935, 0.0
      %v2146 = vadd.f32 %v2144, %v2145
      %v2147 = vsel %vm1248, %v1936, 0.0
      %v2148 = vadd.f32 %v2146, %v2147
      %v2149 = vsel %vm1248, %v1937, 0.0
      %v2150 = vadd.f32 %v2148, %v2149
      %v2151 = vsel %vm1248, %v1938, 0.0
      %v2152 = vadd.f32 %v2150, %v2151
      %v2153 = vsel %vm1248, %v1939, 0.0
      %v2154 = vadd.f32 %v2152, %v2153
      %v2155 = vsel %vm1248, %v1940, 0.0
      %v2156 = vadd.f32 %v2154, %v2155
      %v2157 = vsel %vm1248, %v1941, 0.0
      %v2158 = vadd.f32 %v2156, %v2157
      %v2159 = vsel %vm1248, %v1942, 0.0
      %v2160 = vadd.f32 %v2158, %v2159
      %v2161 = vsel %vm1248, %v1943, 0.0
      %v2162 = vadd.f32 %v2160, %v2161
      %v2163 = vsel %vm1248, %v1944, 0.0
      %v2164 = vadd.f32 %v2162, %v2163
      %v2165 = vsel %vm1248, %v1945, 0.0
      %v2166 = vadd.f32 %v2164, %v2165
      %v2167 = vsel %vm1248, %v1946, 0.0
      %v2168 = vadd.f32 %v2166, %v2167
      %v2169 = vsel %vm1248, %v1947, 0.0
      %v2170 = vadd.f32 %v2168, %v2169
      %v2171 = vsel %vm1248, %v1948, 0.0
      %v2172 = vadd.f32 %v2170, %v2171
      %v2173 = vrot.slane %v2172, 4
      %v2174 = vadd.f32 %v2172, %v2173
      %v2175 = vrot.slane %v2174, 2
      %v2176 = vadd.f32 %v2174, %v2175
      %v2177 = vrot.slane %v2176, 1
      %v2178 = vadd.f32 %v2176, %v2177
      %vm2179 = vcmask 24576
      %2180 = vst.msk [vmem:[%s235] sm:$0x1] %vm2179, %v2178
      %v2181 = vmul.f32 %v1917, %v1917
      %v2182 = vmul.f32 %v1918, %v1918
      %v2183 = vmul.f32 %v1919, %v1919
      %v2184 = vmul.f32 %v1920, %v1920
      %v2185 = vmul.f32 %v1921, %v1921
      %v2186 = vmul.f32 %v1922, %v1922
      %v2187 = vmul.f32 %v1923, %v1923
      %v2188 = vmul.f32 %v1924, %v1924
      %v2189 = vmul.f32 %v1925, %v1925
      %v2190 = vmul.f32 %v1926, %v1926
      %v2191 = vmul.f32 %v1927, %v1927
      %v2192 = vmul.f32 %v1928, %v1928
      %v2193 = vmul.f32 %v1929, %v1929
      %v2194 = vmul.f32 %v1930, %v1930
      %v2195 = vmul.f32 %v1931, %v1931
      %v2196 = vmul.f32 %v1932, %v1932
      %v2197 = vmul.f32 %v1933, %v1933
      %v2198 = vmul.f32 %v1934, %v1934
      %v2199 = vmul.f32 %v1935, %v1935
      %v2200 = vmul.f32 %v1936, %v1936
      %v2201 = vmul.f32 %v1937, %v1937
      %v2202 = vmul.f32 %v1938, %v1938
      %v2203 = vmul.f32 %v1939, %v1939
      %v2204 = vmul.f32 %v1940, %v1940
      %v2205 = vmul.f32 %v1941, %v1941
      %v2206 = vmul.f32 %v1942, %v1942
      %v2207 = vmul.f32 %v1943, %v1943
      %v2208 = vmul.f32 %v1944, %v1944
      %v2209 = vmul.f32 %v1945, %v1945
      %v2210 = vmul.f32 %v1946, %v1946
      %v2211 = vmul.f32 %v1947, %v1947
      %v2212 = vmul.f32 %v1948, %v1948
      %v2213 = vsel %vm1248, %v2181, 0.0
      %v2214 = vsel %vm1248, %v2182, 0.0
      %v2215 = vadd.f32 %v2213, %v2214
      %v2216 = vsel %vm1248, %v2183, 0.0
      %v2217 = vadd.f32 %v2215, %v2216
      %v2218 = vsel %vm1248, %v2184, 0.0
      %v2219 = vadd.f32 %v2217, %v2218
      %v2220 = vsel %vm1248, %v2185, 0.0
      %v2221 = vadd.f32 %v2219, %v2220
      %v2222 = vsel %vm1248, %v2186, 0.0
      %v2223 = vadd.f32 %v2221, %v2222
      %v2224 = vsel %vm1248, %v2187, 0.0
      %v2225 = vadd.f32 %v2223, %v2224
      %v2226 = vsel %vm1248, %v2188, 0.0
      %v2227 = vadd.f32 %v2225, %v2226
      %v2228 = vsel %vm1248, %v2189, 0.0
      %v2229 = vadd.f32 %v2227, %v2228
      %v2230 = vsel %vm1248, %v2190, 0.0
      %v2231 = vadd.f32 %v2229, %v2230
      %v2232 = vsel %vm1248, %v2191, 0.0
      %v2233 = vadd.f32 %v2231, %v2232
      %v2234 = vsel %vm1248, %v2192, 0.0
      %v2235 = vadd.f32 %v2233, %v2234
      %v2236 = vsel %vm1248, %v2193, 0.0
      %v2237 = vadd.f32 %v2235, %v2236
      %v2238 = vsel %vm1248, %v2194, 0.0
      %v2239 = vadd.f32 %v2237, %v2238
      %v2240 = vsel %vm1248, %v2195, 0.0
      %v2241 = vadd.f32 %v2239, %v2240
      %v2242 = vsel %vm1248, %v2196, 0.0
      %v2243 = vadd.f32 %v2241, %v2242
      %v2244 = vsel %vm1248, %v2197, 0.0
      %v2245 = vadd.f32 %v2243, %v2244
      %v2246 = vsel %vm1248, %v2198, 0.0
      %v2247 = vadd.f32 %v2245, %v2246
      %v2248 = vsel %vm1248, %v2199, 0.0
      %v2249 = vadd.f32 %v2247, %v2248
      %v2250 = vsel %vm1248, %v2200, 0.0
      %v2251 = vadd.f32 %v2249, %v2250
      %v2252 = vsel %vm1248, %v2201, 0.0
      %v2253 = vadd.f32 %v2251, %v2252
      %v2254 = vsel %vm1248, %v2202, 0.0
      %v2255 = vadd.f32 %v2253, %v2254
      %v2256 = vsel %vm1248, %v2203, 0.0
      %v2257 = vadd.f32 %v2255, %v2256
      %v2258 = vsel %vm1248, %v2204, 0.0
      %v2259 = vadd.f32 %v2257, %v2258
      %v2260 = vsel %vm1248, %v2205, 0.0
      %v2261 = vadd.f32 %v2259, %v2260
      %v2262 = vsel %vm1248, %v2206, 0.0
      %v2263 = vadd.f32 %v2261, %v2262
      %v2264 = vsel %vm1248, %v2207, 0.0
      %v2265 = vadd.f32 %v2263, %v2264
      %v2266 = vsel %vm1248, %v2208, 0.0
      %v2267 = vadd.f32 %v2265, %v2266
      %v2268 = vsel %vm1248, %v2209, 0.0
      %v2269 = vadd.f32 %v2267, %v2268
      %v2270 = vsel %vm1248, %v2210, 0.0
      %v2271 = vadd.f32 %v2269, %v2270
      %v2272 = vsel %vm1248, %v2211, 0.0
      %v2273 = vadd.f32 %v2271, %v2272
      %v2274 = vsel %vm1248, %v2212, 0.0
      %v2275 = vadd.f32 %v2273, %v2274
      %v2276 = vrot.slane %v2275, 4
      %v2277 = vadd.f32 %v2275, %v2276
      %v2278 = vrot.slane %v2277, 2
      %v2279 = vadd.f32 %v2277, %v2278
      %v2280 = vrot.slane %v2279, 1
      %v2281 = vadd.f32 %v2279, %v2280
      %2282 = vst.msk [vmem:[%s235 + $0x1] sm:$0x1] %vm2179, %v2281
      %p2283 = scmp.lt.s32.totalorder %s17, 1
      %s2284 = scalar_select %p2283, %s17, 1
      %s2285 = smul.addr %s2284, 32
      %s2286 = smul.addr %s2285, 4
      %s2287 = scalar_lea.vmem %s4, %s2286
      %p2288 = scmp.lt.s32.totalorder %s17, 1
      %s2289 = scalar_select %p2288, %s17, 1
      %s2290 = smul.addr %s2289, 2
      %s2291 = scalar_lea.vmem %s5, %s2290
      // Predicated region
      $region37: #{basic_block_forward_nhwc.4} parent=35 // pred_check
        %p2292 = pneg %p124
      $region38: #{basic_block_forward_nhwc.4} parent=35 // pred_check_branch
        %2294 = sbr.rel (%p2292) target = $region40
      $region39: #{basic_block_forward_nhwc.4} parent=35 // pred_region
        _
      $region40: #{basic_block_forward_nhwc.4} parent=35 // pred_fallthru
        _
      // Predicated region
      $region41: #{basic_block_forward_nhwc.4} parent=35 // pred_check
        %p2295 = pneg %p150
      $region42: #{basic_block_forward_nhwc.4} parent=35 // pred_check_branch
        %2297 = sbr.rel (%p2295) target = $region44
      $region43: #{basic_block_forward_nhwc.4} parent=35 // pred_region
        _
      $region44: #{basic_block_forward_nhwc.4} parent=35 // pred_fallthru
        _
    $region36: #{basic_block_forward_nhwc.4} parent=5 // pred_fallthru
      _
    %p2298 = scmp.le.s32.totalorder 2, %s12
    // Predicated region
    $region45: #{basic_block_forward_nhwc.4} parent=5 // pred_check
      %p2299 = pneg %p2298
    $region46: #{basic_block_forward_nhwc.4} parent=5 // pred_check_branch
      %2301 = sbr.rel (%p2299) target = $region48
    $region47: #{basic_block_forward_nhwc.4} parent=5 // pred_region
      %s2302 = ssub.s32 %s12, 2
      // Predicated region
      $region49: #{basic_block_forward_nhwc.4} parent=47 // pred_check
        %p2303 = pneg %p130
      $region50: #{basic_block_forward_nhwc.4} parent=47 // pred_check_branch
        %2305 = sbr.rel (%p2303) target = $region52
      $region51: #{basic_block_forward_nhwc.4} parent=47 // pred_region
        %p2306 = scmp.lt.s32.totalorder %s18, 1
        %s2307 = scalar_select %p2306, %s18, 1
        %s2308 = smul.addr %s2307, 32
        %s2309 = smul.addr %s2308, 4
        %s2310 = scalar_lea.vmem %s4, %s2309
      $region52: #{basic_block_forward_nhwc.4} parent=47 // pred_fallthru
        _
      // Predicated region
      $region53: #{basic_block_forward_nhwc.4} parent=47 // pred_check
        %p2311 = pneg %p156
      $region54: #{basic_block_forward_nhwc.4} parent=47 // pred_check_branch
        %2313 = sbr.rel (%p2311) target = $region56
      $region55: #{basic_block_forward_nhwc.4} parent=47 // pred_region
        %p2314 = scmp.lt.s32.totalorder %s18, 1
        %s2315 = scalar_select %p2314, %s18, 1
        %s2316 = smul.addr %s2315, 2
        %s2317 = scalar_lea.vmem %s5, %s2316
      $region56: #{basic_block_forward_nhwc.4} parent=47 // pred_fallthru
        _
    $region48: #{basic_block_forward_nhwc.4} parent=5 // pred_fallthru
      _
  $region6: #{basic_block_forward_nhwc.4} parent=0 // loop_footer
    %s16 = sadd.s32 1, %s12
  $region7: #{basic_block_forward_nhwc.4} parent=0 // loop_footer_branch
    %11 = sbr.rel target = $region3
  $region8: #{basic_block_forward_nhwc.4} parent=0 // loop_exit
    _

// kernel: basic_block_forward_nhwc.3
$region0: #{basic_block_forward_nhwc.3}
  #allocation0 [shape = 'u32[]', space=smem, size = 0x4, offset = 0x4, fixed_abs, tag = 'smem constant byte address 0x4 - core index']
  #allocation1 [shape = 'u32[144,128]{1,0:T(1,128)}', space=vmem, size = 0x12000, scoped, tag = 'internal scratch']
  %s0 = inlined_call_operand.vmem [shape: bf16[2,18,18,4], index: 0, kind: input, shape index: {}]
  %s1 = inlined_call_operand.vmem [shape: bf16[3,12,4], index: 1, kind: input, shape index: {}]
  %s2 = inlined_call_operand.vmem [shape: bf16[2,18,18,4], index: 2, kind: output, shape index: {0}]
  %s3 = inlined_call_operand.vmem [shape: f32[2,2,4], index: 3, kind: output, shape index: {1}]
  %4 = xla_tuple %s2, %s3
  %s5 = sld [smem:[#allocation0]]
  $region49: #{basic_block_forward_nhwc.3} parent=0
    _
  %s7 = ssub.s32 1, %s5
  %s8 = scalar_select 0, %s7, %s5
  loop: start=0, step=1, limit=4
  $region2: #{basic_block_forward_nhwc.3} parent=0 // loop_pre_header
    _
  $region3: #{basic_block_forward_nhwc.3} parent=0 // loop_header
    %s10 = sphi 0, %s14
    %p11 = scmp.ge.s32.totalorder %s10, 4
    %s20 = sphi 0, %s22
    %s23 = sphi 0, %s20
    %s24 = sphi 0, %s23
    %s40 = sphi 0, %s24
    %s44 = sphi 0, %s44
    %s46 = sphi 0, %s44
    %s47 = sphi 0, %s46
    %s61 = sphi 0, %s47
    %s67 = sphi 0, %s69
    %s70 = sphi 0, %s67
    %s71 = sphi 0, %s70
    %s87 = sphi 0, %s71
    %s93 = sphi 0, %s95
    %s96 = sphi 0, %s93
    %s97 = sphi 0, %s96
    %s113 = sphi 0, %s97
  $region4: #{basic_block_forward_nhwc.3} parent=0 // loop_header_branch
    %13 = sbr.rel (%p11) target = $region8
  $region5: #{basic_block_forward_nhwc.3} parent=0 // loop_body
    %s15 = ssub.s32 %s10, 1
    %s16 = ssub.s32 %s10, 2
    %s17 = sadd.s32 %s10, 1
    %s18 = ssub.s32 %s10, %s17
    %p19 = scmp.eq.s32.totalorder %s18, 0
    %s21 = sadd.s32 %s20, 1
    %s22 = scalar_select %p19, %s20, %s21
    %p25 = pneg %p19
    %p26 = scmp.eq.s32.totalorder %s10, 1
    %p27 = por %p25, %p26
    %p28 = scmp.ne.s32.totalorder %s20, %s23
    %p29 = scmp.eq.s32.totalorder %s10, 0
    %p30 = por %p28, %p29
    %p31 = scmp.ne.s32.totalorder %s20, %s23
    %p32 = scmp.eq.s32.totalorder %s15, 1
    %p33 = por %p31, %p32
    %p34 = scmp.ne.s32.totalorder %s23, %s24
    %p35 = scmp.eq.s32.totalorder %s15, 0
    %p36 = por %p34, %p35
    %p37 = scmp.ne.s32.totalorder %s23, %s24
    %p38 = scmp.eq.s32.totalorder %s16, 1
    %p39 = por %p37, %p38
    %p41 = scmp.ne.s32.totalorder %s24, %s40
    %p42 = scmp.eq.s32.totalorder %s16, 0
    %p43 = por %p41, %p42
    %s45 = sadd.s32 %s44, 1
    %p48 = scmp.eq.s32.totalorder %s10, 1
    %p49 = scmp.ne.s32.totalorder %s44, %s46
    %p50 = scmp.eq.s32.totalorder %s10, 0
    %p51 = por %p49, %p50
    %p52 = scmp.ne.s32.totalorder %s44, %s46
    %p53 = scmp.eq.s32.totalorder %s15, 1
    %p54 = por %p52, %p53
    %p55 = scmp.ne.s32.totalorder %s46, %s47
    %p56 = scmp.eq.s32.totalorder %s15, 0
    %p57 = por %p55, %p56
    %p58 = scmp.ne.s32.totalorder %s46, %s47
    %p59 = scmp.eq.s32.totalorder %s16, 1
    %p60 = por %p58, %p59
    %p62 = scmp.ne.s32.totalorder %s47, %s61
    %p63 = scmp.eq.s32.totalorder %s16, 0
    %p64 = por %p62, %p63
    %s65 = ssub.s32 %s10, %s17
    %p66 = scmp.eq.s32.totalorder %s65, 0
    %s68 = sadd.s32 %s67, 1
    %s69 = scalar_select %p66, %s67, %s68
    %p72 = pneg %p66
    %p73 = scmp.eq.s32.totalorder %s10, 1
    %p74 = por %p72, %p73
    %p75 = scmp.ne.s32.totalorder %s67, %s70
    %p76 = scmp.eq.s32.totalorder %s10, 0
    %p77 = por %p75, %p76
    %p78 = scmp.ne.s32.totalorder %s67, %s70
    %p79 = scmp.eq.s32.totalorder %s15, 1
    %p80 = por %p78, %p79
    %p81 = scmp.ne.s32.totalorder %s70, %s71
    %p82 = scmp.eq.s32.totalorder %s15, 0
    %p83 = por %p81, %p82
    %p84 = scmp.ne.s32.totalorder %s70, %s71
    %p85 = scmp.eq.s32.totalorder %s16, 1
    %p86 = por %p84, %p85
    %p88 = scmp.ne.s32.totalorder %s71, %s87
    %p89 = scmp.eq.s32.totalorder %s16, 0
    %p90 = por %p88, %p89
    %s91 = ssub.s32 %s10, %s17
    %p92 = scmp.eq.s32.totalorder %s91, 0
    %s94 = sadd.s32 %s93, 1
    %s95 = scalar_select %p92, %s93, %s94
    %p98 = pneg %p92
    %p99 = scmp.eq.s32.totalorder %s10, 1
    %p100 = por %p98, %p99
    %p101 = scmp.ne.s32.totalorder %s93, %s96
    %p102 = scmp.eq.s32.totalorder %s10, 0
    %p103 = por %p101, %p102
    %p104 = scmp.ne.s32.totalorder %s93, %s96
    %p105 = scmp.eq.s32.totalorder %s15, 1
    %p106 = por %p104, %p105
    %p107 = scmp.ne.s32.totalorder %s96, %s97
    %p108 = scmp.eq.s32.totalorder %s15, 0
    %p109 = por %p107, %p108
    %p110 = scmp.ne.s32.totalorder %s96, %s97
    %p111 = scmp.eq.s32.totalorder %s16, 1
    %p112 = por %p110, %p111
    %p114 = scmp.ne.s32.totalorder %s97, %s113
    %p115 = scmp.eq.s32.totalorder %s16, 0
    %p116 = por %p114, %p115
    %p117 = scmp.le.s32.totalorder 1, %s10
    %p118 = scmp.lt.s32.totalorder %s10, 3
    %p119 = pnand %p117, %p118
    %p120 = pneg %p119
    // Predicated region
    $region9: #{basic_block_forward_nhwc.3} parent=5 // pred_check
      _
    $region10: #{basic_block_forward_nhwc.3} parent=5 // pred_check_branch
      %122 = sbr.rel (%p119) target = $region12
    $region11: #{basic_block_forward_nhwc.3} parent=5 // pred_region
      %s123 = ssub.s32 %s10, 1
      // Predicated region
      $region13: #{basic_block_forward_nhwc.3} parent=11 // pred_check
        %p124 = pneg %p57
      $region14: #{basic_block_forward_nhwc.3} parent=11 // pred_check_branch
        %126 = sbr.rel (%p124) target = $region16
      $region15: #{basic_block_forward_nhwc.3} parent=11 // pred_region
        _
      $region16: #{basic_block_forward_nhwc.3} parent=11 // pred_fallthru
        _
    $region12: #{basic_block_forward_nhwc.3} parent=5 // pred_fallthru
      _
    %p127 = scmp.lt.s32.totalorder %s10, 2
    // Predicated region
    $region17: #{basic_block_forward_nhwc.3} parent=5 // pred_check
      %p128 = pneg %p127
    $region18: #{basic_block_forward_nhwc.3} parent=5 // pred_check_branch
      %130 = sbr.rel (%p128) target = $region20
    $region19: #{basic_block_forward_nhwc.3} parent=5 // pred_region
      // Predicated region
      $region21: #{basic_block_forward_nhwc.3} parent=19 // pred_check
        %p131 = pneg %p30
      $region22: #{basic_block_forward_nhwc.3} parent=19 // pred_check_branch
        %133 = sbr.rel (%p131) target = $region24
      $region23: #{basic_block_forward_nhwc.3} parent=19 // pred_region
        %p134 = scmp.lt.s32.totalorder %s10, 1
        %s135 = scalar_select %p134, %s10, 1
        %s136 = smul.addr %s135, 54
        %s137 = smul.addr %s136, 4
        %s138 = scalar_lea.vmem %s0, %s137
      $region24: #{basic_block_forward_nhwc.3} parent=19 // pred_fallthru
        _
    $region20: #{basic_block_forward_nhwc.3} parent=5 // pred_fallthru
      _
    %p139 = scmp.le.s32.totalorder 1, %s10
    %p140 = scmp.lt.s32.totalorder %s10, 3
    %p141 = pnand %p139, %p140
    %p142 = pneg %p141
    // Predicated region
    $region25: #{basic_block_forward_nhwc.3} parent=5 // pred_check
      _
    $region26: #{basic_block_forward_nhwc.3} parent=5 // pred_check_branch
      %144 = sbr.rel (%p141) target = $region28
    $region27: #{basic_block_forward_nhwc.3} parent=5 // pred_region
      %s145 = ssub.s32 %s10, 1
      %p146 = scmp.lt.s32.totalorder %s15, 1
      %s147 = scalar_select %p146, %s15, 1
      %s148 = smul.addr %s147, 54
      %s149 = smul.addr %s148, 4
      %s150 = scalar_lea.vmem %s0, %s149
      %p151 = pneg %p36
      %p152 = pneg %p33
      %p153 = pneg %p57
      %p154 = pneg %p54
      %p155 = pneg %p83
      %p156 = pneg %p80
      %p157 = scmp.lt.s32.totalorder %s15, 1
      %s158 = scalar_select %p157, %s15, 1
      %s159 = smul.addr %s158, 54
      %s160 = smul.addr %s159, 4
      %s161 = scalar_lea.vmem %s2, %s160
      %p162 = pneg %p109
      %p163 = pneg %p106
      %p164 = scmp.lt.s32.totalorder %s15, 1
      %s165 = scalar_select %p164, %s15, 1
      %s166 = smul.addr %s165, 2
      %s167 = scalar_lea.vmem %s3, %s166
      %p168 = scmp.lt.s32.totalorder %s15, 1
      %s169 = scalar_select %p168, %s15, 1
      %s170 = smul.addr %s169, 54
      %s171 = smul.addr %s170, 4
      %s172 = scalar_lea.vmem %s0, %s171
      %p173 = scmp.lt.s32.totalorder %s15, 1
      %s174 = scalar_select %p173, %s15, 1
      %s175 = smul.addr %s174, 54
      %s176 = smul.addr %s175, 4
      %s177 = scalar_lea.vmem %s2, %s176
      %p178 = scmp.lt.s32.totalorder %s15, 1
      %s179 = scalar_select %p178, %s15, 1
      %s180 = smul.addr %s179, 2
      %s181 = scalar_lea.vmem %s3, %s180
      %v183 = vld [vmem:[%s172] sm:$0xf]
      %v184 = vld [vmem:[%s172 + $0x4] sm:$0xf]
      %v185 = vld [vmem:[%s172 + $0x8] sm:$0x1]
      %v186 = vld [vmem:[%s172 + $0xc] sm:$0xf]
      %v187 = vld [vmem:[%s172 + $0x10] sm:$0xf]
      %v188 = vld [vmem:[%s172 + $0x14] sm:$0x1]
      %v189 = vld [vmem:[%s172 + $0x18] sm:$0xf]
      %v190 = vld [vmem:[%s172 + $0x1c] sm:$0xf]
      %v191 = vld [vmem:[%s172 + $0x20] sm:$0x1]
      %v192 = vld [vmem:[%s172 + $0x24] sm:$0xf]
      %v193 = vld [vmem:[%s172 + $0x28] sm:$0xf]
      %v194 = vld [vmem:[%s172 + $0x2c] sm:$0x1]
      %v195 = vld [vmem:[%s172 + $0x30] sm:$0xf]
      %v196 = vld [vmem:[%s172 + $0x34] sm:$0xf]
      %v197 = vld [vmem:[%s172 + $0x38] sm:$0x1]
      %v198 = vld [vmem:[%s172 + $0x3c] sm:$0xf]
      %v199 = vld [vmem:[%s172 + $0x40] sm:$0xf]
      %v200 = vld [vmem:[%s172 + $0x44] sm:$0x1]
      %v201 = vld [vmem:[%s172 + $0x48] sm:$0xf]
      %v202 = vld [vmem:[%s172 + $0x4c] sm:$0xf]
      %v203 = vld [vmem:[%s172 + $0x50] sm:$0x1]
      %v204 = vld [vmem:[%s172 + $0x54] sm:$0xf]
      %v205 = vld [vmem:[%s172 + $0x58] sm:$0xf]
      %v206 = vld [vmem:[%s172 + $0x5c] sm:$0x1]
      %v207 = vld [vmem:[%s172 + $0x60] sm:$0xf]
      %v208 = vld [vmem:[%s172 + $0x64] sm:$0xf]
      %v209 = vld [vmem:[%s172 + $0x68] sm:$0x1]
      %v210 = vld [vmem:[%s172 + $0x6c] sm:$0xf]
      %v211 = vld [vmem:[%s172 + $0x70] sm:$0xf]
      %v212 = vld [vmem:[%s172 + $0x74] sm:$0x1]
      %v213 = vld [vmem:[%s172 + $0x78] sm:$0xf]
      %v214 = vld [vmem:[%s172 + $0x7c] sm:$0xf]
      %v215 = vld [vmem:[%s172 + $0x80] sm:$0x1]
      %v216 = vld [vmem:[%s172 + $0x84] sm:$0xf]
      %v217 = vld [vmem:[%s172 + $0x88] sm:$0xf]
      %v218 = vld [vmem:[%s172 + $0x8c] sm:$0x1]
      %v219 = vld [vmem:[%s172 + $0x90] sm:$0xf]
      %v220 = vld [vmem:[%s172 + $0x94] sm:$0xf]
      %v221 = vld [vmem:[%s172 + $0x98] sm:$0x1]
      %v222 = vld [vmem:[%s172 + $0x9c] sm:$0xf]
      %v223 = vld [vmem:[%s172 + $0xa0] sm:$0xf]
      %v224 = vld [vmem:[%s172 + $0xa4] sm:$0x1]
      %v225 = vld [vmem:[%s172 + $0xa8] sm:$0xf]
      %v226 = vld [vmem:[%s172 + $0xac] sm:$0xf]
      %v227 = vld [vmem:[%s172 + $0xb0] sm:$0x1]
      %v228 = vld [vmem:[%s172 + $0xb4] sm:$0xf]
      %v229 = vld [vmem:[%s172 + $0xb8] sm:$0xf]
      %v230 = vld [vmem:[%s172 + $0xbc] sm:$0x1]
      %v231 = vld [vmem:[%s172 + $0xc0] sm:$0xf]
      %v232 = vld [vmem:[%s172 + $0xc4] sm:$0xf]
      %v233 = vld [vmem:[%s172 + $0xc8] sm:$0x1]
      %v234 = vld [vmem:[%s172 + $0xcc] sm:$0xf]
      %v235 = vld [vmem:[%s172 + $0xd0] sm:$0xf]
      %v236 = vld [vmem:[%s172 + $0xd4] sm:$0x1]
      %v269 = vunpack.c.l.b16 %v183
      %v270 = vunpack.c.l.b16 %v184
      %v271 = vunpack.c.l.b16 %v186
      %v272 = vunpack.c.l.b16 %v187
      %v273 = vunpack.c.l.b16 %v189
      %v274 = vunpack.c.l.b16 %v190
      %v275 = vunpack.c.l.b16 %v192
      %v276 = vunpack.c.l.b16 %v193
      %v277 = vunpack.c.l.b16 %v195
      %v278 = vunpack.c.l.b16 %v196
      %v279 = vunpack.c.l.b16 %v198
      %v280 = vunpack.c.l.b16 %v199
      %v281 = vunpack.c.l.b16 %v201
      %v282 = vunpack.c.l.b16 %v202
      %v283 = vunpack.c.l.b16 %v204
      %v284 = vunpack.c.l.b16 %v205
      %v285 = vunpack.c.l.b16 %v207
      %v286 = vunpack.c.l.b16 %v208
      %v287 = vunpack.c.l.b16 %v210
      %v288 = vunpack.c.l.b16 %v211
      %v289 = vunpack.c.l.b16 %v213
      %v290 = vunpack.c.l.b16 %v214
      %v291 = vunpack.c.l.b16 %v216
      %v292 = vunpack.c.l.b16 %v217
      %v293 = vunpack.c.l.b16 %v219
      %v294 = vunpack.c.l.b16 %v220
      %v295 = vunpack.c.l.b16 %v222
      %v296 = vunpack.c.l.b16 %v223
      %v297 = vunpack.c.l.b16 %v225
      %v298 = vunpack.c.l.b16 %v226
      %v299 = vunpack.c.l.b16 %v228
      %v300 = vunpack.c.l.b16 %v229
      %v301 = vpack.c.b16 %v270, %v269
      %v302 = vpack.c.b16 %v272, %v271
      %v303 = vpack.c.b16 %v274, %v273
      %v304 = vpack.c.b16 %v276, %v275
      %v305 = vpack.c.b16 %v278, %v277
      %v306 = vpack.c.b16 %v280, %v279
      %v307 = vpack.c.b16 %v282, %v281
      %v308 = vpack.c.b16 %v284, %v283
      %v309 = vpack.c.b16 %v286, %v285
      %v310 = vpack.c.b16 %v288, %v287
      %v311 = vpack.c.b16 %v290, %v289
      %v312 = vpack.c.b16 %v292, %v291
      %v313 = vpack.c.b16 %v294, %v293
      %v314 = vpack.c.b16 %v296, %v295
      %v315 = vpack.c.b16 %v298, %v297
      %v316 = vpack.c.b16 %v300, %v299
      %v333 = vunpack.c.l.b16 %v185
      %v334 = vunpack.c.l.b16 %v188
      %v335 = vunpack.c.l.b16 %v191
      %v336 = vunpack.c.l.b16 %v194
      %v337 = vunpack.c.l.b16 %v197
      %v338 = vunpack.c.l.b16 %v200
      %v339 = vunpack.c.l.b16 %v203
      %v340 = vunpack.c.l.b16 %v206
      %v341 = vunpack.c.l.b16 %v209
      %v342 = vunpack.c.l.b16 %v212
      %v343 = vunpack.c.l.b16 %v215
      %v344 = vunpack.c.l.b16 %v218
      %v345 = vunpack.c.l.b16 %v221
      %v346 = vunpack.c.l.b16 %v224
      %v347 = vunpack.c.l.b16 %v227
      %v348 = vunpack.c.l.b16 %v230
      %v349 = vpack.c.b16 %v333, %v333
      %v350 = vpack.c.b16 %v334, %v334
      %v351 = vpack.c.b16 %v335, %v335
      %v352 = vpack.c.b16 %v336, %v336
      %v353 = vpack.c.b16 %v337, %v337
      %v354 = vpack.c.b16 %v338, %v338
      %v355 = vpack.c.b16 %v339, %v339
      %v356 = vpack.c.b16 %v340, %v340
      %v357 = vpack.c.b16 %v341, %v341
      %v358 = vpack.c.b16 %v342, %v342
      %v359 = vpack.c.b16 %v343, %v343
      %v360 = vpack.c.b16 %v344, %v344
      %v361 = vpack.c.b16 %v345, %v345
      %v362 = vpack.c.b16 %v346, %v346
      %v363 = vpack.c.b16 %v347, %v347
      %v364 = vpack.c.b16 %v348, %v348
      %vm365 = vsmask.f32 7424
      %v367 = vshrl.u32 %v301, 16
      %v369 = vshll.u32 %v301, 16
      %v371 = vrot.slane %v369, 1
      %v372 = vor.u32 %v367, %v371
      %v374 = vshll.u32 %v349, 16
      %v376 = vrot.slane %v374, 1
      %v377 = vsel %vm365, %v372, %v376
      %v379 = vshrl.u32 %v302, 16
      %v381 = vshll.u32 %v302, 16
      %v383 = vrot.slane %v381, 1
      %v384 = vor.u32 %v379, %v383
      %v386 = vshll.u32 %v350, 16
      %v388 = vrot.slane %v386, 1
      %v389 = vsel %vm365, %v384, %v388
      %v391 = vshrl.u32 %v303, 16
      %v393 = vshll.u32 %v303, 16
      %v395 = vrot.slane %v393, 1
      %v396 = vor.u32 %v391, %v395
      %v398 = vshll.u32 %v351, 16
      %v400 = vrot.slane %v398, 1
      %v401 = vsel %vm365, %v396, %v400
      %v403 = vshrl.u32 %v304, 16
      %v405 = vshll.u32 %v304, 16
      %v407 = vrot.slane %v405, 1
      %v408 = vor.u32 %v403, %v407
      %v410 = vshll.u32 %v352, 16
      %v412 = vrot.slane %v410, 1
      %v413 = vsel %vm365, %v408, %v412
      %v415 = vshrl.u32 %v305, 16
      %v417 = vshll.u32 %v305, 16
      %v419 = vrot.slane %v417, 1
      %v420 = vor.u32 %v415, %v419
      %v422 = vshll.u32 %v353, 16
      %v424 = vrot.slane %v422, 1
      %v425 = vsel %vm365, %v420, %v424
      %v427 = vshrl.u32 %v306, 16
      %v429 = vshll.u32 %v306, 16
      %v431 = vrot.slane %v429, 1
      %v432 = vor.u32 %v427, %v431
      %v434 = vshll.u32 %v354, 16
      %v436 = vrot.slane %v434, 1
      %v437 = vsel %vm365, %v432, %v436
      %v439 = vshrl.u32 %v307, 16
      %v441 = vshll.u32 %v307, 16
      %v443 = vrot.slane %v441, 1
      %v444 = vor.u32 %v439, %v443
      %v446 = vshll.u32 %v355, 16
      %v448 = vrot.slane %v446, 1
      %v449 = vsel %vm365, %v444, %v448
      %v451 = vshrl.u32 %v308, 16
      %v453 = vshll.u32 %v308, 16
      %v455 = vrot.slane %v453, 1
      %v456 = vor.u32 %v451, %v455
      %v458 = vshll.u32 %v356, 16
      %v460 = vrot.slane %v458, 1
      %v461 = vsel %vm365, %v456, %v460
      %v463 = vshrl.u32 %v309, 16
      %v465 = vshll.u32 %v309, 16
      %v467 = vrot.slane %v465, 1
      %v468 = vor.u32 %v463, %v467
      %v470 = vshll.u32 %v357, 16
      %v472 = vrot.slane %v470, 1
      %v473 = vsel %vm365, %v468, %v472
      %v475 = vshrl.u32 %v310, 16
      %v477 = vshll.u32 %v310, 16
      %v479 = vrot.slane %v477, 1
      %v480 = vor.u32 %v475, %v479
      %v482 = vshll.u32 %v358, 16
      %v484 = vrot.slane %v482, 1
      %v485 = vsel %vm365, %v480, %v484
      %v487 = vshrl.u32 %v311, 16
      %v489 = vshll.u32 %v311, 16
      %v491 = vrot.slane %v489, 1
      %v492 = vor.u32 %v487, %v491
      %v494 = vshll.u32 %v359, 16
      %v496 = vrot.slane %v494, 1
      %v497 = vsel %vm365, %v492, %v496
      %v499 = vshrl.u32 %v312, 16
      %v501 = vshll.u32 %v312, 16
      %v503 = vrot.slane %v501, 1
      %v504 = vor.u32 %v499, %v503
      %v506 = vshll.u32 %v360, 16
      %v508 = vrot.slane %v506, 1
      %v509 = vsel %vm365, %v504, %v508
      %v511 = vshrl.u32 %v313, 16
      %v513 = vshll.u32 %v313, 16
      %v515 = vrot.slane %v513, 1
      %v516 = vor.u32 %v511, %v515
      %v518 = vshll.u32 %v361, 16
      %v520 = vrot.slane %v518, 1
      %v521 = vsel %vm365, %v516, %v520
      %v523 = vshrl.u32 %v314, 16
      %v525 = vshll.u32 %v314, 16
      %v527 = vrot.slane %v525, 1
      %v528 = vor.u32 %v523, %v527
      %v530 = vshll.u32 %v362, 16
      %v532 = vrot.slane %v530, 1
      %v533 = vsel %vm365, %v528, %v532
      %v535 = vshrl.u32 %v315, 16
      %v537 = vshll.u32 %v315, 16
      %v539 = vrot.slane %v537, 1
      %v540 = vor.u32 %v535, %v539
      %v542 = vshll.u32 %v363, 16
      %v544 = vrot.slane %v542, 1
      %v545 = vsel %vm365, %v540, %v544
      %v547 = vshrl.u32 %v316, 16
      %v549 = vshll.u32 %v316, 16
      %v551 = vrot.slane %v549, 1
      %v552 = vor.u32 %v547, %v551
      %v554 = vshll.u32 %v364, 16
      %v556 = vrot.slane %v554, 1
      %v557 = vsel %vm365, %v552, %v556
      %558 = vrot.lane.b32.xlu0 %v377, 4
      %v559 = vpop.permute.xlu0 %558
      %560 = vrot.lane.b32.xlu0 %v389, 4
      %v561 = vpop.permute.xlu0 %560
      %562 = vrot.lane.b32.xlu0 %v401, 4
      %v563 = vpop.permute.xlu0 %562
      %564 = vrot.lane.b32.xlu0 %v413, 4
      %v565 = vpop.permute.xlu0 %564
      %566 = vrot.lane.b32.xlu0 %v425, 4
      %v567 = vpop.permute.xlu0 %566
      %568 = vrot.lane.b32.xlu0 %v437, 4
      %v569 = vpop.permute.xlu0 %568
      %570 = vrot.lane.b32.xlu0 %v449, 4
      %v571 = vpop.permute.xlu0 %570
      %572 = vrot.lane.b32.xlu0 %v461, 4
      %v573 = vpop.permute.xlu0 %572
      %574 = vrot.lane.b32.xlu0 %v473, 4
      %v575 = vpop.permute.xlu0 %574
      %576 = vrot.lane.b32.xlu0 %v485, 4
      %v577 = vpop.permute.xlu0 %576
      %578 = vrot.lane.b32.xlu0 %v497, 4
      %v579 = vpop.permute.xlu0 %578
      %580 = vrot.lane.b32.xlu0 %v509, 4
      %v581 = vpop.permute.xlu0 %580
      %582 = vrot.lane.b32.xlu0 %v521, 4
      %v583 = vpop.permute.xlu0 %582
      %584 = vrot.lane.b32.xlu0 %v533, 4
      %v585 = vpop.permute.xlu0 %584
      %586 = vrot.lane.b32.xlu0 %v545, 4
      %v587 = vpop.permute.xlu0 %586
      %588 = vrot.lane.b32.xlu0 %v557, 4
      %v589 = vpop.permute.xlu0 %588
      %vm590 = vcmask 1046528
      %v591 = vrot.slane %v301, 1
      %v592 = vrot.slane %v349, 1
      %v593 = vsel %vm590, %v591, %v592
      %v594 = vrot.slane %v302, 1
      %v595 = vrot.slane %v350, 1
      %v596 = vsel %vm590, %v594, %v595
      %v597 = vrot.slane %v303, 1
      %v598 = vrot.slane %v351, 1
      %v599 = vsel %vm590, %v597, %v598
      %v600 = vrot.slane %v304, 1
      %v601 = vrot.slane %v352, 1
      %v602 = vsel %vm590, %v600, %v601
      %v603 = vrot.slane %v305, 1
      %v604 = vrot.slane %v353, 1
      %v605 = vsel %vm590, %v603, %v604
      %v606 = vrot.slane %v306, 1
      %v607 = vrot.slane %v354, 1
      %v608 = vsel %vm590, %v606, %v607
      %v609 = vrot.slane %v307, 1
      %v610 = vrot.slane %v355, 1
      %v611 = vsel %vm590, %v609, %v610
      %v612 = vrot.slane %v308, 1
      %v613 = vrot.slane %v356, 1
      %v614 = vsel %vm590, %v612, %v613
      %v615 = vrot.slane %v309, 1
      %v616 = vrot.slane %v357, 1
      %v617 = vsel %vm590, %v615, %v616
      %v618 = vrot.slane %v310, 1
      %v619 = vrot.slane %v358, 1
      %v620 = vsel %vm590, %v618, %v619
      %v621 = vrot.slane %v311, 1
      %v622 = vrot.slane %v359, 1
      %v623 = vsel %vm590, %v621, %v622
      %v624 = vrot.slane %v312, 1
      %v625 = vrot.slane %v360, 1
      %v626 = vsel %vm590, %v624, %v625
      %v627 = vrot.slane %v313, 1
      %v628 = vrot.slane %v361, 1
      %v629 = vsel %vm590, %v627, %v628
      %v630 = vrot.slane %v314, 1
      %v631 = vrot.slane %v362, 1
      %v632 = vsel %vm590, %v630, %v631
      %v633 = vrot.slane %v315, 1
      %v634 = vrot.slane %v363, 1
      %v635 = vsel %vm590, %v633, %v634
      %v636 = vrot.slane %v316, 1
      %v637 = vrot.slane %v364, 1
      %v638 = vsel %vm590, %v636, %v637
      %639 = vrot.lane.b32.xlu0 %v593, 8
      %v640 = vpop.permute.xlu0 %639
      %641 = vrot.lane.b32.xlu0 %v596, 8
      %v642 = vpop.permute.xlu0 %641
      %643 = vrot.lane.b32.xlu0 %v599, 8
      %v644 = vpop.permute.xlu0 %643
      %645 = vrot.lane.b32.xlu0 %v602, 8
      %v646 = vpop.permute.xlu0 %645
      %647 = vrot.lane.b32.xlu0 %v605, 8
      %v648 = vpop.permute.xlu0 %647
      %649 = vrot.lane.b32.xlu0 %v608, 8
      %v650 = vpop.permute.xlu0 %649
      %651 = vrot.lane.b32.xlu0 %v611, 8
      %v652 = vpop.permute.xlu0 %651
      %653 = vrot.lane.b32.xlu0 %v614, 8
      %v654 = vpop.permute.xlu0 %653
      %655 = vrot.lane.b32.xlu0 %v617, 8
      %v656 = vpop.permute.xlu0 %655
      %657 = vrot.lane.b32.xlu0 %v620, 8
      %v658 = vpop.permute.xlu0 %657
      %659 = vrot.lane.b32.xlu0 %v623, 8
      %v660 = vpop.permute.xlu0 %659
      %661 = vrot.lane.b32.xlu0 %v626, 8
      %v662 = vpop.permute.xlu0 %661
      %663 = vrot.lane.b32.xlu0 %v629, 8
      %v664 = vpop.permute.xlu0 %663
      %665 = vrot.lane.b32.xlu0 %v632, 8
      %v666 = vpop.permute.xlu0 %665
      %667 = vrot.lane.b32.xlu0 %v635, 8
      %v668 = vpop.permute.xlu0 %667
      %669 = vrot.lane.b32.xlu0 %v638, 8
      %v670 = vpop.permute.xlu0 %669
      %vm671 = vcmask 31744
      %v673 = vsel %vm671, %v301, %v559
      %v675 = vsel %vm671, %v302, %v561
      %v677 = vsel %vm671, %v303, %v563
      %v679 = vsel %vm671, %v304, %v565
      %v681 = vsel %vm671, %v305, %v567
      %v683 = vsel %vm671, %v306, %v569
      %v685 = vsel %vm671, %v307, %v571
      %v687 = vsel %vm671, %v308, %v573
      %v689 = vsel %vm671, %v309, %v575
      %v691 = vsel %vm671, %v310, %v577
      %v693 = vsel %vm671, %v311, %v579
      %v695 = vsel %vm671, %v312, %v581
      %v697 = vsel %vm671, %v313, %v583
      %v699 = vsel %vm671, %v314, %v585
      %v701 = vsel %vm671, %v315, %v587
      %v703 = vsel %vm671, %v316, %v589
      %vm704 = vcmask 64512
      %v706 = vsel %vm704, %v673, %v640
      %v708 = vsel %vm704, %v675, %v642
      %v710 = vsel %vm704, %v677, %v644
      %v712 = vsel %vm704, %v679, %v646
      %v714 = vsel %vm704, %v681, %v648
      %v716 = vsel %vm704, %v683, %v650
      %v718 = vsel %vm704, %v685, %v652
      %v720 = vsel %vm704, %v687, %v654
      %v722 = vsel %vm704, %v689, %v656
      %v724 = vsel %vm704, %v691, %v658
      %v726 = vsel %vm704, %v693, %v660
      %v728 = vsel %vm704, %v695, %v662
      %v730 = vsel %vm704, %v697, %v664
      %v732 = vsel %vm704, %v699, %v666
      %v734 = vsel %vm704, %v701, %v668
      %v736 = vsel %vm704, %v703, %v670
      %v737 = vld [vmem:[%s1] sm:$0xf]
      %v738 = vld [vmem:[%s1 + $0x4] sm:$0x3]
      %v741 = vunpack.c.l.b16 %v231
      %v742 = vunpack.c.l.b16 %v232
      %v743 = vpack.c.b16 %v742, %v741
      %v745 = vunpack.c.l.b16 %v233
      %v746 = vpack.c.b16 %v745, %v745
      %v748 = vshrl.u32 %v743, 16
      %v750 = vshll.u32 %v743, 16
      %v752 = vrot.slane %v750, 1
      %v753 = vor.u32 %v748, %v752
      %v755 = vshll.u32 %v746, 16
      %v757 = vrot.slane %v755, 1
      %v758 = vsel %vm365, %v753, %v757
      %759 = vrot.lane.b32.xlu0 %v758, 4
      %v760 = vpop.permute.xlu0 %759
      %v761 = vrot.slane %v743, 1
      %v762 = vrot.slane %v746, 1
      %v763 = vsel %vm590, %v761, %v762
      %764 = vrot.lane.b32.xlu0 %v763, 8
      %v765 = vpop.permute.xlu0 %764
      %v767 = vsel %vm671, %v743, %v760
      %v769 = vsel %vm704, %v767, %v765
      %s770 = scalar_lea.vmem %s1, 8
      %v771 = vld [vmem:[%s770] sm:$0xf]
      %v772 = vld [vmem:[%s770 + $0x4] sm:$0x3]
      %v775 = vunpack.c.l.b16 %v771
      %v776 = vunpack.c.l.b16 %v772
      %v777 = vpack.c.b16 %v776, %v775
      %vm778 = vcmask 97280
      %v779 = vsel %vm778, %v708, 0
      %v781 = vsel %vm778, %v710, 0
      %v783 = vsel %vm778, %v712, 0
      %v785 = vsel %vm778, %v714, 0
      %v787 = vsel %vm778, %v716, 0
      %v789 = vsel %vm778, %v718, 0
      %v791 = vsel %vm778, %v720, 0
      %v793 = vsel %vm778, %v722, 0
      %v795 = vsel %vm778, %v724, 0
      %v797 = vsel %vm778, %v726, 0
      %v799 = vsel %vm778, %v728, 0
      %v801 = vsel %vm778, %v730, 0
      %v803 = vsel %vm778, %v732, 0
      %v805 = vsel %vm778, %v734, 0
      %v807 = vsel %vm778, %v736, 0
      %v809 = vsel %vm778, %v769, 0
      %vm811 = vcmask 1045504
      %v813 = vsel %vm811, %v777, 0
      %815 = vmatprep.subr.bf16.mxu0 0
      %816 = vmatpush1.bf16.msra.mxu0 %v813
      %817 = vmatprep.subr.bf16.mxu0 0
      %818 = vmatpush1.bf16.msra.mxu0 0
      %819 = vmatprep.subr.bf16.mxu0 0
      %820 = vmatpush1.bf16.msra.mxu0 0
      %821 = vmatprep.subr.bf16.mxu0 0
      %822 = vmatpush1.bf16.msra.mxu0 0
      %823 = vmatprep.subr.bf16.mxu0 0
      %824 = vmatpush1.bf16.msra.mxu0 0
      %825 = vmatprep.subr.bf16.mxu0 0
      %826 = vmatpush1.bf16.msra.mxu0 0
      %827 = vmatprep.subr.bf16.mxu0 0
      %828 = vmatpush1.bf16.msra.mxu0 0
      %829 = vmatprep.subr.bf16.mxu0 0
      %830 = vmatpush1.bf16.msra.mxu0 0
      %831 = vmatprep.subr.bf16.mxu0 0
      %832 = vmatpush1.bf16.msra.mxu0 0
      %833 = vmatprep.subr.bf16.mxu0 0
      %834 = vmatpush1.bf16.msra.mxu0 0
      %835 = vmatprep.subr.bf16.mxu0 0
      %836 = vmatpush1.bf16.msra.mxu0 0
      %837 = vmatprep.subr.bf16.mxu0 0
      %838 = vmatpush1.bf16.msra.mxu0 0
      %839 = vmatprep.subr.bf16.mxu0 0
      %840 = vmatpush1.bf16.msra.mxu0 0
      %841 = vmatprep.subr.bf16.mxu0 0
      %842 = vmatpush1.bf16.msra.mxu0 0
      %843 = vmatprep.subr.bf16.mxu0 0
      %844 = vmatpush1.bf16.msra.mxu0 0
      %845 = vmatprep.subr.bf16.mxu0 0
      %846 = vmatpush1.bf16.msra.mxu0 0
      %847 = vmatprep.mubr.bf16.mxu0 0
      %848 = vmatmul.mubr.bf16.gmra.mrb[0].mxu0 %v779
      %v849 = vpop.f32.mrb[0].mxu0
      %v850 = vadd.f32 0.0, %v849
      %v851 = vpop.f32.mrb[0].mxu0
      %v852 = vpop.f32.mrb[0].mxu0
      %v853 = vadd.f32 0.0, %v852
      %v854 = vpop.f32.mrb[0].mxu0
      %855 = vmatprep.mubr.bf16.mxu0 0
      %856 = vmatmul.mubr.bf16.gmra.mrb[0].mxu0 %v781
      %v857 = vpop.f32.mrb[0].mxu0
      %v858 = vadd.f32 0.0, %v857
      %v859 = vpop.f32.mrb[0].mxu0
      %v860 = vpop.f32.mrb[0].mxu0
      %v861 = vadd.f32 0.0, %v860
      %v862 = vpop.f32.mrb[0].mxu0
      %863 = vmatprep.mubr.bf16.mxu0 0
      %864 = vmatmul.mubr.bf16.gmra.mrb[0].mxu0 %v783
      %v865 = vpop.f32.mrb[0].mxu0
      %v866 = vadd.f32 0.0, %v865
      %v867 = vpop.f32.mrb[0].mxu0
      %v868 = vpop.f32.mrb[0].mxu0
      %v869 = vadd.f32 0.0, %v868
      %v870 = vpop.f32.mrb[0].mxu0
      %871 = vmatprep.mubr.bf16.mxu0 0
      %872 = vmatmul.mubr.bf16.gmra.mrb[0].mxu0 %v785
      %v873 = vpop.f32.mrb[0].mxu0
      %v874 = vadd.f32 0.0, %v873
      %v875 = vpop.f32.mrb[0].mxu0
      %v876 = vpop.f32.mrb[0].mxu0
      %v877 = vadd.f32 0.0, %v876
      %v878 = vpop.f32.mrb[0].mxu0
      %879 = vmatprep.mubr.bf16.mxu0 0
      %880 = vmatmul.mubr.bf16.gmra.mrb[0].mxu0 %v787
      %v881 = vpop.f32.mrb[0].mxu0
      %v882 = vadd.f32 0.0, %v881
      %v883 = vpop.f32.mrb[0].mxu0
      %v884 = vpop.f32.mrb[0].mxu0
      %v885 = vadd.f32 0.0, %v884
      %v886 = vpop.f32.mrb[0].mxu0
      %887 = vmatprep.mubr.bf16.mxu0 0
      %888 = vmatmul.mubr.bf16.gmra.mrb[0].mxu0 %v789
      %v889 = vpop.f32.mrb[0].mxu0
      %v890 = vadd.f32 0.0, %v889
      %v891 = vpop.f32.mrb[0].mxu0
      %v892 = vpop.f32.mrb[0].mxu0
      %v893 = vadd.f32 0.0, %v892
      %v894 = vpop.f32.mrb[0].mxu0
      %895 = vmatprep.mubr.bf16.mxu0 0
      %896 = vmatmul.mubr.bf16.gmra.mrb[0].mxu0 %v791
      %v897 = vpop.f32.mrb[0].mxu0
      %v898 = vadd.f32 0.0, %v897
      %v899 = vpop.f32.mrb[0].mxu0
      %v900 = vpop.f32.mrb[0].mxu0
      %v901 = vadd.f32 0.0, %v900
      %v902 = vpop.f32.mrb[0].mxu0
      %903 = vmatprep.mubr.bf16.mxu0 0
      %904 = vmatmul.mubr.bf16.gmra.mrb[0].mxu0 %v793
      %v905 = vpop.f32.mrb[0].mxu0
      %v906 = vadd.f32 0.0, %v905
      %v907 = vpop.f32.mrb[0].mxu0
      %v908 = vpop.f32.mrb[0].mxu0
      %v909 = vadd.f32 0.0, %v908
      %v910 = vpop.f32.mrb[0].mxu0
      %911 = vmatprep.mubr.bf16.mxu0 0
      %912 = vmatmul.mubr.bf16.gmra.mrb[0].mxu0 %v795
      %v913 = vpop.f32.mrb[0].mxu0
      %v914 = vadd.f32 0.0, %v913
      %v915 = vpop.f32.mrb[0].mxu0
      %v916 = vpop.f32.mrb[0].mxu0
      %v917 = vadd.f32 0.0, %v916
      %v918 = vpop.f32.mrb[0].mxu0
      %919 = vmatprep.mubr.bf16.mxu0 0
      %920 = vmatmul.mubr.bf16.gmra.mrb[0].mxu0 %v797
      %v921 = vpop.f32.mrb[0].mxu0
      %v922 = vadd.f32 0.0, %v921
      %v923 = vpop.f32.mrb[0].mxu0
      %v924 = vpop.f32.mrb[0].mxu0
      %v925 = vadd.f32 0.0, %v924
      %v926 = vpop.f32.mrb[0].mxu0
      %927 = vmatprep.mubr.bf16.mxu0 0
      %928 = vmatmul.mubr.bf16.gmra.mrb[0].mxu0 %v799
      %v929 = vpop.f32.mrb[0].mxu0
      %v930 = vadd.f32 0.0, %v929
      %v931 = vpop.f32.mrb[0].mxu0
      %v932 = vpop.f32.mrb[0].mxu0
      %v933 = vadd.f32 0.0, %v932
      %v934 = vpop.f32.mrb[0].mxu0
      %935 = vmatprep.mubr.bf16.mxu0 0
      %936 = vmatmul.mubr.bf16.gmra.mrb[0].mxu0 %v801
      %v937 = vpop.f32.mrb[0].mxu0
      %v938 = vadd.f32 0.0, %v937
      %v939 = vpop.f32.mrb[0].mxu0
      %v940 = vpop.f32.mrb[0].mxu0
      %v941 = vadd.f32 0.0, %v940
      %v942 = vpop.f32.mrb[0].mxu0
      %943 = vmatprep.mubr.bf16.mxu0 0
      %944 = vmatmul.mubr.bf16.gmra.mrb[0].mxu0 %v803
      %v945 = vpop.f32.mrb[0].mxu0
      %v946 = vadd.f32 0.0, %v945
      %v947 = vpop.f32.mrb[0].mxu0
      %v948 = vpop.f32.mrb[0].mxu0
      %v949 = vadd.f32 0.0, %v948
      %v950 = vpop.f32.mrb[0].mxu0
      %951 = vmatprep.mubr.bf16.mxu0 0
      %952 = vmatmul.mubr.bf16.gmra.mrb[0].mxu0 %v805
      %v953 = vpop.f32.mrb[0].mxu0
      %v954 = vadd.f32 0.0, %v953
      %v955 = vpop.f32.mrb[0].mxu0
      %v956 = vpop.f32.mrb[0].mxu0
      %v957 = vadd.f32 0.0, %v956
      %v958 = vpop.f32.mrb[0].mxu0
      %959 = vmatprep.mubr.bf16.mxu0 0
      %960 = vmatmul.mubr.bf16.gmra.mrb[0].mxu0 %v807
      %v961 = vpop.f32.mrb[0].mxu0
      %v962 = vadd.f32 0.0, %v961
      %v963 = vpop.f32.mrb[0].mxu0
      %v964 = vpop.f32.mrb[0].mxu0
      %v965 = vadd.f32 0.0, %v964
      %v966 = vpop.f32.mrb[0].mxu0
      %967 = vmatprep.mubr.bf16.mxu0 0
      %968 = vmatmul.mubr.bf16.gmra.mrb[0].mxu0 %v809
      %v969 = vpop.f32.mrb[0].mxu0
      %v970 = vadd.f32 0.0, %v969
      %v971 = vpop.f32.mrb[0].mxu0
      %v972 = vpop.f32.mrb[0].mxu0
      %v973 = vadd.f32 0.0, %v972
      %v974 = vpop.f32.mrb[0].mxu0
      %975 = vdwg.mxu0
      %v978 = vunpack.c.l.b16 %v737
      %v979 = vunpack.c.l.b16 %v738
      %v980 = vpack.c.b16 %v979, %v978
      %v981 = vsel %vm778, %v706, 0
      %v984 = vsel %vm811, %v980, 0
      %986 = vmatprep.subr.bf16.mxu0 0
      %987 = vmatpush1.bf16.msra.mxu0 %v984
      %988 = vmatprep.subr.bf16.mxu0 0
      %989 = vmatpush1.bf16.msra.mxu0 0
      %990 = vmatprep.subr.bf16.mxu0 0
      %991 = vmatpush1.bf16.msra.mxu0 0
      %992 = vmatprep.subr.bf16.mxu0 0
      %993 = vmatpush1.bf16.msra.mxu0 0
      %994 = vmatprep.subr.bf16.mxu0 0
      %995 = vmatpush1.bf16.msra.mxu0 0
      %996 = vmatprep.subr.bf16.mxu0 0
      %997 = vmatpush1.bf16.msra.mxu0 0
      %998 = vmatprep.subr.bf16.mxu0 0
      %999 = vmatpush1.bf16.msra.mxu0 0
      %1000 = vmatprep.subr.bf16.mxu0 0
      %1001 = vmatpush1.bf16.msra.mxu0 0
      %1002 = vmatprep.subr.bf16.mxu0 0
      %1003 = vmatpush1.bf16.msra.mxu0 0
      %1004 = vmatprep.subr.bf16.mxu0 0
      %1005 = vmatpush1.bf16.msra.mxu0 0
      %1006 = vmatprep.subr.bf16.mxu0 0
      %1007 = vmatpush1.bf16.msra.mxu0 0
      %1008 = vmatprep.subr.bf16.mxu0 0
      %1009 = vmatpush1.bf16.msra.mxu0 0
      %1010 = vmatprep.subr.bf16.mxu0 0
      %1011 = vmatpush1.bf16.msra.mxu0 0
      %1012 = vmatprep.subr.bf16.mxu0 0
      %1013 = vmatpush1.bf16.msra.mxu0 0
      %1014 = vmatprep.subr.bf16.mxu0 0
      %1015 = vmatpush1.bf16.msra.mxu0 0
      %1016 = vmatprep.subr.bf16.mxu0 0
      %1017 = vmatpush1.bf16.msra.mxu0 0
      %1018 = vmatprep.mubr.bf16.mxu0 0
      %1019 = vmatmul.mubr.bf16.gmra.mrb[0].mxu0 %v981
      %v1020 = vpop.f32.mrb[0].mxu0
      %v1021 = vadd.f32 %v850, %v1020
      %v1022 = vpop.f32.mrb[0].mxu0
      %v1023 = vpop.f32.mrb[0].mxu0
      %v1024 = vadd.f32 %v853, %v1023
      %v1025 = vpop.f32.mrb[0].mxu0
      %1026 = vmatprep.mubr.bf16.mxu0 0
      %1027 = vmatmul.mubr.bf16.gmra.mrb[0].mxu0 %v779
      %v1028 = vpop.f32.mrb[0].mxu0
      %v1029 = vadd.f32 %v858, %v1028
      %v1030 = vpop.f32.mrb[0].mxu0
      %v1031 = vpop.f32.mrb[0].mxu0
      %v1032 = vadd.f32 %v861, %v1031
      %v1033 = vpop.f32.mrb[0].mxu0
      %1034 = vmatprep.mubr.bf16.mxu0 0
      %1035 = vmatmul.mubr.bf16.gmra.mrb[0].mxu0 %v781
      %v1036 = vpop.f32.mrb[0].mxu0
      %v1037 = vadd.f32 %v866, %v1036
      %v1038 = vpop.f32.mrb[0].mxu0
      %v1039 = vpop.f32.mrb[0].mxu0
      %v1040 = vadd.f32 %v869, %v1039
      %v1041 = vpop.f32.mrb[0].mxu0
      %1042 = vmatprep.mubr.bf16.mxu0 0
      %1043 = vmatmul.mubr.bf16.gmra.mrb[0].mxu0 %v783
      %v1044 = vpop.f32.mrb[0].mxu0
      %v1045 = vadd.f32 %v874, %v1044
      %v1046 = vpop.f32.mrb[0].mxu0
      %v1047 = vpop.f32.mrb[0].mxu0
      %v1048 = vadd.f32 %v877, %v1047
      %v1049 = vpop.f32.mrb[0].mxu0
      %1050 = vmatprep.mubr.bf16.mxu0 0
      %1051 = vmatmul.mubr.bf16.gmra.mrb[0].mxu0 %v785
      %v1052 = vpop.f32.mrb[0].mxu0
      %v1053 = vadd.f32 %v882, %v1052
      %v1054 = vpop.f32.mrb[0].mxu0
      %v1055 = vpop.f32.mrb[0].mxu0
      %v1056 = vadd.f32 %v885, %v1055
      %v1057 = vpop.f32.mrb[0].mxu0
      %1058 = vmatprep.mubr.bf16.mxu0 0
      %1059 = vmatmul.mubr.bf16.gmra.mrb[0].mxu0 %v787
      %v1060 = vpop.f32.mrb[0].mxu0
      %v1061 = vadd.f32 %v890, %v1060
      %v1062 = vpop.f32.mrb[0].mxu0
      %v1063 = vpop.f32.mrb[0].mxu0
      %v1064 = vadd.f32 %v893, %v1063
      %v1065 = vpop.f32.mrb[0].mxu0
      %1066 = vmatprep.mubr.bf16.mxu0 0
      %1067 = vmatmul.mubr.bf16.gmra.mrb[0].mxu0 %v789
      %v1068 = vpop.f32.mrb[0].mxu0
      %v1069 = vadd.f32 %v898, %v1068
      %v1070 = vpop.f32.mrb[0].mxu0
      %v1071 = vpop.f32.mrb[0].mxu0
      %v1072 = vadd.f32 %v901, %v1071
      %v1073 = vpop.f32.mrb[0].mxu0
      %1074 = vmatprep.mubr.bf16.mxu0 0
      %1075 = vmatmul.mubr.bf16.gmra.mrb[0].mxu0 %v791
      %v1076 = vpop.f32.mrb[0].mxu0
      %v1077 = vadd.f32 %v906, %v1076
      %v1078 = vpop.f32.mrb[0].mxu0
      %v1079 = vpop.f32.mrb[0].mxu0
      %v1080 = vadd.f32 %v909, %v1079
      %v1081 = vpop.f32.mrb[0].mxu0
      %1082 = vmatprep.mubr.bf16.mxu0 0
      %1083 = vmatmul.mubr.bf16.gmra.mrb[0].mxu0 %v793
      %v1084 = vpop.f32.mrb[0].mxu0
      %v1085 = vadd.f32 %v914, %v1084
      %v1086 = vpop.f32.mrb[0].mxu0
      %v1087 = vpop.f32.mrb[0].mxu0
      %v1088 = vadd.f32 %v917, %v1087
      %v1089 = vpop.f32.mrb[0].mxu0
      %1090 = vmatprep.mubr.bf16.mxu0 0
      %1091 = vmatmul.mubr.bf16.gmra.mrb[0].mxu0 %v795
      %v1092 = vpop.f32.mrb[0].mxu0
      %v1093 = vadd.f32 %v922, %v1092
      %v1094 = vpop.f32.mrb[0].mxu0
      %v1095 = vpop.f32.mrb[0].mxu0
      %v1096 = vadd.f32 %v925, %v1095
      %v1097 = vpop.f32.mrb[0].mxu0
      %1098 = vmatprep.mubr.bf16.mxu0 0
      %1099 = vmatmul.mubr.bf16.gmra.mrb[0].mxu0 %v797
      %v1100 = vpop.f32.mrb[0].mxu0
      %v1101 = vadd.f32 %v930, %v1100
      %v1102 = vpop.f32.mrb[0].mxu0
      %v1103 = vpop.f32.mrb[0].mxu0
      %v1104 = vadd.f32 %v933, %v1103
      %v1105 = vpop.f32.mrb[0].mxu0
      %1106 = vmatprep.mubr.bf16.mxu0 0
      %1107 = vmatmul.mubr.bf16.gmra.mrb[0].mxu0 %v799
      %v1108 = vpop.f32.mrb[0].mxu0
      %v1109 = vadd.f32 %v938, %v1108
      %v1110 = vpop.f32.mrb[0].mxu0
      %v1111 = vpop.f32.mrb[0].mxu0
      %v1112 = vadd.f32 %v941, %v1111
      %v1113 = vpop.f32.mrb[0].mxu0
      %1114 = vmatprep.mubr.bf16.mxu0 0
      %1115 = vmatmul.mubr.bf16.gmra.mrb[0].mxu0 %v801
      %v1116 = vpop.f32.mrb[0].mxu0
      %v1117 = vadd.f32 %v946, %v1116
      %v1118 = vpop.f32.mrb[0].mxu0
      %v1119 = vpop.f32.mrb[0].mxu0
      %v1120 = vadd.f32 %v949, %v1119
      %v1121 = vpop.f32.mrb[0].mxu0
      %1122 = vmatprep.mubr.bf16.mxu0 0
      %1123 = vmatmul.mubr.bf16.gmra.mrb[0].mxu0 %v803
      %v1124 = vpop.f32.mrb[0].mxu0
      %v1125 = vadd.f32 %v954, %v1124
      %v1126 = vpop.f32.mrb[0].mxu0
      %v1127 = vpop.f32.mrb[0].mxu0
      %v1128 = vadd.f32 %v957, %v1127
      %v1129 = vpop.f32.mrb[0].mxu0
      %1130 = vmatprep.mubr.bf16.mxu0 0
      %1131 = vmatmul.mubr.bf16.gmra.mrb[0].mxu0 %v805
      %v1132 = vpop.f32.mrb[0].mxu0
      %v1133 = vadd.f32 %v962, %v1132
      %v1134 = vpop.f32.mrb[0].mxu0
      %v1135 = vpop.f32.mrb[0].mxu0
      %v1136 = vadd.f32 %v965, %v1135
      %v1137 = vpop.f32.mrb[0].mxu0
      %1138 = vmatprep.mubr.bf16.mxu0 0
      %1139 = vmatmul.mubr.bf16.gmra.mrb[0].mxu0 %v807
      %v1140 = vpop.f32.mrb[0].mxu0
      %v1141 = vadd.f32 %v970, %v1140
      %v1142 = vpop.f32.mrb[0].mxu0
      %v1143 = vpop.f32.mrb[0].mxu0
      %v1144 = vadd.f32 %v973, %v1143
      %v1145 = vpop.f32.mrb[0].mxu0
      %1146 = vdwg.mxu0
      %v1149 = vunpack.c.l.b16 %v234
      %v1150 = vunpack.c.l.b16 %v235
      %v1151 = vpack.c.b16 %v1150, %v1149
      %v1153 = vunpack.c.l.b16 %v236
      %v1154 = vpack.c.b16 %v1153, %v1153
      %v1156 = vshrl.u32 %v1151, 16
      %v1158 = vshll.u32 %v1151, 16
      %v1160 = vrot.slane %v1158, 1
      %v1161 = vor.u32 %v1156, %v1160
      %v1163 = vshll.u32 %v1154, 16
      %v1165 = vrot.slane %v1163, 1
      %v1166 = vsel %vm365, %v1161, %v1165
      %1167 = vrot.lane.b32.xlu0 %v1166, 4
      %v1168 = vpop.permute.xlu0 %1167
      %v1169 = vrot.slane %v1151, 1
      %v1170 = vrot.slane %v1154, 1
      %v1171 = vsel %vm590, %v1169, %v1170
      %1172 = vrot.lane.b32.xlu0 %v1171, 8
      %v1173 = vpop.permute.xlu0 %1172
      %v1175 = vsel %vm671, %v1151, %v1168
      %v1177 = vsel %vm704, %v1175, %v1173
      %s1178 = scalar_lea.vmem %s1, 16
      %v1179 = vld [vmem:[%s1178] sm:$0xf]
      %v1180 = vld [vmem:[%s1178 + $0x4] sm:$0x3]
      %v1183 = vunpack.c.l.b16 %v1179
      %v1184 = vunpack.c.l.b16 %v1180
      %v1185 = vpack.c.b16 %v1184, %v1183
      %v1186 = vsel %vm778, %v1177, 0
      %v1189 = vsel %vm811, %v1185, 0
      %1191 = vmatprep.subr.bf16.mxu0 0
      %1192 = vmatpush1.bf16.msra.mxu0 %v1189
      %1193 = vmatprep.subr.bf16.mxu0 0
      %1194 = vmatpush1.bf16.msra.mxu0 0
      %1195 = vmatprep.subr.bf16.mxu0 0
      %1196 = vmatpush1.bf16.msra.mxu0 0
      %1197 = vmatprep.subr.bf16.mxu0 0
      %1198 = vmatpush1.bf16.msra.mxu0 0
      %1199 = vmatprep.subr.bf16.mxu0 0
      %1200 = vmatpush1.bf16.msra.mxu0 0
      %1201 = vmatprep.subr.bf16.mxu0 0
      %1202 = vmatpush1.bf16.msra.mxu0 0
      %1203 = vmatprep.subr.bf16.mxu0 0
      %1204 = vmatpush1.bf16.msra.mxu0 0
      %1205 = vmatprep.subr.bf16.mxu0 0
      %1206 = vmatpush1.bf16.msra.mxu0 0
      %1207 = vmatprep.subr.bf16.mxu0 0
      %1208 = vmatpush1.bf16.msra.mxu0 0
      %1209 = vmatprep.subr.bf16.mxu0 0
      %1210 = vmatpush1.bf16.msra.mxu0 0
      %1211 = vmatprep.subr.bf16.mxu0 0
      %1212 = vmatpush1.bf16.msra.mxu0 0
      %1213 = vmatprep.subr.bf16.mxu0 0
      %1214 = vmatpush1.bf16.msra.mxu0 0
      %1215 = vmatprep.subr.bf16.mxu0 0
      %1216 = vmatpush1.bf16.msra.mxu0 0
      %1217 = vmatprep.subr.bf16.mxu0 0
      %1218 = vmatpush1.bf16.msra.mxu0 0
      %1219 = vmatprep.subr.bf16.mxu0 0
      %1220 = vmatpush1.bf16.msra.mxu0 0
      %1221 = vmatprep.subr.bf16.mxu0 0
      %1222 = vmatpush1.bf16.msra.mxu0 0
      %1223 = vmatprep.mubr.bf16.mxu0 0
      %1224 = vmatmul.mubr.bf16.gmra.mrb[0].mxu0 %v781
      %v1225 = vpop.f32.mrb[0].mxu0
      %v1226 = vadd.f32 0.0, %v1225
      %v1227 = vpop.f32.mrb[0].mxu0
      %v1228 = vpop.f32.mrb[0].mxu0
      %v1229 = vadd.f32 0.0, %v1228
      %v1230 = vpop.f32.mrb[0].mxu0
      %1231 = vmatprep.mubr.bf16.mxu0 0
      %1232 = vmatmul.mubr.bf16.gmra.mrb[0].mxu0 %v783
      %v1233 = vpop.f32.mrb[0].mxu0
      %v1234 = vadd.f32 0.0, %v1233
      %v1235 = vpop.f32.mrb[0].mxu0
      %v1236 = vpop.f32.mrb[0].mxu0
      %v1237 = vadd.f32 0.0, %v1236
      %v1238 = vpop.f32.mrb[0].mxu0
      %1239 = vmatprep.mubr.bf16.mxu0 0
      %1240 = vmatmul.mubr.bf16.gmra.mrb[0].mxu0 %v785
      %v1241 = vpop.f32.mrb[0].mxu0
      %v1242 = vadd.f32 0.0, %v1241
      %v1243 = vpop.f32.mrb[0].mxu0
      %v1244 = vpop.f32.mrb[0].mxu0
      %v1245 = vadd.f32 0.0, %v1244
      %v1246 = vpop.f32.mrb[0].mxu0
      %1247 = vmatprep.mubr.bf16.mxu0 0
      %1248 = vmatmul.mubr.bf16.gmra.mrb[0].mxu0 %v787
      %v1249 = vpop.f32.mrb[0].mxu0
      %v1250 = vadd.f32 0.0, %v1249
      %v1251 = vpop.f32.mrb[0].mxu0
      %v1252 = vpop.f32.mrb[0].mxu0
      %v1253 = vadd.f32 0.0, %v1252
      %v1254 = vpop.f32.mrb[0].mxu0
      %1255 = vmatprep.mubr.bf16.mxu0 0
      %1256 = vmatmul.mubr.bf16.gmra.mrb[0].mxu0 %v789
      %v1257 = vpop.f32.mrb[0].mxu0
      %v1258 = vadd.f32 0.0, %v1257
      %v1259 = vpop.f32.mrb[0].mxu0
      %v1260 = vpop.f32.mrb[0].mxu0
      %v1261 = vadd.f32 0.0, %v1260
      %v1262 = vpop.f32.mrb[0].mxu0
      %1263 = vmatprep.mubr.bf16.mxu0 0
      %1264 = vmatmul.mubr.bf16.gmra.mrb[0].mxu0 %v791
      %v1265 = vpop.f32.mrb[0].mxu0
      %v1266 = vadd.f32 0.0, %v1265
      %v1267 = vpop.f32.mrb[0].mxu0
      %v1268 = vpop.f32.mrb[0].mxu0
      %v1269 = vadd.f32 0.0, %v1268
      %v1270 = vpop.f32.mrb[0].mxu0
      %1271 = vmatprep.mubr.bf16.mxu0 0
      %1272 = vmatmul.mubr.bf16.gmra.mrb[0].mxu0 %v793
      %v1273 = vpop.f32.mrb[0].mxu0
      %v1274 = vadd.f32 0.0, %v1273
      %v1275 = vpop.f32.mrb[0].mxu0
      %v1276 = vpop.f32.mrb[0].mxu0
      %v1277 = vadd.f32 0.0, %v1276
      %v1278 = vpop.f32.mrb[0].mxu0
      %1279 = vmatprep.mubr.bf16.mxu0 0
      %1280 = vmatmul.mubr.bf16.gmra.mrb[0].mxu0 %v795
      %v1281 = vpop.f32.mrb[0].mxu0
      %v1282 = vadd.f32 0.0, %v1281
      %v1283 = vpop.f32.mrb[0].mxu0
      %v1284 = vpop.f32.mrb[0].mxu0
      %v1285 = vadd.f32 0.0, %v1284
      %v1286 = vpop.f32.mrb[0].mxu0
      %1287 = vmatprep.mubr.bf16.mxu0 0
      %1288 = vmatmul.mubr.bf16.gmra.mrb[0].mxu0 %v797
      %v1289 = vpop.f32.mrb[0].mxu0
      %v1290 = vadd.f32 0.0, %v1289
      %v1291 = vpop.f32.mrb[0].mxu0
      %v1292 = vpop.f32.mrb[0].mxu0
      %v1293 = vadd.f32 0.0, %v1292
      %v1294 = vpop.f32.mrb[0].mxu0
      %1295 = vmatprep.mubr.bf16.mxu0 0
      %1296 = vmatmul.mubr.bf16.gmra.mrb[0].mxu0 %v799
      %v1297 = vpop.f32.mrb[0].mxu0
      %v1298 = vadd.f32 0.0, %v1297
      %v1299 = vpop.f32.mrb[0].mxu0
      %v1300 = vpop.f32.mrb[0].mxu0
      %v1301 = vadd.f32 0.0, %v1300
      %v1302 = vpop.f32.mrb[0].mxu0
      %1303 = vmatprep.mubr.bf16.mxu0 0
      %1304 = vmatmul.mubr.bf16.gmra.mrb[0].mxu0 %v801
      %v1305 = vpop.f32.mrb[0].mxu0
      %v1306 = vadd.f32 0.0, %v1305
      %v1307 = vpop.f32.mrb[0].mxu0
      %v1308 = vpop.f32.mrb[0].mxu0
      %v1309 = vadd.f32 0.0, %v1308
      %v1310 = vpop.f32.mrb[0].mxu0
      %1311 = vmatprep.mubr.bf16.mxu0 0
      %1312 = vmatmul.mubr.bf16.gmra.mrb[0].mxu0 %v803
      %v1313 = vpop.f32.mrb[0].mxu0
      %v1314 = vadd.f32 0.0, %v1313
      %v1315 = vpop.f32.mrb[0].mxu0
      %v1316 = vpop.f32.mrb[0].mxu0
      %v1317 = vadd.f32 0.0, %v1316
      %v1318 = vpop.f32.mrb[0].mxu0
      %1319 = vmatprep.mubr.bf16.mxu0 0
      %1320 = vmatmul.mubr.bf16.gmra.mrb[0].mxu0 %v805
      %v1321 = vpop.f32.mrb[0].mxu0
      %v1322 = vadd.f32 0.0, %v1321
      %v1323 = vpop.f32.mrb[0].mxu0
      %v1324 = vpop.f32.mrb[0].mxu0
      %v1325 = vadd.f32 0.0, %v1324
      %v1326 = vpop.f32.mrb[0].mxu0
      %1327 = vmatprep.mubr.bf16.mxu0 0
      %1328 = vmatmul.mubr.bf16.gmra.mrb[0].mxu0 %v807
      %v1329 = vpop.f32.mrb[0].mxu0
      %v1330 = vadd.f32 0.0, %v1329
      %v1331 = vpop.f32.mrb[0].mxu0
      %v1332 = vpop.f32.mrb[0].mxu0
      %v1333 = vadd.f32 0.0, %v1332
      %v1334 = vpop.f32.mrb[0].mxu0
      %1335 = vmatprep.mubr.bf16.mxu0 0
      %1336 = vmatmul.mubr.bf16.gmra.mrb[0].mxu0 %v809
      %v1337 = vpop.f32.mrb[0].mxu0
      %v1338 = vadd.f32 0.0, %v1337
      %v1339 = vpop.f32.mrb[0].mxu0
      %v1340 = vpop.f32.mrb[0].mxu0
      %v1341 = vadd.f32 0.0, %v1340
      %v1342 = vpop.f32.mrb[0].mxu0
      %1343 = vmatprep.mubr.bf16.mxu0 0
      %1344 = vmatmul.mubr.bf16.gmra.mrb[0].mxu0 %v1186
      %v1345 = vpop.f32.mrb[0].mxu0
      %v1346 = vadd.f32 0.0, %v1345
      %v1347 = vpop.f32.mrb[0].mxu0
      %v1348 = vpop.f32.mrb[0].mxu0
      %v1349 = vadd.f32 0.0, %v1348
      %v1350 = vpop.f32.mrb[0].mxu0
      %1351 = vdwg.mxu0
      %v1352 = vadd.f32 %v1021, %v1226
      %v1353 = vadd.f32 %v1024, %v1229
      %v1354 = vadd.f32 %v1029, %v1234
      %v1355 = vadd.f32 %v1032, %v1237
      %v1356 = vadd.f32 %v1037, %v1242
      %v1357 = vadd.f32 %v1040, %v1245
      %v1358 = vadd.f32 %v1045, %v1250
      %v1359 = vadd.f32 %v1048, %v1253
      %v1360 = vadd.f32 %v1053, %v1258
      %v1361 = vadd.f32 %v1056, %v1261
      %v1362 = vadd.f32 %v1061, %v1266
      %v1363 = vadd.f32 %v1064, %v1269
      %v1364 = vadd.f32 %v1069, %v1274
      %v1365 = vadd.f32 %v1072, %v1277
      %v1366 = vadd.f32 %v1077, %v1282
      %v1367 = vadd.f32 %v1080, %v1285
      %v1368 = vadd.f32 %v1085, %v1290
      %v1369 = vadd.f32 %v1088, %v1293
      %v1370 = vadd.f32 %v1093, %v1298
      %v1371 = vadd.f32 %v1096, %v1301
      %v1372 = vadd.f32 %v1101, %v1306
      %v1373 = vadd.f32 %v1104, %v1309
      %v1374 = vadd.f32 %v1109, %v1314
      %v1375 = vadd.f32 %v1112, %v1317
      %v1376 = vadd.f32 %v1117, %v1322
      %v1377 = vadd.f32 %v1120, %v1325
      %v1378 = vadd.f32 %v1125, %v1330
      %v1379 = vadd.f32 %v1128, %v1333
      %v1380 = vadd.f32 %v1133, %v1338
      %v1381 = vadd.f32 %v1136, %v1341
      %v1382 = vadd.f32 %v1141, %v1346
      %v1383 = vadd.f32 %v1144, %v1349
      %vm1384 = vcmask 27648
      %1385 = vst.msk [vmem:[%s177] sm:$0xf] %vm1384, 0
      %1386 = vst.msk [vmem:[%s177 + $0x4] sm:$0xf] %vm1384, 0
      %vm1387 = vcmask 24576
      %1388 = vst.msk [vmem:[%s177 + $0x8] sm:$0x1] %vm1387, 0
      %s1389 = scalar_lea.vmem %s177, 204
      %1390 = vst.msk [vmem:[%s1389] sm:$0xf] %vm1384, 0
      %1391 = vst.msk [vmem:[%s1389 + $0x4] sm:$0xf] %vm1384, 0
      %1392 = vst.msk [vmem:[%s1389 + $0x8] sm:$0x1] %vm1387, 0
      %vm1393 = vcmask 24576
      %vm1394 = vsmask.f32 256
      %vm1395 = vmand %vm1393, %vm1394
      %v1396 = vld [vmem:[%s177] sm:$0x1]
      %v1397 = vsel %vm1395, 0, %v1396
      %1398 = vst [vmem:[%s177] sm:$0x1] %v1397
      %v1399 = vld [vmem:[%s177 + $0xc] sm:$0x1]
      %v1400 = vsel %vm1395, 0, %v1399
      %1401 = vst [vmem:[%s177 + $0xc] sm:$0x1] %v1400
      %v1402 = vld [vmem:[%s177 + $0x18] sm:$0x1]
      %v1403 = vsel %vm1395, 0, %v1402
      %1404 = vst [vmem:[%s177 + $0x18] sm:$0x1] %v1403
      %v1405 = vld [vmem:[%s177 + $0x24] sm:$0x1]
      %v1406 = vsel %vm1395, 0, %v1405
      %1407 = vst [vmem:[%s177 + $0x24] sm:$0x1] %v1406
      %v1408 = vld [vmem:[%s177 + $0x30] sm:$0x1]
      %v1409 = vsel %vm1395, 0, %v1408
      %1410 = vst [vmem:[%s177 + $0x30] sm:$0x1] %v1409
      %v1411 = vld [vmem:[%s177 + $0x3c] sm:$0x1]
      %v1412 = vsel %vm1395, 0, %v1411
      %1413 = vst [vmem:[%s177 + $0x3c] sm:$0x1] %v1412
      %v1414 = vld [vmem:[%s177 + $0x48] sm:$0x1]
      %v1415 = vsel %vm1395, 0, %v1414
      %1416 = vst [vmem:[%s177 + $0x48] sm:$0x1] %v1415
      %v1417 = vld [vmem:[%s177 + $0x54] sm:$0x1]
      %v1418 = vsel %vm1395, 0, %v1417
      %1419 = vst [vmem:[%s177 + $0x54] sm:$0x1] %v1418
      %v1420 = vld [vmem:[%s177 + $0x60] sm:$0x1]
      %v1421 = vsel %vm1395, 0, %v1420
      %1422 = vst [vmem:[%s177 + $0x60] sm:$0x1] %v1421
      %v1423 = vld [vmem:[%s177 + $0x6c] sm:$0x1]
      %v1424 = vsel %vm1395, 0, %v1423
      %1425 = vst [vmem:[%s177 + $0x6c] sm:$0x1] %v1424
      %v1426 = vld [vmem:[%s177 + $0x78] sm:$0x1]
      %v1427 = vsel %vm1395, 0, %v1426
      %1428 = vst [vmem:[%s177 + $0x78] sm:$0x1] %v1427
      %v1429 = vld [vmem:[%s177 + $0x84] sm:$0x1]
      %v1430 = vsel %vm1395, 0, %v1429
      %1431 = vst [vmem:[%s177 + $0x84] sm:$0x1] %v1430
      %v1432 = vld [vmem:[%s177 + $0x90] sm:$0x1]
      %v1433 = vsel %vm1395, 0, %v1432
      %1434 = vst [vmem:[%s177 + $0x90] sm:$0x1] %v1433
      %v1435 = vld [vmem:[%s177 + $0x9c] sm:$0x1]
      %v1436 = vsel %vm1395, 0, %v1435
      %1437 = vst [vmem:[%s177 + $0x9c] sm:$0x1] %v1436
      %v1438 = vld [vmem:[%s177 + $0xa8] sm:$0x1]
      %v1439 = vsel %vm1395, 0, %v1438
      %1440 = vst [vmem:[%s177 + $0xa8] sm:$0x1] %v1439
      %v1441 = vld [vmem:[%s177 + $0xb4] sm:$0x1]
      %v1442 = vsel %vm1395, 0, %v1441
      %1443 = vst [vmem:[%s177 + $0xb4] sm:$0x1] %v1442
      %v1444 = vld [vmem:[%s177 + $0xc0] sm:$0x1]
      %v1445 = vsel %vm1395, 0, %v1444
      %1446 = vst [vmem:[%s177 + $0xc0] sm:$0x1] %v1445
      %v1447 = vld [vmem:[%s177 + $0xcc] sm:$0x1]
      %v1448 = vsel %vm1395, 0, %v1447
      %1449 = vst [vmem:[%s177 + $0xcc] sm:$0x1] %v1448
      %vm1450 = vsmask.f32 7938
      %vm1451 = vmand %vm1393, %vm1450
      %v1452 = vld [vmem:[%s177 + $0x8] sm:$0x1]
      %v1453 = vsel %vm1451, 0, %v1452
      %1454 = vst [vmem:[%s177 + $0x8] sm:$0x1] %v1453
      %v1455 = vld [vmem:[%s177 + $0x14] sm:$0x1]
      %v1456 = vsel %vm1451, 0, %v1455
      %1457 = vst [vmem:[%s177 + $0x14] sm:$0x1] %v1456
      %v1458 = vld [vmem:[%s177 + $0x20] sm:$0x1]
      %v1459 = vsel %vm1451, 0, %v1458
      %1460 = vst [vmem:[%s177 + $0x20] sm:$0x1] %v1459
      %v1461 = vld [vmem:[%s177 + $0x2c] sm:$0x1]
      %v1462 = vsel %vm1451, 0, %v1461
      %1463 = vst [vmem:[%s177 + $0x2c] sm:$0x1] %v1462
      %v1464 = vld [vmem:[%s177 + $0x38] sm:$0x1]
      %v1465 = vsel %vm1451, 0, %v1464
      %1466 = vst [vmem:[%s177 + $0x38] sm:$0x1] %v1465
      %v1467 = vld [vmem:[%s177 + $0x44] sm:$0x1]
      %v1468 = vsel %vm1451, 0, %v1467
      %1469 = vst [vmem:[%s177 + $0x44] sm:$0x1] %v1468
      %v1470 = vld [vmem:[%s177 + $0x50] sm:$0x1]
      %v1471 = vsel %vm1451, 0, %v1470
      %1472 = vst [vmem:[%s177 + $0x50] sm:$0x1] %v1471
      %v1473 = vld [vmem:[%s177 + $0x5c] sm:$0x1]
      %v1474 = vsel %vm1451, 0, %v1473
      %1475 = vst [vmem:[%s177 + $0x5c] sm:$0x1] %v1474
      %v1476 = vld [vmem:[%s177 + $0x68] sm:$0x1]
      %v1477 = vsel %vm1451, 0, %v1476
      %1478 = vst [vmem:[%s177 + $0x68] sm:$0x1] %v1477
      %v1479 = vld [vmem:[%s177 + $0x74] sm:$0x1]
      %v1480 = vsel %vm1451, 0, %v1479
      %1481 = vst [vmem:[%s177 + $0x74] sm:$0x1] %v1480
      %v1482 = vld [vmem:[%s177 + $0x80] sm:$0x1]
      %v1483 = vsel %vm1451, 0, %v1482
      %1484 = vst [vmem:[%s177 + $0x80] sm:$0x1] %v1483
      %v1485 = vld [vmem:[%s177 + $0x8c] sm:$0x1]
      %v1486 = vsel %vm1451, 0, %v1485
      %1487 = vst [vmem:[%s177 + $0x8c] sm:$0x1] %v1486
      %v1488 = vld [vmem:[%s177 + $0x98] sm:$0x1]
      %v1489 = vsel %vm1451, 0, %v1488
      %1490 = vst [vmem:[%s177 + $0x98] sm:$0x1] %v1489
      %v1491 = vld [vmem:[%s177 + $0xa4] sm:$0x1]
      %v1492 = vsel %vm1451, 0, %v1491
      %1493 = vst [vmem:[%s177 + $0xa4] sm:$0x1] %v1492
      %v1494 = vld [vmem:[%s177 + $0xb0] sm:$0x1]
      %v1495 = vsel %vm1451, 0, %v1494
      %1496 = vst [vmem:[%s177 + $0xb0] sm:$0x1] %v1495
      %v1497 = vld [vmem:[%s177 + $0xbc] sm:$0x1]
      %v1498 = vsel %vm1451, 0, %v1497
      %1499 = vst [vmem:[%s177 + $0xbc] sm:$0x1] %v1498
      %v1500 = vld [vmem:[%s177 + $0xc8] sm:$0x1]
      %v1501 = vsel %vm1451, 0, %v1500
      %1502 = vst [vmem:[%s177 + $0xc8] sm:$0x1] %v1501
      %v1503 = vld [vmem:[%s177 + $0xd4] sm:$0x1]
      %v1504 = vsel %vm1451, 0, %v1503
      %1505 = vst [vmem:[%s177 + $0xd4] sm:$0x1] %v1504
      %v1506 = vpack.c.bf16 %v1353, %v1352
      %v1507 = vpack.c.bf16 %v1355, %v1354
      %v1508 = vpack.c.bf16 %v1357, %v1356
      %v1509 = vpack.c.bf16 %v1359, %v1358
      %v1510 = vpack.c.bf16 %v1361, %v1360
      %v1511 = vpack.c.bf16 %v1363, %v1362
      %v1512 = vpack.c.bf16 %v1365, %v1364
      %v1513 = vpack.c.bf16 %v1367, %v1366
      %v1514 = vpack.c.bf16 %v1369, %v1368
      %v1515 = vpack.c.bf16 %v1371, %v1370
      %v1516 = vpack.c.bf16 %v1373, %v1372
      %v1517 = vpack.c.bf16 %v1375, %v1374
      %v1518 = vpack.c.bf16 %v1377, %v1376
      %v1519 = vpack.c.bf16 %v1379, %v1378
      %v1520 = vpack.c.bf16 %v1381, %v1380
      %v1521 = vpack.c.bf16 %v1383, %v1382
      %v1538 = vunpack.c.l.b16 %v1506
      %v1539 = vunpack.c.h.b16 %v1506
      %v1540 = vunpack.c.l.b16 %v1507
      %v1541 = vunpack.c.h.b16 %v1507
      %v1542 = vunpack.c.l.b16 %v1508
      %v1543 = vunpack.c.h.b16 %v1508
      %v1544 = vunpack.c.l.b16 %v1509
      %v1545 = vunpack.c.h.b16 %v1509
      %v1546 = vunpack.c.l.b16 %v1510
      %v1547 = vunpack.c.h.b16 %v1510
      %v1548 = vunpack.c.l.b16 %v1511
      %v1549 = vunpack.c.h.b16 %v1511
      %v1550 = vunpack.c.l.b16 %v1512
      %v1551 = vunpack.c.h.b16 %v1512
      %v1552 = vunpack.c.l.b16 %v1513
      %v1553 = vunpack.c.h.b16 %v1513
      %v1554 = vunpack.c.l.b16 %v1514
      %v1555 = vunpack.c.h.b16 %v1514
      %v1556 = vunpack.c.l.b16 %v1515
      %v1557 = vunpack.c.h.b16 %v1515
      %v1558 = vunpack.c.l.b16 %v1516
      %v1559 = vunpack.c.h.b16 %v1516
      %v1560 = vunpack.c.l.b16 %v1517
      %v1561 = vunpack.c.h.b16 %v1517
      %v1562 = vunpack.c.l.b16 %v1518
      %v1563 = vunpack.c.h.b16 %v1518
      %v1564 = vunpack.c.l.b16 %v1519
      %v1565 = vunpack.c.h.b16 %v1519
      %v1566 = vunpack.c.l.b16 %v1520
      %v1567 = vunpack.c.h.b16 %v1520
      %v1568 = vunpack.c.l.b16 %v1521
      %v1569 = vunpack.c.h.b16 %v1521
      %v1570 = vpack.c.b16 %v1538, %v1538
      %v1571 = vpack.c.b16 %v1539, %v1539
      %v1572 = vpack.c.b16 %v1540, %v1540
      %v1573 = vpack.c.b16 %v1541, %v1541
      %v1574 = vpack.c.b16 %v1542, %v1542
      %v1575 = vpack.c.b16 %v1543, %v1543
      %v1576 = vpack.c.b16 %v1544, %v1544
      %v1577 = vpack.c.b16 %v1545, %v1545
      %v1578 = vpack.c.b16 %v1546, %v1546
      %v1579 = vpack.c.b16 %v1547, %v1547
      %v1580 = vpack.c.b16 %v1548, %v1548
      %v1581 = vpack.c.b16 %v1549, %v1549
      %v1582 = vpack.c.b16 %v1550, %v1550
      %v1583 = vpack.c.b16 %v1551, %v1551
      %v1584 = vpack.c.b16 %v1552, %v1552
      %v1585 = vpack.c.b16 %v1553, %v1553
      %v1586 = vpack.c.b16 %v1554, %v1554
      %v1587 = vpack.c.b16 %v1555, %v1555
      %v1588 = vpack.c.b16 %v1556, %v1556
      %v1589 = vpack.c.b16 %v1557, %v1557
      %v1590 = vpack.c.b16 %v1558, %v1558
      %v1591 = vpack.c.b16 %v1559, %v1559
      %v1592 = vpack.c.b16 %v1560, %v1560
      %v1593 = vpack.c.b16 %v1561, %v1561
      %v1594 = vpack.c.b16 %v1562, %v1562
      %v1595 = vpack.c.b16 %v1563, %v1563
      %v1596 = vpack.c.b16 %v1564, %v1564
      %v1597 = vpack.c.b16 %v1565, %v1565
      %v1598 = vpack.c.b16 %v1566, %v1566
      %v1599 = vpack.c.b16 %v1567, %v1567
      %v1600 = vpack.c.b16 %v1568, %v1568
      %v1601 = vpack.c.b16 %v1569, %v1569
      %vm1602 = vsmask.f32 4368
      %vm1603 = vmor %vm1394, %vm1602
      %v1605 = vshrl.u32 %v1570, 16
      %v1607 = vrot.slane %v1605, 7
      %v1608 = vshll.u32 %v1570, 16
      %v1610 = vor.u32 %v1607, %v1608
      %v1611 = vrot.slane %v1607, 4
      %v1613 = vshrl.u32 %v1571, 16
      %v1615 = vrot.slane %v1613, 7
      %v1616 = vshll.u32 %v1571, 16
      %v1618 = vor.u32 %v1615, %v1616
      %v1619 = vsel %vm1603, %v1611, %v1618
      %v1620 = vrot.slane %v1615, 4
      %v1622 = vshrl.u32 %v1572, 16
      %v1624 = vrot.slane %v1622, 7
      %v1625 = vshll.u32 %v1572, 16
      %v1627 = vor.u32 %v1624, %v1625
      %v1628 = vrot.slane %v1624, 4
      %v1630 = vshrl.u32 %v1573, 16
      %v1632 = vrot.slane %v1630, 7
      %v1633 = vshll.u32 %v1573, 16
      %v1635 = vor.u32 %v1632, %v1633
      %v1636 = vsel %vm1603, %v1628, %v1635
      %v1637 = vrot.slane %v1632, 4
      %v1639 = vshrl.u32 %v1574, 16
      %v1641 = vrot.slane %v1639, 7
      %v1642 = vshll.u32 %v1574, 16
      %v1644 = vor.u32 %v1641, %v1642
      %v1645 = vrot.slane %v1641, 4
      %v1647 = vshrl.u32 %v1575, 16
      %v1649 = vrot.slane %v1647, 7
      %v1650 = vshll.u32 %v1575, 16
      %v1652 = vor.u32 %v1649, %v1650
      %v1653 = vsel %vm1603, %v1645, %v1652
      %v1654 = vrot.slane %v1649, 4
      %v1656 = vshrl.u32 %v1576, 16
      %v1658 = vrot.slane %v1656, 7
      %v1659 = vshll.u32 %v1576, 16
      %v1661 = vor.u32 %v1658, %v1659
      %v1662 = vrot.slane %v1658, 4
      %v1664 = vshrl.u32 %v1577, 16
      %v1666 = vrot.slane %v1664, 7
      %v1667 = vshll.u32 %v1577, 16
      %v1669 = vor.u32 %v1666, %v1667
      %v1670 = vsel %vm1603, %v1662, %v1669
      %v1671 = vrot.slane %v1666, 4
      %v1673 = vshrl.u32 %v1578, 16
      %v1675 = vrot.slane %v1673, 7
      %v1676 = vshll.u32 %v1578, 16
      %v1678 = vor.u32 %v1675, %v1676
      %v1679 = vrot.slane %v1675, 4
      %v1681 = vshrl.u32 %v1579, 16
      %v1683 = vrot.slane %v1681, 7
      %v1684 = vshll.u32 %v1579, 16
      %v1686 = vor.u32 %v1683, %v1684
      %v1687 = vsel %vm1603, %v1679, %v1686
      %v1688 = vrot.slane %v1683, 4
      %v1690 = vshrl.u32 %v1580, 16
      %v1692 = vrot.slane %v1690, 7
      %v1693 = vshll.u32 %v1580, 16
      %v1695 = vor.u32 %v1692, %v1693
      %v1696 = vrot.slane %v1692, 4
      %v1698 = vshrl.u32 %v1581, 16
      %v1700 = vrot.slane %v1698, 7
      %v1701 = vshll.u32 %v1581, 16
      %v1703 = vor.u32 %v1700, %v1701
      %v1704 = vsel %vm1603, %v1696, %v1703
      %v1705 = vrot.slane %v1700, 4
      %v1707 = vshrl.u32 %v1582, 16
      %v1709 = vrot.slane %v1707, 7
      %v1710 = vshll.u32 %v1582, 16
      %v1712 = vor.u32 %v1709, %v1710
      %v1713 = vrot.slane %v1709, 4
      %v1715 = vshrl.u32 %v1583, 16
      %v1717 = vrot.slane %v1715, 7
      %v1718 = vshll.u32 %v1583, 16
      %v1720 = vor.u32 %v1717, %v1718
      %v1721 = vsel %vm1603, %v1713, %v1720
      %v1722 = vrot.slane %v1717, 4
      %v1724 = vshrl.u32 %v1584, 16
      %v1726 = vrot.slane %v1724, 7
      %v1727 = vshll.u32 %v1584, 16
      %v1729 = vor.u32 %v1726, %v1727
      %v1730 = vrot.slane %v1726, 4
      %v1732 = vshrl.u32 %v1585, 16
      %v1734 = vrot.slane %v1732, 7
      %v1735 = vshll.u32 %v1585, 16
      %v1737 = vor.u32 %v1734, %v1735
      %v1738 = vsel %vm1603, %v1730, %v1737
      %v1739 = vrot.slane %v1734, 4
      %v1741 = vshrl.u32 %v1586, 16
      %v1743 = vrot.slane %v1741, 7
      %v1744 = vshll.u32 %v1586, 16
      %v1746 = vor.u32 %v1743, %v1744
      %v1747 = vrot.slane %v1743, 4
      %v1749 = vshrl.u32 %v1587, 16
      %v1751 = vrot.slane %v1749, 7
      %v1752 = vshll.u32 %v1587, 16
      %v1754 = vor.u32 %v1751, %v1752
      %v1755 = vsel %vm1603, %v1747, %v1754
      %v1756 = vrot.slane %v1751, 4
      %v1758 = vshrl.u32 %v1588, 16
      %v1760 = vrot.slane %v1758, 7
      %v1761 = vshll.u32 %v1588, 16
      %v1763 = vor.u32 %v1760, %v1761
      %v1764 = vrot.slane %v1760, 4
      %v1766 = vshrl.u32 %v1589, 16
      %v1768 = vrot.slane %v1766, 7
      %v1769 = vshll.u32 %v1589, 16
      %v1771 = vor.u32 %v1768, %v1769
      %v1772 = vsel %vm1603, %v1764, %v1771
      %v1773 = vrot.slane %v1768, 4
      %v1775 = vshrl.u32 %v1590, 16
      %v1777 = vrot.slane %v1775, 7
      %v1778 = vshll.u32 %v1590, 16
      %v1780 = vor.u32 %v1777, %v1778
      %v1781 = vrot.slane %v1777, 4
      %v1783 = vshrl.u32 %v1591, 16
      %v1785 = vrot.slane %v1783, 7
      %v1786 = vshll.u32 %v1591, 16
      %v1788 = vor.u32 %v1785, %v1786
      %v1789 = vsel %vm1603, %v1781, %v1788
      %v1790 = vrot.slane %v1785, 4
      %v1792 = vshrl.u32 %v1592, 16
      %v1794 = vrot.slane %v1792, 7
      %v1795 = vshll.u32 %v1592, 16
      %v1797 = vor.u32 %v1794, %v1795
      %v1798 = vrot.slane %v1794, 4
      %v1800 = vshrl.u32 %v1593, 16
      %v1802 = vrot.slane %v1800, 7
      %v1803 = vshll.u32 %v1593, 16
      %v1805 = vor.u32 %v1802, %v1803
      %v1806 = vsel %vm1603, %v1798, %v1805
      %v1807 = vrot.slane %v1802, 4
      %v1809 = vshrl.u32 %v1594, 16
      %v1811 = vrot.slane %v1809, 7
      %v1812 = vshll.u32 %v1594, 16
      %v1814 = vor.u32 %v1811, %v1812
      %v1815 = vrot.slane %v1811, 4
      %v1817 = vshrl.u32 %v1595, 16
      %v1819 = vrot.slane %v1817, 7
      %v1820 = vshll.u32 %v1595, 16
      %v1822 = vor.u32 %v1819, %v1820
      %v1823 = vsel %vm1603, %v1815, %v1822
      %v1824 = vrot.slane %v1819, 4
      %v1826 = vshrl.u32 %v1596, 16
      %v1828 = vrot.slane %v1826, 7
      %v1829 = vshll.u32 %v1596, 16
      %v1831 = vor.u32 %v1828, %v1829
      %v1832 = vrot.slane %v1828, 4
      %v1834 = vshrl.u32 %v1597, 16
      %v1836 = vrot.slane %v1834, 7
      %v1837 = vshll.u32 %v1597, 16
      %v1839 = vor.u32 %v1836, %v1837
      %v1840 = vsel %vm1603, %v1832, %v1839
      %v1841 = vrot.slane %v1836, 4
      %v1843 = vshrl.u32 %v1598, 16
      %v1845 = vrot.slane %v1843, 7
      %v1846 = vshll.u32 %v1598, 16
      %v1848 = vor.u32 %v1845, %v1846
      %v1849 = vrot.slane %v1845, 4
      %v1851 = vshrl.u32 %v1599, 16
      %v1853 = vrot.slane %v1851, 7
      %v1854 = vshll.u32 %v1599, 16
      %v1856 = vor.u32 %v1853, %v1854
      %v1857 = vsel %vm1603, %v1849, %v1856
      %v1858 = vrot.slane %v1853, 4
      %v1860 = vshrl.u32 %v1600, 16
      %v1862 = vrot.slane %v1860, 7
      %v1863 = vshll.u32 %v1600, 16
      %v1865 = vor.u32 %v1862, %v1863
      %v1866 = vrot.slane %v1862, 4
      %v1868 = vshrl.u32 %v1601, 16
      %v1870 = vrot.slane %v1868, 7
      %v1871 = vshll.u32 %v1601, 16
      %v1873 = vor.u32 %v1870, %v1871
      %v1874 = vsel %vm1603, %v1866, %v1873
      %v1875 = vrot.slane %v1870, 4
      %s1924 = scalar_lea.vmem %s177, 12
      %vm1925 = vcmask 27648
      %vm1926 = vmand %vm1925, %vm1450
      %v1927 = vld [vmem:[%s1924] sm:$0xf]
      %v1928 = vsel %vm1926, %v1610, %v1927
      %1929 = vst [vmem:[%s1924] sm:$0xf] %v1928
      %1930 = vst.msk [vmem:[%s1924 + $0x4] sm:$0xf] %vm1384, %v1619
      %v1931 = vld [vmem:[%s1924 + $0x8] sm:$0x1]
      %v1932 = vsel %vm1395, %v1620, %v1931
      %1933 = vst [vmem:[%s1924 + $0x8] sm:$0x1] %v1932
      %v1934 = vld [vmem:[%s1924 + $0xc] sm:$0xf]
      %v1935 = vsel %vm1926, %v1627, %v1934
      %1936 = vst [vmem:[%s1924 + $0xc] sm:$0xf] %v1935
      %1937 = vst.msk [vmem:[%s1924 + $0x10] sm:$0xf] %vm1384, %v1636
      %v1938 = vld [vmem:[%s1924 + $0x14] sm:$0x1]
      %v1939 = vsel %vm1395, %v1637, %v1938
      %1940 = vst [vmem:[%s1924 + $0x14] sm:$0x1] %v1939
      %v1941 = vld [vmem:[%s1924 + $0x18] sm:$0xf]
      %v1942 = vsel %vm1926, %v1644, %v1941
      %1943 = vst [vmem:[%s1924 + $0x18] sm:$0xf] %v1942
      %1944 = vst.msk [vmem:[%s1924 + $0x1c] sm:$0xf] %vm1384, %v1653
      %v1945 = vld [vmem:[%s1924 + $0x20] sm:$0x1]
      %v1946 = vsel %vm1395, %v1654, %v1945
      %1947 = vst [vmem:[%s1924 + $0x20] sm:$0x1] %v1946
      %v1948 = vld [vmem:[%s1924 + $0x24] sm:$0xf]
      %v1949 = vsel %vm1926, %v1661, %v1948
      %1950 = vst [vmem:[%s1924 + $0x24] sm:$0xf] %v1949
      %1951 = vst.msk [vmem:[%s1924 + $0x28] sm:$0xf] %vm1384, %v1670
      %v1952 = vld [vmem:[%s1924 + $0x2c] sm:$0x1]
      %v1953 = vsel %vm1395, %v1671, %v1952
      %1954 = vst [vmem:[%s1924 + $0x2c] sm:$0x1] %v1953
      %v1955 = vld [vmem:[%s1924 + $0x30] sm:$0xf]
      %v1956 = vsel %vm1926, %v1678, %v1955
      %1957 = vst [vmem:[%s1924 + $0x30] sm:$0xf] %v1956
      %1958 = vst.msk [vmem:[%s1924 + $0x34] sm:$0xf] %vm1384, %v1687
      %v1959 = vld [vmem:[%s1924 + $0x38] sm:$0x1]
      %v1960 = vsel %vm1395, %v1688, %v1959
      %1961 = vst [vmem:[%s1924 + $0x38] sm:$0x1] %v1960
      %v1962 = vld [vmem:[%s1924 + $0x3c] sm:$0xf]
      %v1963 = vsel %vm1926, %v1695, %v1962
      %1964 = vst [vmem:[%s1924 + $0x3c] sm:$0xf] %v1963
      %1965 = vst.msk [vmem:[%s1924 + $0x40] sm:$0xf] %vm1384, %v1704
      %v1966 = vld [vmem:[%s1924 + $0x44] sm:$0x1]
      %v1967 = vsel %vm1395, %v1705, %v1966
      %1968 = vst [vmem:[%s1924 + $0x44] sm:$0x1] %v1967
      %v1969 = vld [vmem:[%s1924 + $0x48] sm:$0xf]
      %v1970 = vsel %vm1926, %v1712, %v1969
      %1971 = vst [vmem:[%s1924 + $0x48] sm:$0xf] %v1970
      %1972 = vst.msk [vmem:[%s1924 + $0x4c] sm:$0xf] %vm1384, %v1721
      %v1973 = vld [vmem:[%s1924 + $0x50] sm:$0x1]
      %v1974 = vsel %vm1395, %v1722, %v1973
      %1975 = vst [vmem:[%s1924 + $0x50] sm:$0x1] %v1974
      %v1976 = vld [vmem:[%s1924 + $0x54] sm:$0xf]
      %v1977 = vsel %vm1926, %v1729, %v1976
      %1978 = vst [vmem:[%s1924 + $0x54] sm:$0xf] %v1977
      %1979 = vst.msk [vmem:[%s1924 + $0x58] sm:$0xf] %vm1384, %v1738
      %v1980 = vld [vmem:[%s1924 + $0x5c] sm:$0x1]
      %v1981 = vsel %vm1395, %v1739, %v1980
      %1982 = vst [vmem:[%s1924 + $0x5c] sm:$0x1] %v1981
      %v1983 = vld [vmem:[%s1924 + $0x60] sm:$0xf]
      %v1984 = vsel %vm1926, %v1746, %v1983
      %1985 = vst [vmem:[%s1924 + $0x60] sm:$0xf] %v1984
      %1986 = vst.msk [vmem:[%s1924 + $0x64] sm:$0xf] %vm1384, %v1755
      %v1987 = vld [vmem:[%s1924 + $0x68] sm:$0x1]
      %v1988 = vsel %vm1395, %v1756, %v1987
      %1989 = vst [vmem:[%s1924 + $0x68] sm:$0x1] %v1988
      %v1990 = vld [vmem:[%s1924 + $0x6c] sm:$0xf]
      %v1991 = vsel %vm1926, %v1763, %v1990
      %1992 = vst [vmem:[%s1924 + $0x6c] sm:$0xf] %v1991
      %1993 = vst.msk [vmem:[%s1924 + $0x70] sm:$0xf] %vm1384, %v1772
      %v1994 = vld [vmem:[%s1924 + $0x74] sm:$0x1]
      %v1995 = vsel %vm1395, %v1773, %v1994
      %1996 = vst [vmem:[%s1924 + $0x74] sm:$0x1] %v1995
      %v1997 = vld [vmem:[%s1924 + $0x78] sm:$0xf]
      %v1998 = vsel %vm1926, %v1780, %v1997
      %1999 = vst [vmem:[%s1924 + $0x78] sm:$0xf] %v1998
      %2000 = vst.msk [vmem:[%s1924 + $0x7c] sm:$0xf] %vm1384, %v1789
      %v2001 = vld [vmem:[%s1924 + $0x80] sm:$0x1]
      %v2002 = vsel %vm1395, %v1790, %v2001
      %2003 = vst [vmem:[%s1924 + $0x80] sm:$0x1] %v2002
      %v2004 = vld [vmem:[%s1924 + $0x84] sm:$0xf]
      %v2005 = vsel %vm1926, %v1797, %v2004
      %2006 = vst [vmem:[%s1924 + $0x84] sm:$0xf] %v2005
      %2007 = vst.msk [vmem:[%s1924 + $0x88] sm:$0xf] %vm1384, %v1806
      %v2008 = vld [vmem:[%s1924 + $0x8c] sm:$0x1]
      %v2009 = vsel %vm1395, %v1807, %v2008
      %2010 = vst [vmem:[%s1924 + $0x8c] sm:$0x1] %v2009
      %v2011 = vld [vmem:[%s1924 + $0x90] sm:$0xf]
      %v2012 = vsel %vm1926, %v1814, %v2011
      %2013 = vst [vmem:[%s1924 + $0x90] sm:$0xf] %v2012
      %2014 = vst.msk [vmem:[%s1924 + $0x94] sm:$0xf] %vm1384, %v1823
      %v2015 = vld [vmem:[%s1924 + $0x98] sm:$0x1]
      %v2016 = vsel %vm1395, %v1824, %v2015
      %2017 = vst [vmem:[%s1924 + $0x98] sm:$0x1] %v2016
      %v2018 = vld [vmem:[%s1924 + $0x9c] sm:$0xf]
      %v2019 = vsel %vm1926, %v1831, %v2018
      %2020 = vst [vmem:[%s1924 + $0x9c] sm:$0xf] %v2019
      %2021 = vst.msk [vmem:[%s1924 + $0xa0] sm:$0xf] %vm1384, %v1840
      %v2022 = vld [vmem:[%s1924 + $0xa4] sm:$0x1]
      %v2023 = vsel %vm1395, %v1841, %v2022
      %2024 = vst [vmem:[%s1924 + $0xa4] sm:$0x1] %v2023
      %v2025 = vld [vmem:[%s1924 + $0xa8] sm:$0xf]
      %v2026 = vsel %vm1926, %v1848, %v2025
      %2027 = vst [vmem:[%s1924 + $0xa8] sm:$0xf] %v2026
      %2028 = vst.msk [vmem:[%s1924 + $0xac] sm:$0xf] %vm1384, %v1857
      %v2029 = vld [vmem:[%s1924 + $0xb0] sm:$0x1]
      %v2030 = vsel %vm1395, %v1858, %v2029
      %2031 = vst [vmem:[%s1924 + $0xb0] sm:$0x1] %v2030
      %v2032 = vld [vmem:[%s1924 + $0xb4] sm:$0xf]
      %v2033 = vsel %vm1926, %v1865, %v2032
      %2034 = vst [vmem:[%s1924 + $0xb4] sm:$0xf] %v2033
      %2035 = vst.msk [vmem:[%s1924 + $0xb8] sm:$0xf] %vm1384, %v1874
      %v2036 = vld [vmem:[%s1924 + $0xbc] sm:$0x1]
      %v2037 = vsel %vm1395, %v1875, %v2036
      %2038 = vst [vmem:[%s1924 + $0xbc] sm:$0x1] %v2037
      %v2039 = vsel %vm671, %v1352, 0.0
      %v2040 = vsel %vm671, %v1353, 0.0
      %v2041 = vadd.f32 %v2039, %v2040
      %v2042 = vsel %vm671, %v1354, 0.0
      %v2043 = vadd.f32 %v2041, %v2042
      %v2044 = vsel %vm671, %v1355, 0.0
      %v2045 = vadd.f32 %v2043, %v2044
      %v2046 = vsel %vm671, %v1356, 0.0
      %v2047 = vadd.f32 %v2045, %v2046
      %v2048 = vsel %vm671, %v1357, 0.0
      %v2049 = vadd.f32 %v2047, %v2048
      %v2050 = vsel %vm671, %v1358, 0.0
      %v2051 = vadd.f32 %v2049, %v2050
      %v2052 = vsel %vm671, %v1359, 0.0
      %v2053 = vadd.f32 %v2051, %v2052
      %v2054 = vsel %vm671, %v1360, 0.0
      %v2055 = vadd.f32 %v2053, %v2054
      %v2056 = vsel %vm671, %v1361, 0.0
      %v2057 = vadd.f32 %v2055, %v2056
      %v2058 = vsel %vm671, %v1362, 0.0
      %v2059 = vadd.f32 %v2057, %v2058
      %v2060 = vsel %vm671, %v1363, 0.0
      %v2061 = vadd.f32 %v2059, %v2060
      %v2062 = vsel %vm671, %v1364, 0.0
      %v2063 = vadd.f32 %v2061, %v2062
      %v2064 = vsel %vm671, %v1365, 0.0
      %v2065 = vadd.f32 %v2063, %v2064
      %v2066 = vsel %vm671, %v1366, 0.0
      %v2067 = vadd.f32 %v2065, %v2066
      %v2068 = vsel %vm671, %v1367, 0.0
      %v2069 = vadd.f32 %v2067, %v2068
      %v2070 = vsel %vm671, %v1368, 0.0
      %v2071 = vadd.f32 %v2069, %v2070
      %v2072 = vsel %vm671, %v1369, 0.0
      %v2073 = vadd.f32 %v2071, %v2072
      %v2074 = vsel %vm671, %v1370, 0.0
      %v2075 = vadd.f32 %v2073, %v2074
      %v2076 = vsel %vm671, %v1371, 0.0
      %v2077 = vadd.f32 %v2075, %v2076
      %v2078 = vsel %vm671, %v1372, 0.0
      %v2079 = vadd.f32 %v2077, %v2078
      %v2080 = vsel %vm671, %v1373, 0.0
      %v2081 = vadd.f32 %v2079, %v2080
      %v2082 = vsel %vm671, %v1374, 0.0
      %v2083 = vadd.f32 %v2081, %v2082
      %v2084 = vsel %vm671, %v1375, 0.0
      %v2085 = vadd.f32 %v2083, %v2084
      %v2086 = vsel %vm671, %v1376, 0.0
      %v2087 = vadd.f32 %v2085, %v2086
      %v2088 = vsel %vm671, %v1377, 0.0
      %v2089 = vadd.f32 %v2087, %v2088
      %v2090 = vsel %vm671, %v1378, 0.0
      %v2091 = vadd.f32 %v2089, %v2090
      %v2092 = vsel %vm671, %v1379, 0.0
      %v2093 = vadd.f32 %v2091, %v2092
      %v2094 = vsel %vm671, %v1380, 0.0
      %v2095 = vadd.f32 %v2093, %v2094
      %v2096 = vsel %vm671, %v1381, 0.0
      %v2097 = vadd.f32 %v2095, %v2096
      %v2098 = vsel %vm671, %v1382, 0.0
      %v2099 = vadd.f32 %v2097, %v2098
      %v2100 = vsel %vm671, %v1383, 0.0
      %v2101 = vadd.f32 %v2099, %v2100
      %v2102 = vrot.slane %v2101, 4
      %v2103 = vadd.f32 %v2101, %v2102
      %v2104 = vrot.slane %v2103, 2
      %v2105 = vadd.f32 %v2103, %v2104
      %v2106 = vrot.slane %v2105, 1
      %v2107 = vadd.f32 %v2105, %v2106
      %2108 = vst.msk [vmem:[%s181] sm:$0x1] %vm1387, %v2107
      %v2109 = vmul.f32 %v1352, %v1352
      %v2110 = vmul.f32 %v1353, %v1353
      %v2111 = vmul.f32 %v1354, %v1354
      %v2112 = vmul.f32 %v1355, %v1355
      %v2113 = vmul.f32 %v1356, %v1356
      %v2114 = vmul.f32 %v1357, %v1357
      %v2115 = vmul.f32 %v1358, %v1358
      %v2116 = vmul.f32 %v1359, %v1359
      %v2117 = vmul.f32 %v1360, %v1360
      %v2118 = vmul.f32 %v1361, %v1361
      %v2119 = vmul.f32 %v1362, %v1362
      %v2120 = vmul.f32 %v1363, %v1363
      %v2121 = vmul.f32 %v1364, %v1364
      %v2122 = vmul.f32 %v1365, %v1365
      %v2123 = vmul.f32 %v1366, %v1366
      %v2124 = vmul.f32 %v1367, %v1367
      %v2125 = vmul.f32 %v1368, %v1368
      %v2126 = vmul.f32 %v1369, %v1369
      %v2127 = vmul.f32 %v1370, %v1370
      %v2128 = vmul.f32 %v1371, %v1371
      %v2129 = vmul.f32 %v1372, %v1372
      %v2130 = vmul.f32 %v1373, %v1373
      %v2131 = vmul.f32 %v1374, %v1374
      %v2132 = vmul.f32 %v1375, %v1375
      %v2133 = vmul.f32 %v1376, %v1376
      %v2134 = vmul.f32 %v1377, %v1377
      %v2135 = vmul.f32 %v1378, %v1378
      %v2136 = vmul.f32 %v1379, %v1379
      %v2137 = vmul.f32 %v1380, %v1380
      %v2138 = vmul.f32 %v1381, %v1381
      %v2139 = vmul.f32 %v1382, %v1382
      %v2140 = vmul.f32 %v1383, %v1383
      %v2141 = vsel %vm671, %v2109, 0.0
      %v2142 = vsel %vm671, %v2110, 0.0
      %v2143 = vadd.f32 %v2141, %v2142
      %v2144 = vsel %vm671, %v2111, 0.0
      %v2145 = vadd.f32 %v2143, %v2144
      %v2146 = vsel %vm671, %v2112, 0.0
      %v2147 = vadd.f32 %v2145, %v2146
      %v2148 = vsel %vm671, %v2113, 0.0
      %v2149 = vadd.f32 %v2147, %v2148
      %v2150 = vsel %vm671, %v2114, 0.0
      %v2151 = vadd.f32 %v2149, %v2150
      %v2152 = vsel %vm671, %v2115, 0.0
      %v2153 = vadd.f32 %v2151, %v2152
      %v2154 = vsel %vm671, %v2116, 0.0
      %v2155 = vadd.f32 %v2153, %v2154
      %v2156 = vsel %vm671, %v2117, 0.0
      %v2157 = vadd.f32 %v2155, %v2156
      %v2158 = vsel %vm671, %v2118, 0.0
      %v2159 = vadd.f32 %v2157, %v2158
      %v2160 = vsel %vm671, %v2119, 0.0
      %v2161 = vadd.f32 %v2159, %v2160
      %v2162 = vsel %vm671, %v2120, 0.0
      %v2163 = vadd.f32 %v2161, %v2162
      %v2164 = vsel %vm671, %v2121, 0.0
      %v2165 = vadd.f32 %v2163, %v2164
      %v2166 = vsel %vm671, %v2122, 0.0
      %v2167 = vadd.f32 %v2165, %v2166
      %v2168 = vsel %vm671, %v2123, 0.0
      %v2169 = vadd.f32 %v2167, %v2168
      %v2170 = vsel %vm671, %v2124, 0.0
      %v2171 = vadd.f32 %v2169, %v2170
      %v2172 = vsel %vm671, %v2125, 0.0
      %v2173 = vadd.f32 %v2171, %v2172
      %v2174 = vsel %vm671, %v2126, 0.0
      %v2175 = vadd.f32 %v2173, %v2174
      %v2176 = vsel %vm671, %v2127, 0.0
      %v2177 = vadd.f32 %v2175, %v2176
      %v2178 = vsel %vm671, %v2128, 0.0
      %v2179 = vadd.f32 %v2177, %v2178
      %v2180 = vsel %vm671, %v2129, 0.0
      %v2181 = vadd.f32 %v2179, %v2180
      %v2182 = vsel %vm671, %v2130, 0.0
      %v2183 = vadd.f32 %v2181, %v2182
      %v2184 = vsel %vm671, %v2131, 0.0
      %v2185 = vadd.f32 %v2183, %v2184
      %v2186 = vsel %vm671, %v2132, 0.0
      %v2187 = vadd.f32 %v2185, %v2186
      %v2188 = vsel %vm671, %v2133, 0.0
      %v2189 = vadd.f32 %v2187, %v2188
      %v2190 = vsel %vm671, %v2134, 0.0
      %v2191 = vadd.f32 %v2189, %v2190
      %v2192 = vsel %vm671, %v2135, 0.0
      %v2193 = vadd.f32 %v2191, %v2192
      %v2194 = vsel %vm671, %v2136, 0.0
      %v2195 = vadd.f32 %v2193, %v2194
      %v2196 = vsel %vm671, %v2137, 0.0
      %v2197 = vadd.f32 %v2195, %v2196
      %v2198 = vsel %vm671, %v2138, 0.0
      %v2199 = vadd.f32 %v2197, %v2198
      %v2200 = vsel %vm671, %v2139, 0.0
      %v2201 = vadd.f32 %v2199, %v2200
      %v2202 = vsel %vm671, %v2140, 0.0
      %v2203 = vadd.f32 %v2201, %v2202
      %v2204 = vrot.slane %v2203, 4
      %v2205 = vadd.f32 %v2203, %v2204
      %v2206 = vrot.slane %v2205, 2
      %v2207 = vadd.f32 %v2205, %v2206
      %v2208 = vrot.slane %v2207, 1
      %v2209 = vadd.f32 %v2207, %v2208
      %2210 = vst.msk [vmem:[%s181 + $0x1] sm:$0x1] %vm1387, %v2209
      %p2211 = scmp.lt.s32.totalorder %s15, 1
      %s2212 = scalar_select %p2211, %s15, 1
      %s2213 = smul.addr %s2212, 54
      %s2214 = smul.addr %s2213, 4
      %s2215 = scalar_lea.vmem %s2, %s2214
      %p2216 = scmp.lt.s32.totalorder %s15, 1
      %s2217 = scalar_select %p2216, %s15, 1
      %s2218 = smul.addr %s2217, 2
      %s2219 = scalar_lea.vmem %s3, %s2218
      // Predicated region
      $region29: #{basic_block_forward_nhwc.3} parent=27 // pred_check
        %p2220 = pneg %p80
      $region30: #{basic_block_forward_nhwc.3} parent=27 // pred_check_branch
        %2222 = sbr.rel (%p2220) target = $region32
      $region31: #{basic_block_forward_nhwc.3} parent=27 // pred_region
        _
      $region32: #{basic_block_forward_nhwc.3} parent=27 // pred_fallthru
        _
      // Predicated region
      $region33: #{basic_block_forward_nhwc.3} parent=27 // pred_check
        %p2223 = pneg %p106
      $region34: #{basic_block_forward_nhwc.3} parent=27 // pred_check_branch
        %2225 = sbr.rel (%p2223) target = $region36
      $region35: #{basic_block_forward_nhwc.3} parent=27 // pred_region
        _
      $region36: #{basic_block_forward_nhwc.3} parent=27 // pred_fallthru
        _
    $region28: #{basic_block_forward_nhwc.3} parent=5 // pred_fallthru
      _
    %p2226 = scmp.le.s32.totalorder 2, %s10
    // Predicated region
    $region37: #{basic_block_forward_nhwc.3} parent=5 // pred_check
      %p2227 = pneg %p2226
    $region38: #{basic_block_forward_nhwc.3} parent=5 // pred_check_branch
      %2229 = sbr.rel (%p2227) target = $region40
    $region39: #{basic_block_forward_nhwc.3} parent=5 // pred_region
      %s2230 = ssub.s32 %s10, 2
      // Predicated region
      $region41: #{basic_block_forward_nhwc.3} parent=39 // pred_check
        %p2231 = pneg %p86
      $region42: #{basic_block_forward_nhwc.3} parent=39 // pred_check_branch
        %2233 = sbr.rel (%p2231) target = $region44
      $region43: #{basic_block_forward_nhwc.3} parent=39 // pred_region
        %p2234 = scmp.lt.s32.totalorder %s16, 1
        %s2235 = scalar_select %p2234, %s16, 1
        %s2236 = smul.addr %s2235, 54
        %s2237 = smul.addr %s2236, 4
        %s2238 = scalar_lea.vmem %s2, %s2237
      $region44: #{basic_block_forward_nhwc.3} parent=39 // pred_fallthru
        _
      // Predicated region
      $region45: #{basic_block_forward_nhwc.3} parent=39 // pred_check
        %p2239 = pneg %p112
      $region46: #{basic_block_forward_nhwc.3} parent=39 // pred_check_branch
        %2241 = sbr.rel (%p2239) target = $region48
      $region47: #{basic_block_forward_nhwc.3} parent=39 // pred_region
        %p2242 = scmp.lt.s32.totalorder %s16, 1
        %s2243 = scalar_select %p2242, %s16, 1
        %s2244 = smul.addr %s2243, 2
        %s2245 = scalar_lea.vmem %s3, %s2244
      $region48: #{basic_block_forward_nhwc.3} parent=39 // pred_fallthru
        _
    $region40: #{basic_block_forward_nhwc.3} parent=5 // pred_fallthru
      _
  $region6: #{basic_block_forward_nhwc.3} parent=0 // loop_footer
    %s14 = sadd.s32 1, %s10
  $region7: #{basic_block_forward_nhwc.3} parent=0 // loop_footer_branch
    %9 = sbr.rel target = $region3
  $region8: #{basic_block_forward_nhwc.3} parent=0 // loop_exit
    _

</llo_original>
